<compile_context>
chip_gen: v6e
topology: v6e:2x2x1
jax: 0.10.0
libtpu: 0.0.40
codegen_flags: <defaults>
</compile_context>

<pallas_src>
from functools import partial

import numpy as np
import jax
import jax.numpy as jnp
from jax import lax
from jax.experimental import pallas as pl
from jax.experimental.pallas import tpu as pltpu

DPAD = 128   # feature-channel padding (lane axis): lanes 0..dim-1 features, lane dim = saliency head
NPAD = 128   # padded logits-column count (B + K real columns)
CPAD = 8     # input channels padded for the MXU 1x1-conv matmul
EPS = 1e-24  # rsqrt(max(sumsq, EPS)) == F.normalize's max(norm, 1e-12)


# -----------------------------------------------------------------------------
# Kernel 1: key path (momentum encoder) + dequeue/enqueue + negatives matrix.
# grid=(B,) "arbitrary": per-batch prototypes are carried in a VMEM scratch and a
# pl.when epilogue on the last step does the whole-batch tail work.
# -----------------------------------------------------------------------------
def _key_tail_kernel(queue_ref, ptr_ref, xk_ref, wk_ref, bk_ref, salk_ref, perm_ref,
                     queue_out_ref, negmat_ref, protos_sc, *, dim, n_batch, n_queue):
    b = pl.program_id(0)

    # ---- per-batch key features: 1x1-conv (MXU) -> l2norm -> saliency pool ------
    x = xk_ref[...]                                                    # (HW, CPAD)
    feat = jnp.dot(x, wk_ref[...], preferred_element_type=jnp.float32) + bk_ref[...]
    lane = lax.broadcasted_iota(jnp.int32, feat.shape, 1)
    feat = jnp.where(lane < dim, feat, 0.0)                            # drop sal/pad lanes
    inv = lax.rsqrt(jnp.maximum(jnp.sum(feat * feat, axis=-1, keepdims=True), EPS))
    kn = feat * inv                                                    # (HW, DPAD)
    proto = jnp.dot(salk_ref[...], kn, preferred_element_type=jnp.float32)  # (1, DPAD)
    protos_sc[pl.ds(b, 1), :] = proto

    # ---- epilogue: unshuffle, renorm, enqueue, negatives matrix ------------------
    @pl.when(b == pl.num_programs(0) - 1)
    def _():
        protos_sh = protos_sc[0:n_batch, :]                            # (B, DPAD), shuffled
        protos = jnp.dot(perm_ref[...], protos_sh,
                         preferred_element_type=jnp.float32)           # batch-unshuffle
        invp = lax.rsqrt(jnp.maximum(jnp.sum(protos * protos, axis=-1, keepdims=True), EPS))
        protos = protos * invp                                         # normalized prototypes

        q_old = queue_ref[...]                                         # (K, DPAD), pre-enqueue

        # dequeue & enqueue: one sublane-aligned dynamic-slice store into the aliased
        # queue buffer (queue is stored transposed + lane-padded as (K, 128)).
        ptr = pl.multiple_of(ptr_ref[0], n_batch)
        queue_out_ref[...] = q_old
        queue_out_ref[pl.ds(ptr, n_batch), :] = protos

        # negatives matrix (DPAD, NPAD): columns = [prototypes.T | old queue.T | 0 pad].
        # Rows are placed with 0/1 selector matmuls (MXU) and one square XLU transpose;
        # emitted in bf16 so the logits kernel needs no per-step astype of negmat.
        rp = lax.broadcasted_iota(jnp.int32, (NPAD, n_batch), 0)
        cp = lax.broadcasted_iota(jnp.int32, (NPAD, n_batch), 1)
        sel_p = (rp == cp).astype(jnp.float32)                         # (NPAD, B)
        rq = lax.broadcasted_iota(jnp.int32, (NPAD, n_queue), 0)
        cq = lax.broadcasted_iota(jnp.int32, (NPAD, n_queue), 1)
        sel_q = (rq == cq + n_batch).astype(jnp.float32)               # (NPAD, K)
        neg_t = (jnp.dot(sel_p, protos, preferred_element_type=jnp.float32) +
                 jnp.dot(sel_q, q_old, preferred_element_type=jnp.float32))  # (NPAD, DPAD)
        negmat_ref[...] = jnp.transpose(neg_t).astype(negmat_ref.dtype)


def _key_path_and_tail(queue, queue_ptr, xk8, wk8, bk8, salk_row, perm, *, dim):
    n_queue, dpad = queue.shape
    B, HW, cpad = xk8.shape
    return pl.pallas_call(
        partial(_key_tail_kernel, dim=dim, n_batch=B, n_queue=n_queue),
        out_shape=(jax.ShapeDtypeStruct((n_queue, dpad), jnp.float32),   # updated queue
                   jax.ShapeDtypeStruct((dpad, NPAD), jnp.bfloat16)),    # negatives matrix
        grid=(B,),
        in_specs=[pl.BlockSpec((n_queue, dpad), lambda b: (0, 0)),
                  pl.BlockSpec(memory_space=pltpu.MemorySpace.SMEM),     # queue_ptr scalar
                  pl.BlockSpec((None, HW, cpad), lambda b: (b, 0, 0)),
                  pl.BlockSpec((cpad, dpad), lambda b: (0, 0)),
                  pl.BlockSpec((1, dpad), lambda b: (0, 0)),
                  pl.BlockSpec((None, 1, HW), lambda b: (b, 0, 0)),
                  pl.BlockSpec((B, B), lambda b: (0, 0))],
        out_specs=(pl.BlockSpec((n_queue, dpad), lambda b: (0, 0)),
                   pl.BlockSpec((dpad, NPAD), lambda b: (0, 0))),
        scratch_shapes=[pltpu.VMEM((max(B, 8), dpad), jnp.float32)],
        # In-place queue update when the train step donates the queue buffer.
        input_output_aliases={0: 0},
        compiler_params=pltpu.CompilerParams(dimension_semantics=("arbitrary",)),
    )(queue, queue_ptr, xk8, wk8, bk8, salk_row, perm)


# -----------------------------------------------------------------------------
# Kernel 2: fused query path + per-pixel & superpixel contrastive logits + BCE.
# grid=(B,) "parallel" (megacore).  qn stays on-chip; logits use the bf16 MXU.
# -----------------------------------------------------------------------------
def _query_logits_kernel(xq_ref, wq_ref, bq_ref, salr_ref, salc_ref, neg_ref,
                         logits_ref, mlog_ref, bce_ref, *, dim, inv_t):
    x = xq_ref[...]                                                    # (HW, CPAD)
    feat_all = jnp.dot(x, wq_ref[...], preferred_element_type=jnp.float32) + bq_ref[...]
    lane = lax.broadcasted_iota(jnp.int32, feat_all.shape, 1)
    feat = jnp.where(lane < dim, feat_all, 0.0)                        # feature lanes only
    inv = lax.rsqrt(jnp.maximum(jnp.sum(feat * feat, axis=-1, keepdims=True), EPS))
    qn = feat * inv                                                    # (HW, DPAD)

    # saliency-head logit lives in lane `dim` of the fused conv output
    bg = jnp.sum(jnp.where(lane == dim, feat_all, 0.0), axis=-1, keepdims=True)  # (HW, 1)

    # BalancedCrossEntropyLoss partial sums for this batch element (combined in XLA)
    lab = (salc_ref[...] >= 0.5).astype(jnp.float32)                   # (HW, 1)
    gt0 = (bg >= 0.0).astype(jnp.float32)
    lv = bg * (lab - gt0) - jnp.log1p(jnp.exp(bg - 2.0 * bg * gt0))
    lp = jnp.sum(-lab * lv, keepdims=True)                             # (1, 1)
    ln_ = jnp.sum(-(1.0 - lab) * lv, keepdims=True)
    npos = jnp.sum(lab, keepdims=True)
    nneg = jnp.sum(1.0 - lab, keepdims=True)
    lane_r = lax.broadcasted_iota(jnp.int32, bce_ref.shape, 1)         # (1, 128)
    bce_ref[...] = (jnp.where(lane_r == 0, lp, 0.0) + jnp.where(lane_r == 1, ln_, 0.0) +
                    jnp.where(lane_r == 2, npos, 0.0) + jnp.where(lane_r == 3, nneg, 0.0))

    # superpixel 'mean' query vector
    qm = jnp.dot(salr_ref[...], qn, preferred_element_type=jnp.float32)  # (1, DPAD)
    invm = lax.rsqrt(jnp.maximum(jnp.sum(qm * qm, axis=-1, keepdims=True), EPS))
    qmn = qm * invm

    # contrastive logits against [prototypes | queue] (bf16 MXU, f32 accumulation)
    neg = neg_ref[...]                                                 # (DPAD, NPAD) bf16
    logits_ref[...] = jnp.dot(qn.astype(jnp.bfloat16), neg,
                              preferred_element_type=jnp.float32) * inv_t
    mlog_ref[...] = jnp.dot(qmn.astype(jnp.bfloat16), neg,
                            preferred_element_type=jnp.float32) * inv_t


def _query_path_and_logits(xq8, wq8, bq8, salq_row, salq_col, negmat, *, dim, inv_t):
    B, HW, cpad = xq8.shape
    dpad = wq8.shape[1]
    return pl.pallas_call(
        partial(_query_logits_kernel, dim=dim, inv_t=inv_t),
        out_shape=(jax.ShapeDtypeStruct((B, HW, NPAD), jnp.float32),   # per-pixel logits
                   jax.ShapeDtypeStruct((B, 1, NPAD), jnp.float32),    # superpixel logits
                   jax.ShapeDtypeStruct((B, 1, 128), jnp.float32)),    # BCE partial sums
        grid=(B,),
        in_specs=[pl.BlockSpec((None, HW, cpad), lambda b: (b, 0, 0)),
                  pl.BlockSpec((cpad, dpad), lambda b: (0, 0)),
                  pl.BlockSpec((1, dpad), lambda b: (0, 0)),
                  pl.BlockSpec((None, 1, HW), lambda b: (b, 0, 0)),
                  pl.BlockSpec((None, HW, 1), lambda b: (b, 0, 0)),
                  pl.BlockSpec((dpad, NPAD), lambda b: (0, 0))],
        out_specs=(pl.BlockSpec((None, HW, NPAD), lambda b: (b, 0, 0)),
                   pl.BlockSpec((None, 1, NPAD), lambda b: (b, 0, 0)),
                   pl.BlockSpec((None, 1, 128), lambda b: (b, 0, 0))),
        compiler_params=pltpu.CompilerParams(dimension_semantics=("parallel",)),
    )(xq8, wq8, bq8, salq_row, salq_col, negmat)


# -----------------------------------------------------------------------------
# Static-shape device core (jitted).  All heavy work is inside the two kernels;
# the XLA glue is scalar math, tiny reshapes and the fixed-capacity anchor gather.
# -----------------------------------------------------------------------------
@partial(jax.jit, static_argnames=("dim", "m", "T"))
def _forward_core(params, key_params, queue, queue_ptr, im_q, im_k, sal_q, sal_k,
                  shuffle_key, *, dim, m, T):
    B, C, H, W = im_q.shape
    HW = H * W
    M = B * HW
    n_queue = queue.shape[0]
    assert B + n_queue <= NPAD
    assert n_queue % B == 0
    inv_t = 1.0 / T

    # ---- momentum update of the key encoder (reference: before the key forward) -
    key_params_new = jax.tree_util.tree_map(
        lambda pk, pq: m * pk + (1.0 - m) * pq, key_params, params)

    # ---- batch shuffle / unshuffle (world_size == 1) -----------------------------
    idx_shuffle = jax.random.permutation(shuffle_key, B)
    idx_unshuffle = jnp.argsort(idx_shuffle)
    perm = jax.nn.one_hot(idx_unshuffle, B, dtype=jnp.float32)   # prototype unshuffler

    # ---- image layout: NCHW -> (B, HW, CPAD) channel-last, zero-padded ----------
    # TODO(synk): a production input pipeline should deliver NHWC directly so this
    #             transpose (an extra HBM round trip of the images) disappears.
    def to_mxu_layout(im):
        x = jnp.transpose(im, (0, 2, 3, 1)).reshape(B, HW, C)
        return jnp.pad(x, ((0, 0), (0, 0), (0, CPAD - C)))

    xq8 = to_mxu_layout(im_q)
    xk8 = to_mxu_layout(im_k[idx_shuffle])
    salq_row = sal_q.reshape(B, 1, HW)
    salq_col = sal_q.reshape(B, HW, 1)
    salk_row = sal_k[idx_shuffle].reshape(B, 1, HW)

    # ---- kernel 1: key path + dequeue/enqueue + negatives matrix -----------------
    queue_new, negmat = _key_path_and_tail(
        queue, queue_ptr, xk8, key_params_new["w8"], key_params_new["b8"],
        salk_row, perm, dim=dim)

    # ---- kernel 2: fused query path + per-pixel & superpixel logits + BCE --------
    logits_full, mean_logits_pad, bce_parts = _query_path_and_logits(
        xq8, params["w8"], params["b8"], salq_row, salq_col, negmat,
        dim=dim, inv_t=inv_t)

    # ---- tiny XLA epilogue: BalancedCrossEntropy combine (scalar math) -----------
    parts = jnp.sum(bce_parts.reshape(B, 128), axis=0)
    loss_pos, loss_neg, npos, nneg = parts[0], parts[1], parts[2], parts[3]
    ntot = npos + nneg
    sal_loss = (nneg / ntot * loss_pos + npos / ntot * loss_neg) / ntot

    mean_logits = mean_logits_pad.reshape(B, NPAD)[:, :B + n_queue]
    mean_labels = jnp.arange(B, dtype=jnp.int32)

    # ---- anchor selection fully on-device (fixed-capacity index buffer) ----------
    offset = jnp.arange(0, 2 * B, 2, dtype=sal_q.dtype)
    t = ((sal_q + offset[:, None, None]) * sal_q).reshape(-1)          # (M,)
    n_anchors = jnp.sum((t != 0).astype(jnp.int32))
    anchor_idx = jnp.nonzero(t, size=M, fill_value=0)[0]
    targets_pad = (jnp.take(t, anchor_idx) // 2).astype(jnp.int32)     # int32 (x64 off)
    logits_pad = jnp.take(logits_full.reshape(M, NPAD), anchor_idx,
                          axis=0)[:, :B + n_queue]
    # TODO(synk): for production image sizes, gather the anchor rows inside kernel 2
    #             via PrefetchScalarGridSpec instead of materializing all-pixel logits.

    queue_ptr_new = (queue_ptr + B) % n_queue

    return (logits_pad, targets_pad, n_anchors, sal_loss, mean_logits, mean_labels,
            key_params_new, queue_new, queue_ptr_new)


def contrastive_forward(params, state, im_q, im_k, sal_q, sal_k, cfg, shuffle_key):
    (logits_pad, targets_pad, n_anchors, sal_loss, mean_logits, mean_labels,
     key_params_new, queue_new, queue_ptr_new) = _forward_core(
        params, state["key_params"], state["queue"], state["queue_ptr"],
        im_q, im_k, sal_q, sal_k, shuffle_key,
        dim=cfg["dim"], m=cfg["m"], T=cfg["T"])

    # Only host sync: realize the variable-length anchor view.  All heavy device work
    # above has already been dispatched (async) by the time this scalar is read.
    n = int(n_anchors)
    logits = logits_pad[:n]
    targets = targets_pad[:n]

    inveqv_loss = jnp.zeros((), jnp.float32)          # loss_coeff['inveqv'] == 0

    new_state = {"key_params": key_params_new,
                 "queue": queue_new,
                 "queue_ptr": queue_ptr_new}
    return (logits, targets, sal_loss, inveqv_loss, mean_logits, mean_labels), new_state


# -----------------------------------------------------------------------------
# Pure-JAX f32 reference of the PyTorch forward (for the tolerance check).
# -----------------------------------------------------------------------------
def _reference_forward(params, key_params, queue_kd, ptr, im_q, im_k, sal_q, sal_k,
                       shuffle_key, *, dim, m, T):
    B, C, H, W = im_q.shape
    HW = H * W
    w8, b8 = params["w8"], params["b8"]
    kw8 = m * key_params["w8"] + (1.0 - m) * w8
    kb8 = m * key_params["b8"] + (1.0 - m) * b8
    w_feat, w_sal = w8[:C, :dim], w8[:C, dim:dim + 1]
    b_feat, b_sal = b8[:, :dim], b8[:, dim:dim + 1]

    xq = jnp.transpose(im_q, (0, 2, 3, 1)).reshape(B * HW, C)
    feat = xq @ w_feat + b_feat
    bg = xq @ w_sal + b_sal
    qn = feat / jnp.maximum(jnp.linalg.norm(feat, axis=1, keepdims=True), 1e-12)

    lab = (sal_q.reshape(-1, 1) >= 0.5).astype(jnp.float32)
    gt0 = (bg >= 0.0).astype(jnp.float32)
    lv = bg * (lab - gt0) - jnp.log1p(jnp.exp(bg - 2.0 * bg * gt0))
    loss_pos = jnp.sum(-lab * lv)
    loss_neg = jnp.sum(-(1.0 - lab) * lv)
    npos, nneg = jnp.sum(lab), jnp.sum(1.0 - lab)
    ntot = npos + nneg
    sal_loss = (nneg / ntot * loss_pos + npos / ntot * loss_neg) / ntot

    qm = jnp.einsum("bh,bhd->bd", sal_q.reshape(B, HW), qn.reshape(B, HW, dim))
    qm = qm / jnp.maximum(jnp.linalg.norm(qm, axis=1, keepdims=True), 1e-12)

    idx_shuffle = jax.random.permutation(shuffle_key, B)
    idx_unshuffle = jnp.argsort(idx_shuffle)
    xk = jnp.transpose(im_k[idx_shuffle], (0, 2, 3, 1)).reshape(B * HW, C)
    kf = xk @ kw8[:C, :dim] + kb8[:, :dim]
    kn = kf / jnp.maximum(jnp.linalg.norm(kf, axis=1, keepdims=True), 1e-12)
    protos = jnp.einsum("bh,bhd->bd", sal_k[idx_shuffle].reshape(B, HW),
                        kn.reshape(B, HW, dim))[idx_unshuffle]
    protos = protos / jnp.maximum(jnp.linalg.norm(protos, axis=1, keepdims=True), 1e-12)

    offset = jnp.arange(0, 2 * B, 2, dtype=sal_q.dtype)
    t = np.asarray(((sal_q + offset[:, None, None]) * sal_q).reshape(-1))
    idx = np.nonzero(t)[0]
    targets = (t[idx] // 2).astype(np.int32)
    anchor = qn[idx]

    negatives = queue_kd[:, :dim].T                                    # (dim, K)
    logits = jnp.concatenate([anchor @ protos.T, anchor @ negatives], axis=1) / T
    mean_logits = jnp.concatenate([qm @ protos.T, qm @ negatives], axis=1) / T
    queue_new = queue_kd[:, :dim].at[ptr:ptr + B, :].set(protos)       # (K, dim)
    return logits, targets, sal_loss, mean_logits, queue_new


# -----------------------------------------------------------------------------
# main
# -----------------------------------------------------------------------------
if __name__ == "__main__":
    B, C, H, W = 2, 3, 16, 16
    HW = H * W
    cfg = {"dim": 32, "K": 64, "m": 0.999, "T": 0.2}
    dim, K = cfg["dim"], cfg["K"]

    key = jax.random.PRNGKey(0)
    k_wf, k_bf, k_ws, k_queue, k_imq, k_imk, k_shuf = jax.random.split(key, 7)

    # 1x1-conv backbone params packed for the MXU: rows = input channels (padded to
    # CPAD); lanes 0..dim-1 = feature head, lane `dim` = saliency-logit head, rest 0.
    w_feat = jax.random.normal(k_wf, (C, dim), jnp.float32) * 0.1
    b_feat = jax.random.normal(k_bf, (1, dim), jnp.float32) * 0.1
    w_sal = jax.random.normal(k_ws, (C, 1), jnp.float32) * 0.1
    b_sal = jnp.full((1, 1), 0.05, jnp.float32)
    w8 = jnp.zeros((CPAD, DPAD), jnp.float32)
    w8 = w8.at[:C, :dim].set(w_feat).at[:C, dim:dim + 1].set(w_sal)
    b8 = jnp.zeros((1, DPAD), jnp.float32)
    b8 = b8.at[:, :dim].set(b_feat).at[:, dim:dim + 1].set(b_sal)
    params = {"w8": w8, "b8": b8}

    # queue: stored transposed + lane-padded as (K, 128) so the in-kernel enqueue is a
    # sublane-aligned dynamic-slice store.  Rows are l2-normalized over lanes :dim
    # (== the reference's randn(dim, K) normalized along dim=0).
    q0 = jax.random.normal(k_queue, (K, dim), jnp.float32)
    q0 = q0 / jnp.maximum(jnp.linalg.norm(q0, axis=1, keepdims=True), 1e-12)
    queue = jnp.zeros((K, DPAD), jnp.float32).at[:, :dim].set(q0)
    state = {"key_params": {"w8": w8, "b8": b8},      # model_k initialized from model_q
             "queue": queue,
             "queue_ptr": jnp.zeros((1,), jnp.int32)}

    im_q = jax.random.normal(k_imq, (B, C, H, W), jnp.float32)
    im_k = jax.random.normal(k_imk, (B, C, H, W), jnp.float32)
    sal_q_np = np.zeros((B, H, W), np.float32); sal_q_np[:, 4:12, 4:12] = 1.0
    sal_k_np = np.zeros((B, H, W), np.float32); sal_k_np[:, 3:11, 5:13] = 1.0
    sal_q = jnp.asarray(sal_q_np)
    sal_k = jnp.asarray(sal_k_np)

    outs, new_state = contrastive_forward(params, state, im_q, im_k, sal_q, sal_k,
                                          cfg, k_shuf)
    logits, targets, sal_loss, inveqv_loss, mean_logits, mean_labels = outs
    jax.block_until_ready((logits, targets, sal_loss, inveqv_loss, mean_logits,
                           mean_labels, new_state["queue"], new_state["queue_ptr"]))

    # ---- shape checks ------------------------------------------------------------
    n_sel = int(sal_q_np.sum())
    assert logits.shape == (n_sel, B + K)
    assert targets.shape == (n_sel,)
    assert mean_logits.shape == (B, B + K)
    assert mean_labels.shape == (B,)
    assert new_state["queue"].shape == (K, DPAD)
    assert int(new_state["queue_ptr"][0]) == (0 + B) % K
    assert np.isfinite(float(sal_loss))

    # ---- numerical check vs. pure-JAX f32 reference of the PyTorch forward --------
    r_logits, r_targets, r_sal_loss, r_mean_logits, r_queue_new = _reference_forward(
        params, state["key_params"], state["queue"], int(state["queue_ptr"][0]),
        im_q, im_k, sal_q, sal_k, k_shuf, dim=dim, m=cfg["m"], T=cfg["T"])
    np.testing.assert_array_equal(np.asarray(targets), np.asarray(r_targets))
    np.testing.assert_allclose(np.asarray(sal_loss), np.asarray(r_sal_loss),
                               rtol=1e-2, atol=5e-3)
    np.testing.assert_allclose(np.asarray(new_state["queue"][:, :dim]),
                               np.asarray(r_queue_new), rtol=0, atol=5e-3)
    # logits use the bf16 MXU (scaled by 1/T=5) -> loose absolute tolerance vs f32 ref.
    np.testing.assert_allclose(np.asarray(logits), np.asarray(r_logits),
                               rtol=0, atol=5e-2)
    np.testing.assert_allclose(np.asarray(mean_logits), np.asarray(r_mean_logits),
                               rtol=0, atol=5e-2)

    print("KERNEL_OK")
</pallas_src>

<mosaic_0001>
module attributes {stable_mosaic.version = 11 : i64} {
  func.func private @main(%arg0: i32) attributes {dimension_semantics = [#tpu.dimension_semantics<core_parallel>], iteration_bounds = array<i64: 2>, tpu.core_type = #tpu.core_type<sc_scalar_subcore>, window_params = []} {
    return
  }
}

module attributes {stable_mosaic.version = 11 : i64} {
  func.func private @main(%arg0: i32) attributes {dimension_semantics = [#tpu.dimension_semantics<core_parallel>], iteration_bounds = array<i64: 2>, tpu.core_type = #tpu.core_type<sc_scalar_subcore>, window_params = []} {
    return
  }
}

module attributes {stable_mosaic.version = 11 : i64} {
  func.func @_key_tail_kernel(%arg0: i32, %arg1: memref<64x128xf32, #tpu.memory_space<vmem>>, %arg2: memref<1xi32, #tpu.memory_space<smem>>, %arg3: memref<1x256x8xf32, #tpu.memory_space<vmem>>, %arg4: memref<8x128xf32, #tpu.memory_space<vmem>>, %arg5: memref<1x128xf32, #tpu.memory_space<vmem>>, %arg6: memref<1x1x256xf32, #tpu.memory_space<vmem>>, %arg7: memref<2x2xf32, #tpu.memory_space<vmem>>, %arg8: memref<64x128xf32, #tpu.memory_space<vmem>>, %arg9: memref<128x128xbf16, #tpu.memory_space<vmem>>, %arg10: memref<8x128xf32, #tpu.memory_space<vmem>>) attributes {dimension_semantics = [#tpu.dimension_semantics<arbitrary>], iteration_bounds = array<i64: 2>, scalar_prefetch = 0 : i64, scratch_operands = 1 : i64, tpu.core_type = #tpu.core_type<tc>, window_params = [{pipeline_mode = #tpu.pipeline_mode<synchronous>, transform_indices = @transform_0, window_bounds = array<i64: 64, 128>}, {transform_indices = @transform_1, window_bounds = array<i64: 1>}, {transform_indices = @transform_2, window_bounds = array<i64: 1, 256, 8>}, {pipeline_mode = #tpu.pipeline_mode<synchronous>, transform_indices = @transform_3, window_bounds = array<i64: 8, 128>}, {pipeline_mode = #tpu.pipeline_mode<synchronous>, transform_indices = @transform_4, window_bounds = array<i64: 1, 128>}, {transform_indices = @transform_5, window_bounds = array<i64: 1, 1, 256>}, {pipeline_mode = #tpu.pipeline_mode<synchronous>, transform_indices = @transform_6, window_bounds = array<i64: 2, 2>}, {pipeline_mode = #tpu.pipeline_mode<synchronous>, transform_indices = @transform_7, window_bounds = array<i64: 64, 128>}, {pipeline_mode = #tpu.pipeline_mode<synchronous>, transform_indices = @transform_8, window_bounds = array<i64: 128, 128>}]} {
    %c0 = arith.constant 0 : index
    %c0_0 = arith.constant 0 : index
    %c0_1 = arith.constant 0 : index
    %0 = vector.load %arg3[%c0, %c0_0, %c0_1] : memref<1x256x8xf32, #tpu.memory_space<vmem>>, vector<1x256x8xf32>
    %1 = vector.shape_cast %0 : vector<1x256x8xf32> to vector<256x8xf32>
    %c0_2 = arith.constant 0 : index
    %c0_3 = arith.constant 0 : index
    %2 = vector.load %arg4[%c0_2, %c0_3] : memref<8x128xf32, #tpu.memory_space<vmem>>, vector<8x128xf32>
    %cst = arith.constant dense<0.000000e+00> : vector<256x128xf32>
    %3 = tpu.matmul %1, %2, %cst {dimension_numbers = #tpu.dot_dimension_numbers<[1], [0], [0], [1], [0, 0, 1, 1], [], []>} : vector<256x8xf32>, vector<8x128xf32>, vector<256x128xf32> -> vector<256x128xf32>
    %c0_4 = arith.constant 0 : index
    %c0_5 = arith.constant 0 : index
    %4 = vector.load %arg5[%c0_4, %c0_5] : memref<1x128xf32, #tpu.memory_space<vmem>>, vector<1x128xf32>
    %5 = vector.broadcast %4 : vector<1x128xf32> to vector<256x128xf32>
    %6 = arith.addf %3, %5 : vector<256x128xf32>
    %7 = tpu.iota {dimensions = array<i32: 1>} : vector<256x128xi32>
    %c32_i32 = arith.constant 32 : i32
    %8 = vector.broadcast %c32_i32 : i32 to vector<256x128xi32>
    %9 = arith.cmpi slt, %7, %8 : vector<256x128xi32>
    %cst_6 = arith.constant 0.000000e+00 : f32
    %10 = vector.broadcast %cst_6 : f32 to vector<256x128xf32>
    %11 = arith.select %9, %6, %10 : vector<256x128xi1>, vector<256x128xf32>
    %12 = arith.mulf %11, %11 : vector<256x128xf32>
    %cst_7 = arith.constant dense<0.000000e+00> : vector<256xf32>
    %13 = vector.multi_reduction <add>, %12, %cst_7 [1] : vector<256x128xf32> to vector<256xf32>
    %14 = vector.shape_cast %13 : vector<256xf32> to vector<256x1xf32>
    %cst_8 = arith.constant 1.000000e-24 : f32
    %15 = vector.broadcast %cst_8 : f32 to vector<256x1xf32>
    %16 = arith.maximumf %14, %15 : vector<256x1xf32>
    %17 = math.rsqrt %16 : vector<256x1xf32>
    %18 = vector.broadcast %17 : vector<256x1xf32> to vector<256x128xf32>
    %19 = arith.mulf %11, %18 : vector<256x128xf32>
    %c0_9 = arith.constant 0 : index
    %c0_10 = arith.constant 0 : index
    %c0_11 = arith.constant 0 : index
    %20 = vector.load %arg6[%c0_9, %c0_10, %c0_11] : memref<1x1x256xf32, #tpu.memory_space<vmem>>, vector<1x1x256xf32>
    %21 = vector.shape_cast %20 : vector<1x1x256xf32> to vector<1x256xf32>
    %cst_12 = arith.constant dense<0.000000e+00> : vector<1x128xf32>
    %22 = tpu.matmul %21, %19, %cst_12 {dimension_numbers = #tpu.dot_dimension_numbers<[1], [0], [0], [1], [0, 0, 1, 1], [], []>} : vector<1x256xf32>, vector<256x128xf32>, vector<1x128xf32> -> vector<1x128xf32>
    %23 = arith.index_cast %arg0 : i32 to index
    %c0_13 = arith.constant 0 : index
    %24 = vector.load %arg10[%23, %c0_13] : memref<8x128xf32, #tpu.memory_space<vmem>>, vector<1x128xf32>
    tpu.vector_store %arg10[%23, %c0_13], %22 {strides = array<i32>} : memref<8x128xf32, #tpu.memory_space<vmem>>, vector<1x128xf32>,
    %c1_i32 = arith.constant 1 : i32
    %25 = arith.cmpi eq, %arg0, %c1_i32 : i32
    %26 = arith.extui %25 : i1 to i32
    %c0_i32 = arith.constant 0 : i32
    %27 = arith.cmpi ne, %26, %c0_i32 : i32
    scf.if %27 {
      %c0_14 = arith.constant 0 : index
      %c0_15 = arith.constant 0 : index
      %28 = vector.load %arg10[%c0_14, %c0_15] : memref<8x128xf32, #tpu.memory_space<vmem>>, vector<2x128xf32>
      %c0_16 = arith.constant 0 : index
      %c0_17 = arith.constant 0 : index
      %29 = vector.load %arg7[%c0_16, %c0_17] : memref<2x2xf32, #tpu.memory_space<vmem>>, vector<2x2xf32>
      %cst_18 = arith.constant dense<0.000000e+00> : vector<2x128xf32>
      %30 = tpu.matmul %29, %28, %cst_18 {dimension_numbers = #tpu.dot_dimension_numbers<[1], [0], [0], [1], [0, 0, 1, 1], [], []>} : vector<2x2xf32>, vector<2x128xf32>, vector<2x128xf32> -> vector<2x128xf32>
      %31 = arith.mulf %30, %30 : vector<2x128xf32>
      %cst_19 = arith.constant dense<0.000000e+00> : vector<2xf32>
      %32 = vector.multi_reduction <add>, %31, %cst_19 [1] : vector<2x128xf32> to vector<2xf32>
      %33 = vector.shape_cast %32 : vector<2xf32> to vector<2x1xf32>
      %cst_20 = arith.constant 1.000000e-24 : f32
      %34 = vector.broadcast %cst_20 : f32 to vector<2x1xf32>
      %35 = arith.maximumf %33, %34 : vector<2x1xf32>
      %36 = math.rsqrt %35 : vector<2x1xf32>
      %37 = vector.broadcast %36 : vector<2x1xf32> to vector<2x128xf32>
      %38 = arith.mulf %30, %37 : vector<2x128xf32>
      %c0_21 = arith.constant 0 : index
      %c0_22 = arith.constant 0 : index
      %39 = vector.load %arg1[%c0_21, %c0_22] : memref<64x128xf32, #tpu.memory_space<vmem>>, vector<64x128xf32>
      %c0_23 = arith.constant 0 : index
      %40 = memref.load %arg2[%c0_23] : memref<1xi32, #tpu.memory_space<smem>>
      %41 = tpu.assume_multiple %40, 2 : i32
      %c0_24 = arith.constant 0 : index
      %c0_25 = arith.constant 0 : index
      %42 = vector.load %arg8[%c0_24, %c0_25] : memref<64x128xf32, #tpu.memory_space<vmem>>, vector<64x128xf32>
      tpu.vector_store %arg8[%c0_24, %c0_25], %39 {strides = array<i32>} : memref<64x128xf32, #tpu.memory_space<vmem>>, vector<64x128xf32>,
      %43 = arith.index_cast %41 : i32 to index
      %c0_26 = arith.constant 0 : index
      %44 = vector.load %arg8[%43, %c0_26] : memref<64x128xf32, #tpu.memory_space<vmem>>, vector<2x128xf32>
      tpu.vector_store %arg8[%43, %c0_26], %38 {strides = array<i32>} : memref<64x128xf32, #tpu.memory_space<vmem>>, vector<2x128xf32>,
      %45 = tpu.iota {dimensions = array<i32: 0>} : vector<128x2xi32>
      %46 = tpu.iota {dimensions = array<i32: 1>} : vector<128x2xi32>
      %47 = arith.cmpi eq, %45, %46 : vector<128x2xi32>
      %48 = arith.extui %47 : vector<128x2xi1> to vector<128x2xi32>
      %49 = arith.sitofp %48 : vector<128x2xi32> to vector<128x2xf32>
      %50 = tpu.iota {dimensions = array<i32: 0>} : vector<128x64xi32>
      %51 = tpu.iota {dimensions = array<i32: 1>} : vector<128x64xi32>
      %c2_i32 = arith.constant 2 : i32
      %52 = vector.broadcast %c2_i32 : i32 to vector<128x64xi32>
      %53 = arith.addi %51, %52 : vector<128x64xi32>
      %54 = arith.cmpi eq, %50, %53 : vector<128x64xi32>
      %55 = arith.extui %54 : vector<128x64xi1> to vector<128x64xi32>
      %56 = arith.sitofp %55 : vector<128x64xi32> to vector<128x64xf32>
      %cst_27 = arith.constant dense<0.000000e+00> : vector<128x128xf32>
      %57 = tpu.matmul %49, %38, %cst_27 {dimension_numbers = #tpu.dot_dimension_numbers<[1], [0], [0], [1], [0, 0, 1, 1], [], []>} : vector<128x2xf32>, vector<2x128xf32>, vector<128x128xf32> -> vector<128x128xf32>
      %cst_28 = arith.constant dense<0.000000e+00> : vector<128x128xf32>
      %58 = tpu.matmul %56, %39, %cst_28 {dimension_numbers = #tpu.dot_dimension_numbers<[1], [0], [0], [1], [0, 0, 1, 1], [], []>} : vector<128x64xf32>, vector<64x128xf32>, vector<128x128xf32> -> vector<128x128xf32>
      %59 = arith.addf %57, %58 : vector<128x128xf32>
      %60 = tpu.transpose %59, [1, 0] : vector<128x128xf32> -> vector<128x128xf32>
      %61 = arith.truncf %60 : vector<128x128xf32> to vector<128x128xbf16>
      %c0_29 = arith.constant 0 : index
      %c0_30 = arith.constant 0 : index
      %62 = vector.load %arg9[%c0_29, %c0_30] : memref<128x128xbf16, #tpu.memory_space<vmem>>, vector<128x128xbf16>
      tpu.vector_store %arg9[%c0_29, %c0_30], %61 {strides = array<i32>} : memref<128x128xbf16, #tpu.memory_space<vmem>>, vector<128x128xbf16>,
    } else {
    }
    return
  }
  func.func @transform_0(%arg0: i32) -> (i32, i32) {
    %c0_i32 = arith.constant 0 : i32
    %c0_i32_0 = arith.constant 0 : i32
    %c0_i32_1 = arith.constant 0 : i32
    return %c0_i32, %c0_i32_0 : i32, i32
  }
  func.func @transform_1(%arg0: i32) -> i32 {
    %c0_i32 = arith.constant 0 : i32
    %c0_i32_0 = arith.constant 0 : i32
    return %c0_i32 : i32
  }
  func.func @transform_2(%arg0: i32) -> (i32, i32, i32) {
    %c0_i32 = arith.constant 0 : i32
    %c0_i32_0 = arith.constant 0 : i32
    %c0_i32_1 = arith.constant 0 : i32
    return %arg0, %c0_i32, %c0_i32_0 : i32, i32, i32
  }
  func.func @transform_3(%arg0: i32) -> (i32, i32) {
    %c0_i32 = arith.constant 0 : i32
    %c0_i32_0 = arith.constant 0 : i32
    %c0_i32_1 = arith.constant 0 : i32
    return %c0_i32, %c0_i32_0 : i32, i32
  }
  func.func @transform_4(%arg0: i32) -> (i32, i32) {
    %c0_i32 = arith.constant 0 : i32
    %c0_i32_0 = arith.constant 0 : i32
    %c0_i32_1 = arith.constant 0 : i32
    return %c0_i32, %c0_i32_0 : i32, i32
  }
  func.func @transform_5(%arg0: i32) -> (i32, i32, i32) {
    %c0_i32 = arith.constant 0 : i32
    %c0_i32_0 = arith.constant 0 : i32
    %c0_i32_1 = arith.constant 0 : i32
    return %arg0, %c0_i32, %c0_i32_0 : i32, i32, i32
  }
  func.func @transform_6(%arg0: i32) -> (i32, i32) {
    %c0_i32 = arith.constant 0 : i32
    %c0_i32_0 = arith.constant 0 : i32
    %c0_i32_1 = arith.constant 0 : i32
    return %c0_i32, %c0_i32_0 : i32, i32
  }
  func.func @transform_7(%arg0: i32) -> (i32, i32) {
    %c0_i32 = arith.constant 0 : i32
    %c0_i32_0 = arith.constant 0 : i32
    %c0_i32_1 = arith.constant 0 : i32
    return %c0_i32, %c0_i32_0 : i32, i32
  }
  func.func @transform_8(%arg0: i32) -> (i32, i32) {
    %c0_i32 = arith.constant 0 : i32
    %c0_i32_0 = arith.constant 0 : i32
    %c0_i32_1 = arith.constant 0 : i32
    return %c0_i32, %c0_i32_0 : i32, i32
  }
}

module attributes {stable_mosaic.version = 11 : i64} {
  func.func @_query_logits_kernel(%arg0: i32, %arg1: memref<1x256x8xf32, #tpu.memory_space<vmem>>, %arg2: memref<8x128xf32, #tpu.memory_space<vmem>>, %arg3: memref<1x128xf32, #tpu.memory_space<vmem>>, %arg4: memref<1x1x256xf32, #tpu.memory_space<vmem>>, %arg5: memref<1x256x1xf32, #tpu.memory_space<vmem>>, %arg6: memref<128x128xbf16, #tpu.memory_space<vmem>>, %arg7: memref<1x256x128xf32, #tpu.memory_space<vmem>>, %arg8: memref<1x1x128xf32, #tpu.memory_space<vmem>>, %arg9: memref<1x1x128xf32, #tpu.memory_space<vmem>>) attributes {dimension_semantics = [#tpu.dimension_semantics<parallel>], iteration_bounds = array<i64: 2>, scalar_prefetch = 0 : i64, scratch_operands = 0 : i64, tpu.core_type = #tpu.core_type<tc>, window_params = [{transform_indices = @transform_0, window_bounds = array<i64: 1, 256, 8>}, {pipeline_mode = #tpu.pipeline_mode<synchronous>, transform_indices = @transform_1, window_bounds = array<i64: 8, 128>}, {pipeline_mode = #tpu.pipeline_mode<synchronous>, transform_indices = @transform_2, window_bounds = array<i64: 1, 128>}, {transform_indices = @transform_3, window_bounds = array<i64: 1, 1, 256>}, {transform_indices = @transform_4, window_bounds = array<i64: 1, 256, 1>}, {pipeline_mode = #tpu.pipeline_mode<synchronous>, transform_indices = @transform_5, window_bounds = array<i64: 128, 128>}, {transform_indices = @transform_6, window_bounds = array<i64: 1, 256, 128>}, {transform_indices = @transform_7, window_bounds = array<i64: 1, 1, 128>}, {transform_indices = @transform_8, window_bounds = array<i64: 1, 1, 128>}]} {
    %c0 = arith.constant 0 : index
    %c0_0 = arith.constant 0 : index
    %c0_1 = arith.constant 0 : index
    %0 = vector.load %arg1[%c0, %c0_0, %c0_1] : memref<1x256x8xf32, #tpu.memory_space<vmem>>, vector<1x256x8xf32>
    %1 = vector.shape_cast %0 : vector<1x256x8xf32> to vector<256x8xf32>
    %c0_2 = arith.constant 0 : index
    %c0_3 = arith.constant 0 : index
    %2 = vector.load %arg2[%c0_2, %c0_3] : memref<8x128xf32, #tpu.memory_space<vmem>>, vector<8x128xf32>
    %cst = arith.constant dense<0.000000e+00> : vector<256x128xf32>
    %3 = tpu.matmul %1, %2, %cst {dimension_numbers = #tpu.dot_dimension_numbers<[1], [0], [0], [1], [0, 0, 1, 1], [], []>} : vector<256x8xf32>, vector<8x128xf32>, vector<256x128xf32> -> vector<256x128xf32>
    %c0_4 = arith.constant 0 : index
    %c0_5 = arith.constant 0 : index
    %4 = vector.load %arg3[%c0_4, %c0_5] : memref<1x128xf32, #tpu.memory_space<vmem>>, vector<1x128xf32>
    %5 = vector.broadcast %4 : vector<1x128xf32> to vector<256x128xf32>
    %6 = arith.addf %3, %5 : vector<256x128xf32>
    %7 = tpu.iota {dimensions = array<i32: 1>} : vector<256x128xi32>
    %c32_i32 = arith.constant 32 : i32
    %8 = vector.broadcast %c32_i32 : i32 to vector<256x128xi32>
    %9 = arith.cmpi slt, %7, %8 : vector<256x128xi32>
    %cst_6 = arith.constant 0.000000e+00 : f32
    %10 = vector.broadcast %cst_6 : f32 to vector<256x128xf32>
    %11 = arith.select %9, %6, %10 : vector<256x128xi1>, vector<256x128xf32>
    %12 = arith.mulf %11, %11 : vector<256x128xf32>
    %cst_7 = arith.constant dense<0.000000e+00> : vector<256xf32>
    %13 = vector.multi_reduction <add>, %12, %cst_7 [1] : vector<256x128xf32> to vector<256xf32>
    %14 = vector.shape_cast %13 : vector<256xf32> to vector<256x1xf32>
    %cst_8 = arith.constant 1.000000e-24 : f32
    %15 = vector.broadcast %cst_8 : f32 to vector<256x1xf32>
    %16 = arith.maximumf %14, %15 : vector<256x1xf32>
    %17 = math.rsqrt %16 : vector<256x1xf32>
    %18 = vector.broadcast %17 : vector<256x1xf32> to vector<256x128xf32>
    %19 = arith.mulf %11, %18 : vector<256x128xf32>
    %c32_i32_9 = arith.constant 32 : i32
    %20 = vector.broadcast %c32_i32_9 : i32 to vector<256x128xi32>
    %21 = arith.cmpi eq, %7, %20 : vector<256x128xi32>
    %cst_10 = arith.constant 0.000000e+00 : f32
    %22 = vector.broadcast %cst_10 : f32 to vector<256x128xf32>
    %23 = arith.select %21, %6, %22 : vector<256x128xi1>, vector<256x128xf32>
    %cst_11 = arith.constant dense<0.000000e+00> : vector<256xf32>
    %24 = vector.multi_reduction <add>, %23, %cst_11 [1] : vector<256x128xf32> to vector<256xf32>
    %25 = vector.shape_cast %24 : vector<256xf32> to vector<256x1xf32>
    %c0_12 = arith.constant 0 : index
    %c0_13 = arith.constant 0 : index
    %c0_14 = arith.constant 0 : index
    %26 = vector.load %arg5[%c0_12, %c0_13, %c0_14] : memref<1x256x1xf32, #tpu.memory_space<vmem>>, vector<1x256x1xf32>
    %27 = vector.shape_cast %26 : vector<1x256x1xf32> to vector<256x1xf32>
    %cst_15 = arith.constant 5.000000e-01 : f32
    %28 = vector.broadcast %cst_15 : f32 to vector<256x1xf32>
    %29 = arith.cmpf oge, %27, %28 : vector<256x1xf32>
    %30 = arith.extui %29 : vector<256x1xi1> to vector<256x1xi32>
    %31 = arith.sitofp %30 : vector<256x1xi32> to vector<256x1xf32>
    %cst_16 = arith.constant 0.000000e+00 : f32
    %32 = vector.broadcast %cst_16 : f32 to vector<256x1xf32>
    %33 = arith.cmpf oge, %25, %32 : vector<256x1xf32>
    %34 = arith.extui %33 : vector<256x1xi1> to vector<256x1xi32>
    %35 = arith.sitofp %34 : vector<256x1xi32> to vector<256x1xf32>
    %36 = arith.subf %31, %35 : vector<256x1xf32>
    %37 = arith.mulf %25, %36 : vector<256x1xf32>
    %cst_17 = arith.constant 2.000000e+00 : f32
    %38 = vector.broadcast %cst_17 : f32 to vector<256x1xf32>
    %39 = arith.mulf %38, %25 : vector<256x1xf32>
    %40 = arith.mulf %39, %35 : vector<256x1xf32>
    %41 = arith.subf %25, %40 : vector<256x1xf32>
    %42 = math.exp %41 : vector<256x1xf32>
    %43 = math.log1p %42 : vector<256x1xf32>
    %44 = arith.subf %37, %43 : vector<256x1xf32>
    %cst_18 = arith.constant 0.000000e+00 : f32
    %45 = vector.broadcast %cst_18 : f32 to vector<256x1xf32>
    %46 = arith.subf %45, %31 : vector<256x1xf32>
    %47 = arith.mulf %46, %44 : vector<256x1xf32>
    %48 = vector.shape_cast %47 : vector<256x1xf32> to vector<1x256x1xf32>
    %cst_19 = arith.constant dense<0.000000e+00> : vector<1xf32>
    %49 = vector.multi_reduction <add>, %48, %cst_19 [1, 2] : vector<1x256x1xf32> to vector<1xf32>
    %50 = vector.shape_cast %49 : vector<1xf32> to vector<1x1x1xf32>
    %51 = vector.extract %50[0, 0, 0] : f32 from vector<1x1x1xf32>
    %52 = vector.broadcast %51 : f32 to vector<1x1xf32>
    %cst_20 = arith.constant 1.000000e+00 : f32
    %53 = vector.broadcast %cst_20 : f32 to vector<256x1xf32>
    %54 = arith.subf %53, %31 : vector<256x1xf32>
    %cst_21 = arith.constant 0.000000e+00 : f32
    %55 = vector.broadcast %cst_21 : f32 to vector<256x1xf32>
    %56 = arith.subf %55, %54 : vector<256x1xf32>
    %57 = arith.mulf %56, %44 : vector<256x1xf32>
    %58 = vector.shape_cast %57 : vector<256x1xf32> to vector<1x256x1xf32>
    %cst_22 = arith.constant dense<0.000000e+00> : vector<1xf32>
    %59 = vector.multi_reduction <add>, %58, %cst_22 [1, 2] : vector<1x256x1xf32> to vector<1xf32>
    %60 = vector.shape_cast %59 : vector<1xf32> to vector<1x1x1xf32>
    %61 = vector.extract %60[0, 0, 0] : f32 from vector<1x1x1xf32>
    %62 = vector.broadcast %61 : f32 to vector<1x1xf32>
    %63 = vector.shape_cast %31 : vector<256x1xf32> to vector<1x256x1xf32>
    %cst_23 = arith.constant dense<0.000000e+00> : vector<1xf32>
    %64 = vector.multi_reduction <add>, %63, %cst_23 [1, 2] : vector<1x256x1xf32> to vector<1xf32>
    %65 = vector.shape_cast %64 : vector<1xf32> to vector<1x1x1xf32>
    %66 = vector.extract %65[0, 0, 0] : f32 from vector<1x1x1xf32>
    %67 = vector.broadcast %66 : f32 to vector<1x1xf32>
    %cst_24 = arith.constant 1.000000e+00 : f32
    %68 = vector.broadcast %cst_24 : f32 to vector<256x1xf32>
    %69 = arith.subf %68, %31 : vector<256x1xf32>
    %70 = vector.shape_cast %69 : vector<256x1xf32> to vector<1x256x1xf32>
    %cst_25 = arith.constant dense<0.000000e+00> : vector<1xf32>
    %71 = vector.multi_reduction <add>, %70, %cst_25 [1, 2] : vector<1x256x1xf32> to vector<1xf32>
    %72 = vector.shape_cast %71 : vector<1xf32> to vector<1x1x1xf32>
    %73 = vector.extract %72[0, 0, 0] : f32 from vector<1x1x1xf32>
    %74 = vector.broadcast %73 : f32 to vector<1x1xf32>
    %75 = tpu.iota {dimensions = array<i32: 1>} : vector<1x128xi32>
    %c0_i32 = arith.constant 0 : i32
    %76 = vector.broadcast %c0_i32 : i32 to vector<1x128xi32>
    %77 = arith.cmpi eq, %75, %76 : vector<1x128xi32>
    %cst_26 = arith.constant 0.000000e+00 : f32
    %78 = vector.shape_cast %52 : vector<1x1xf32> to vector<1x1xf32>
    %79 = vector.broadcast %78 : vector<1x1xf32> to vector<1x128xf32>
    %80 = vector.broadcast %cst_26 : f32 to vector<1x128xf32>
    %81 = arith.select %77, %79, %80 : vector<1x128xi1>, vector<1x128xf32>
    %c1_i32 = arith.constant 1 : i32
    %82 = vector.broadcast %c1_i32 : i32 to vector<1x128xi32>
    %83 = arith.cmpi eq, %75, %82 : vector<1x128xi32>
    %cst_27 = arith.constant 0.000000e+00 : f32
    %84 = vector.shape_cast %62 : vector<1x1xf32> to vector<1x1xf32>
    %85 = vector.broadcast %84 : vector<1x1xf32> to vector<1x128xf32>
    %86 = vector.broadcast %cst_27 : f32 to vector<1x128xf32>
    %87 = arith.select %83, %85, %86 : vector<1x128xi1>, vector<1x128xf32>
    %88 = arith.addf %81, %87 : vector<1x128xf32>
    %c2_i32 = arith.constant 2 : i32
    %89 = vector.broadcast %c2_i32 : i32 to vector<1x128xi32>
    %90 = arith.cmpi eq, %75, %89 : vector<1x128xi32>
    %cst_28 = arith.constant 0.000000e+00 : f32
    %91 = vector.shape_cast %67 : vector<1x1xf32> to vector<1x1xf32>
    %92 = vector.broadcast %91 : vector<1x1xf32> to vector<1x128xf32>
    %93 = vector.broadcast %cst_28 : f32 to vector<1x128xf32>
    %94 = arith.select %90, %92, %93 : vector<1x128xi1>, vector<1x128xf32>
    %95 = arith.addf %88, %94 : vector<1x128xf32>
    %c3_i32 = arith.constant 3 : i32
    %96 = vector.broadcast %c3_i32 : i32 to vector<1x128xi32>
    %97 = arith.cmpi eq, %75, %96 : vector<1x128xi32>
    %cst_29 = arith.constant 0.000000e+00 : f32
    %98 = vector.shape_cast %74 : vector<1x1xf32> to vector<1x1xf32>
    %99 = vector.broadcast %98 : vector<1x1xf32> to vector<1x128xf32>
    %100 = vector.broadcast %cst_29 : f32 to vector<1x128xf32>
    %101 = arith.select %97, %99, %100 : vector<1x128xi1>, vector<1x128xf32>
    %102 = arith.addf %95, %101 : vector<1x128xf32>
    %c0_30 = arith.constant 0 : index
    %c0_31 = arith.constant 0 : index
    %c0_32 = arith.constant 0 : index
    %103 = vector.load %arg9[%c0_30, %c0_31, %c0_32] : memref<1x1x128xf32, #tpu.memory_space<vmem>>, vector<1x1x128xf32>
    %104 = vector.shape_cast %103 : vector<1x1x128xf32> to vector<1x128xf32>
    %105 = vector.shape_cast %102 : vector<1x128xf32> to vector<1x1x128xf32>
    tpu.vector_store %arg9[%c0_30, %c0_31, %c0_32], %105 {strides = array<i32>} : memref<1x1x128xf32, #tpu.memory_space<vmem>>, vector<1x1x128xf32>,
    %c0_33 = arith.constant 0 : index
    %c0_34 = arith.constant 0 : index
    %c0_35 = arith.constant 0 : index
    %106 = vector.load %arg4[%c0_33, %c0_34, %c0_35] : memref<1x1x256xf32, #tpu.memory_space<vmem>>, vector<1x1x256xf32>
    %107 = vector.shape_cast %106 : vector<1x1x256xf32> to vector<1x256xf32>
    %cst_36 = arith.constant dense<0.000000e+00> : vector<1x128xf32>
    %108 = tpu.matmul %107, %19, %cst_36 {dimension_numbers = #tpu.dot_dimension_numbers<[1], [0], [0], [1], [0, 0, 1, 1], [], []>} : vector<1x256xf32>, vector<256x128xf32>, vector<1x128xf32> -> vector<1x128xf32>
    %109 = arith.mulf %108, %108 : vector<1x128xf32>
    %cst_37 = arith.constant dense<0.000000e+00> : vector<1xf32>
    %110 = vector.multi_reduction <add>, %109, %cst_37 [1] : vector<1x128xf32> to vector<1xf32>
    %111 = vector.shape_cast %110 : vector<1xf32> to vector<1x1xf32>
    %cst_38 = arith.constant 1.000000e-24 : f32
    %112 = vector.broadcast %cst_38 : f32 to vector<1x1xf32>
    %113 = arith.maximumf %111, %112 : vector<1x1xf32>
    %114 = math.rsqrt %113 : vector<1x1xf32>
    %115 = vector.broadcast %114 : vector<1x1xf32> to vector<1x128xf32>
    %116 = arith.mulf %108, %115 : vector<1x128xf32>
    %c0_39 = arith.constant 0 : index
    %c0_40 = arith.constant 0 : index
    %117 = vector.load %arg6[%c0_39, %c0_40] : memref<128x128xbf16, #tpu.memory_space<vmem>>, vector<128x128xbf16>
    %118 = arith.truncf %19 : vector<256x128xf32> to vector<256x128xbf16>
    %cst_41 = arith.constant dense<0.000000e+00> : vector<256x128xf32>
    %119 = tpu.matmul %118, %117, %cst_41 {dimension_numbers = #tpu.dot_dimension_numbers<[1], [0], [0], [1], [0, 0, 1, 1], [], []>} : vector<256x128xbf16>, vector<128x128xbf16>, vector<256x128xf32> -> vector<256x128xf32>
    %cst_42 = arith.constant 5.000000e+00 : f32
    %120 = vector.broadcast %cst_42 : f32 to vector<256x128xf32>
    %121 = arith.mulf %119, %120 : vector<256x128xf32>
    %c0_43 = arith.constant 0 : index
    %c0_44 = arith.constant 0 : index
    %c0_45 = arith.constant 0 : index
    %122 = vector.load %arg7[%c0_43, %c0_44, %c0_45] : memref<1x256x128xf32, #tpu.memory_space<vmem>>, vector<1x256x128xf32>
    %123 = vector.shape_cast %122 : vector<1x256x128xf32> to vector<256x128xf32>
    %124 = vector.shape_cast %121 : vector<256x128xf32> to vector<1x256x128xf32>
    tpu.vector_store %arg7[%c0_43, %c0_44, %c0_45], %124 {strides = array<i32>} : memref<1x256x128xf32, #tpu.memory_space<vmem>>, vector<1x256x128xf32>,
    %125 = arith.truncf %116 : vector<1x128xf32> to vector<1x128xbf16>
    %cst_46 = arith.constant dense<0.000000e+00> : vector<1x128xf32>
    %126 = tpu.matmul %125, %117, %cst_46 {dimension_numbers = #tpu.dot_dimension_numbers<[1], [0], [0], [1], [0, 0, 1, 1], [], []>} : vector<1x128xbf16>, vector<128x128xbf16>, vector<1x128xf32> -> vector<1x128xf32>
    %cst_47 = arith.constant 5.000000e+00 : f32
    %127 = vector.broadcast %cst_47 : f32 to vector<1x128xf32>
    %128 = arith.mulf %126, %127 : vector<1x128xf32>
    %c0_48 = arith.constant 0 : index
    %c0_49 = arith.constant 0 : index
    %c0_50 = arith.constant 0 : index
    %129 = vector.load %arg8[%c0_48, %c0_49, %c0_50] : memref<1x1x128xf32, #tpu.memory_space<vmem>>, vector<1x1x128xf32>
    %130 = vector.shape_cast %129 : vector<1x1x128xf32> to vector<1x128xf32>
    %131 = vector.shape_cast %128 : vector<1x128xf32> to vector<1x1x128xf32>
    tpu.vector_store %arg8[%c0_48, %c0_49, %c0_50], %131 {strides = array<i32>} : memref<1x1x128xf32, #tpu.memory_space<vmem>>, vector<1x1x128xf32>,
    return
  }
  func.func @transform_0(%arg0: i32) -> (i32, i32, i32) {
    %c0_i32 = arith.constant 0 : i32
    %c0_i32_0 = arith.constant 0 : i32
    %c0_i32_1 = arith.constant 0 : i32
    return %arg0, %c0_i32, %c0_i32_0 : i32, i32, i32
  }
  func.func @transform_1(%arg0: i32) -> (i32, i32) {
    %c0_i32 = arith.constant 0 : i32
    %c0_i32_0 = arith.constant 0 : i32
    %c0_i32_1 = arith.constant 0 : i32
    return %c0_i32, %c0_i32_0 : i32, i32
  }
  func.func @transform_2(%arg0: i32) -> (i32, i32) {
    %c0_i32 = arith.constant 0 : i32
    %c0_i32_0 = arith.constant 0 : i32
    %c0_i32_1 = arith.constant 0 : i32
    return %c0_i32, %c0_i32_0 : i32, i32
  }
  func.func @transform_3(%arg0: i32) -> (i32, i32, i32) {
    %c0_i32 = arith.constant 0 : i32
    %c0_i32_0 = arith.constant 0 : i32
    %c0_i32_1 = arith.constant 0 : i32
    return %arg0, %c0_i32, %c0_i32_0 : i32, i32, i32
  }
  func.func @transform_4(%arg0: i32) -> (i32, i32, i32) {
    %c0_i32 = arith.constant 0 : i32
    %c0_i32_0 = arith.constant 0 : i32
    %c0_i32_1 = arith.constant 0 : i32
    return %arg0, %c0_i32, %c0_i32_0 : i32, i32, i32
  }
  func.func @transform_5(%arg0: i32) -> (i32, i32) {
    %c0_i32 = arith.constant 0 : i32
    %c0_i32_0 = arith.constant 0 : i32
    %c0_i32_1 = arith.constant 0 : i32
    return %c0_i32, %c0_i32_0 : i32, i32
  }
  func.func @transform_6(%arg0: i32) -> (i32, i32, i32) {
    %c0_i32 = arith.constant 0 : i32
    %c0_i32_0 = arith.constant 0 : i32
    %c0_i32_1 = arith.constant 0 : i32
    return %arg0, %c0_i32, %c0_i32_0 : i32, i32, i32
  }
  func.func @transform_7(%arg0: i32) -> (i32, i32, i32) {
    %c0_i32 = arith.constant 0 : i32
    %c0_i32_0 = arith.constant 0 : i32
    %c0_i32_1 = arith.constant 0 : i32
    return %arg0, %c0_i32, %c0_i32_0 : i32, i32, i32
  }
  func.func @transform_8(%arg0: i32) -> (i32, i32, i32) {
    %c0_i32 = arith.constant 0 : i32
    %c0_i32_0 = arith.constant 0 : i32
    %c0_i32_1 = arith.constant 0 : i32
    return %arg0, %c0_i32, %c0_i32_0 : i32, i32, i32
  }
}

</mosaic_0001>

<llo_original>
// kernel: _forward_core.2
$region0: #{_forward_core.2}
  #allocation0 [shape = 'u32[]', space=smem, size = 0x4, offset = 0x4, fixed_abs, tag = 'smem constant byte address 0x4 - core index']
  #allocation1 [shape = 'u32[144,128]{1,0:T(1,128)}', space=vmem, size = 0x12000, scoped, tag = 'internal scratch']
  #allocation2 [shape = 'f32[8,128]{1,0:T(8,128)}', space=vmem, size = 0x1000, scoped, tag = 'scratch operand']
  #allocation3 [shape = 's32[1]{0:T(128)S(6)}', space=smem, size = 0x200, scoped, tag = 'scoped memory for _forward_core.2']
  %s0 = inlined_call_operand.vmem [shape: f32[64,128], index: 0, kind: input, shape index: {}, may-alias: {0,7}]
  %s1 = inlined_call_operand.<no memory space> [shape: s32[1], index: 1, kind: input, shape index: {}]
  %s2 = inlined_call_operand.vmem [shape: f32[2,256,8], index: 2, kind: input, shape index: {}]
  %s3 = inlined_call_operand.vmem [shape: f32[8,128], index: 3, kind: input, shape index: {}]
  %s4 = inlined_call_operand.vmem [shape: f32[1,128], index: 4, kind: input, shape index: {}]
  %s5 = inlined_call_operand.vmem [shape: f32[2,1,256], index: 5, kind: input, shape index: {}]
  %s6 = inlined_call_operand.vmem [shape: f32[2,2], index: 6, kind: input, shape index: {}]
  %s7 = inlined_call_operand.vmem [shape: f32[64,128], index: 7, kind: output, shape index: {0}, may-alias: {0,7}]
  %s8 = inlined_call_operand.vmem [shape: bf16[128,128], index: 8, kind: output, shape index: {1}]
  %9 = xla_tuple %s7, %s8
  %s10 = sld [smem:[#allocation0]]
  $region73: #{_forward_core.2} parent=0
    _
  %s12 = ssub.s32 1, %s10
  %s13 = scalar_select 0, %s12, %s10
  %14 = sst [smem:[#allocation3]] %s1
  loop: start=0, step=1, limit=4
  $region2: #{_forward_core.2} parent=0 // loop_pre_header
    _
  $region3: #{_forward_core.2} parent=0 // loop_header
    %s16 = sphi 0, %s20
    %p17 = scmp.ge.s32.totalorder %s16, 4
    %s24 = sphi 0, %s24
    %s26 = sphi 0, %s24
    %s27 = sphi 0, %s26
    %s41 = sphi 0, %s27
    %s45 = sphi 0, %s45
    %s47 = sphi 0, %s45
    %s48 = sphi 0, %s47
    %s62 = sphi 0, %s48
    %s68 = sphi 0, %s70
    %s71 = sphi 0, %s68
    %s72 = sphi 0, %s71
    %s88 = sphi 0, %s72
    %s92 = sphi 0, %s92
    %s94 = sphi 0, %s92
    %s95 = sphi 0, %s94
    %s109 = sphi 0, %s95
    %s113 = sphi 0, %s113
    %s115 = sphi 0, %s113
    %s116 = sphi 0, %s115
    %s130 = sphi 0, %s116
    %s136 = sphi 0, %s138
    %s139 = sphi 0, %s136
    %s140 = sphi 0, %s139
    %s156 = sphi 0, %s140
    %s160 = sphi 0, %s160
    %s162 = sphi 0, %s160
    %s163 = sphi 0, %s162
    %s177 = sphi 0, %s163
    %s181 = sphi 0, %s181
    %s183 = sphi 0, %s181
    %s184 = sphi 0, %s183
    %s198 = sphi 0, %s184
    %s202 = sphi 0, %s202
    %s204 = sphi 0, %s202
    %s205 = sphi 0, %s204
    %s219 = sphi 0, %s205
  $region4: #{_forward_core.2} parent=0 // loop_header_branch
    %19 = sbr.rel (%p17) target = $region8
  $region5: #{_forward_core.2} parent=0 // loop_body
    %s21 = ssub.s32 %s16, 1
    %s22 = ssub.s32 %s16, 2
    %s23 = sadd.s32 %s16, 1
    %s25 = sadd.s32 %s24, 1
    %p28 = scmp.eq.s32.totalorder %s16, 1
    %p29 = scmp.ne.s32.totalorder %s24, %s26
    %p30 = scmp.eq.s32.totalorder %s16, 0
    %p31 = por %p29, %p30
    %p32 = scmp.ne.s32.totalorder %s24, %s26
    %p33 = scmp.eq.s32.totalorder %s21, 1
    %p34 = por %p32, %p33
    %p35 = scmp.ne.s32.totalorder %s26, %s27
    %p36 = scmp.eq.s32.totalorder %s21, 0
    %p37 = por %p35, %p36
    %p38 = scmp.ne.s32.totalorder %s26, %s27
    %p39 = scmp.eq.s32.totalorder %s22, 1
    %p40 = por %p38, %p39
    %p42 = scmp.ne.s32.totalorder %s27, %s41
    %p43 = scmp.eq.s32.totalorder %s22, 0
    %p44 = por %p42, %p43
    %s46 = sadd.s32 %s45, 1
    %p49 = scmp.eq.s32.totalorder %s16, 1
    %p50 = scmp.ne.s32.totalorder %s45, %s47
    %p51 = scmp.eq.s32.totalorder %s16, 0
    %p52 = por %p50, %p51
    %p53 = scmp.ne.s32.totalorder %s45, %s47
    %p54 = scmp.eq.s32.totalorder %s21, 1
    %p55 = por %p53, %p54
    %p56 = scmp.ne.s32.totalorder %s47, %s48
    %p57 = scmp.eq.s32.totalorder %s21, 0
    %p58 = por %p56, %p57
    %p59 = scmp.ne.s32.totalorder %s47, %s48
    %p60 = scmp.eq.s32.totalorder %s22, 1
    %p61 = por %p59, %p60
    %p63 = scmp.ne.s32.totalorder %s48, %s62
    %p64 = scmp.eq.s32.totalorder %s22, 0
    %p65 = por %p63, %p64
    %s66 = ssub.s32 %s16, %s23
    %p67 = scmp.eq.s32.totalorder %s66, 0
    %s69 = sadd.s32 %s68, 1
    %s70 = scalar_select %p67, %s68, %s69
    %p73 = pneg %p67
    %p74 = scmp.eq.s32.totalorder %s16, 1
    %p75 = por %p73, %p74
    %p76 = scmp.ne.s32.totalorder %s68, %s71
    %p77 = scmp.eq.s32.totalorder %s16, 0
    %p78 = por %p76, %p77
    %p79 = scmp.ne.s32.totalorder %s68, %s71
    %p80 = scmp.eq.s32.totalorder %s21, 1
    %p81 = por %p79, %p80
    %p82 = scmp.ne.s32.totalorder %s71, %s72
    %p83 = scmp.eq.s32.totalorder %s21, 0
    %p84 = por %p82, %p83
    %p85 = scmp.ne.s32.totalorder %s71, %s72
    %p86 = scmp.eq.s32.totalorder %s22, 1
    %p87 = por %p85, %p86
    %p89 = scmp.ne.s32.totalorder %s72, %s88
    %p90 = scmp.eq.s32.totalorder %s22, 0
    %p91 = por %p89, %p90
    %s93 = sadd.s32 %s92, 1
    %p96 = scmp.eq.s32.totalorder %s16, 1
    %p97 = scmp.ne.s32.totalorder %s92, %s94
    %p98 = scmp.eq.s32.totalorder %s16, 0
    %p99 = por %p97, %p98
    %p100 = scmp.ne.s32.totalorder %s92, %s94
    %p101 = scmp.eq.s32.totalorder %s21, 1
    %p102 = por %p100, %p101
    %p103 = scmp.ne.s32.totalorder %s94, %s95
    %p104 = scmp.eq.s32.totalorder %s21, 0
    %p105 = por %p103, %p104
    %p106 = scmp.ne.s32.totalorder %s94, %s95
    %p107 = scmp.eq.s32.totalorder %s22, 1
    %p108 = por %p106, %p107
    %p110 = scmp.ne.s32.totalorder %s95, %s109
    %p111 = scmp.eq.s32.totalorder %s22, 0
    %p112 = por %p110, %p111
    %s114 = sadd.s32 %s113, 1
    %p117 = scmp.eq.s32.totalorder %s16, 1
    %p118 = scmp.ne.s32.totalorder %s113, %s115
    %p119 = scmp.eq.s32.totalorder %s16, 0
    %p120 = por %p118, %p119
    %p121 = scmp.ne.s32.totalorder %s113, %s115
    %p122 = scmp.eq.s32.totalorder %s21, 1
    %p123 = por %p121, %p122
    %p124 = scmp.ne.s32.totalorder %s115, %s116
    %p125 = scmp.eq.s32.totalorder %s21, 0
    %p126 = por %p124, %p125
    %p127 = scmp.ne.s32.totalorder %s115, %s116
    %p128 = scmp.eq.s32.totalorder %s22, 1
    %p129 = por %p127, %p128
    %p131 = scmp.ne.s32.totalorder %s116, %s130
    %p132 = scmp.eq.s32.totalorder %s22, 0
    %p133 = por %p131, %p132
    %s134 = ssub.s32 %s16, %s23
    %p135 = scmp.eq.s32.totalorder %s134, 0
    %s137 = sadd.s32 %s136, 1
    %s138 = scalar_select %p135, %s136, %s137
    %p141 = pneg %p135
    %p142 = scmp.eq.s32.totalorder %s16, 1
    %p143 = por %p141, %p142
    %p144 = scmp.ne.s32.totalorder %s136, %s139
    %p145 = scmp.eq.s32.totalorder %s16, 0
    %p146 = por %p144, %p145
    %p147 = scmp.ne.s32.totalorder %s136, %s139
    %p148 = scmp.eq.s32.totalorder %s21, 1
    %p149 = por %p147, %p148
    %p150 = scmp.ne.s32.totalorder %s139, %s140
    %p151 = scmp.eq.s32.totalorder %s21, 0
    %p152 = por %p150, %p151
    %p153 = scmp.ne.s32.totalorder %s139, %s140
    %p154 = scmp.eq.s32.totalorder %s22, 1
    %p155 = por %p153, %p154
    %p157 = scmp.ne.s32.totalorder %s140, %s156
    %p158 = scmp.eq.s32.totalorder %s22, 0
    %p159 = por %p157, %p158
    %s161 = sadd.s32 %s160, 1
    %p164 = scmp.eq.s32.totalorder %s16, 1
    %p165 = scmp.ne.s32.totalorder %s160, %s162
    %p166 = scmp.eq.s32.totalorder %s16, 0
    %p167 = por %p165, %p166
    %p168 = scmp.ne.s32.totalorder %s160, %s162
    %p169 = scmp.eq.s32.totalorder %s21, 1
    %p170 = por %p168, %p169
    %p171 = scmp.ne.s32.totalorder %s162, %s163
    %p172 = scmp.eq.s32.totalorder %s21, 0
    %p173 = por %p171, %p172
    %p174 = scmp.ne.s32.totalorder %s162, %s163
    %p175 = scmp.eq.s32.totalorder %s22, 1
    %p176 = por %p174, %p175
    %p178 = scmp.ne.s32.totalorder %s163, %s177
    %p179 = scmp.eq.s32.totalorder %s22, 0
    %p180 = por %p178, %p179
    %s182 = sadd.s32 %s181, 1
    %p185 = scmp.eq.s32.totalorder %s16, 1
    %p186 = scmp.ne.s32.totalorder %s181, %s183
    %p187 = scmp.eq.s32.totalorder %s16, 0
    %p188 = por %p186, %p187
    %p189 = scmp.ne.s32.totalorder %s181, %s183
    %p190 = scmp.eq.s32.totalorder %s21, 1
    %p191 = por %p189, %p190
    %p192 = scmp.ne.s32.totalorder %s183, %s184
    %p193 = scmp.eq.s32.totalorder %s21, 0
    %p194 = por %p192, %p193
    %p195 = scmp.ne.s32.totalorder %s183, %s184
    %p196 = scmp.eq.s32.totalorder %s22, 1
    %p197 = por %p195, %p196
    %p199 = scmp.ne.s32.totalorder %s184, %s198
    %p200 = scmp.eq.s32.totalorder %s22, 0
    %p201 = por %p199, %p200
    %s203 = sadd.s32 %s202, 1
    %p206 = scmp.eq.s32.totalorder %s16, 1
    %p207 = scmp.ne.s32.totalorder %s202, %s204
    %p208 = scmp.eq.s32.totalorder %s16, 0
    %p209 = por %p207, %p208
    %p210 = scmp.ne.s32.totalorder %s202, %s204
    %p211 = scmp.eq.s32.totalorder %s21, 1
    %p212 = por %p210, %p211
    %p213 = scmp.ne.s32.totalorder %s204, %s205
    %p214 = scmp.eq.s32.totalorder %s21, 0
    %p215 = por %p213, %p214
    %p216 = scmp.ne.s32.totalorder %s204, %s205
    %p217 = scmp.eq.s32.totalorder %s22, 1
    %p218 = por %p216, %p217
    %p220 = scmp.ne.s32.totalorder %s205, %s219
    %p221 = scmp.eq.s32.totalorder %s22, 0
    %p222 = por %p220, %p221
    %p223 = scmp.le.s32.totalorder 1, %s16
    %p224 = scmp.lt.s32.totalorder %s16, 3
    %p225 = pnand %p223, %p224
    %p226 = pneg %p225
    // Predicated region
    $region9: #{_forward_core.2} parent=5 // pred_check
      _
    $region10: #{_forward_core.2} parent=5 // pred_check_branch
      %228 = sbr.rel (%p225) target = $region12
    $region11: #{_forward_core.2} parent=5 // pred_region
      %s229 = ssub.s32 %s16, 1
      // Predicated region
      $region13: #{_forward_core.2} parent=11 // pred_check
        %p230 = pneg %p37
      $region14: #{_forward_core.2} parent=11 // pred_check_branch
        %232 = sbr.rel (%p230) target = $region16
      $region15: #{_forward_core.2} parent=11 // pred_region
        _
      $region16: #{_forward_core.2} parent=11 // pred_fallthru
        _
      // Predicated region
      $region17: #{_forward_core.2} parent=11 // pred_check
        %p233 = pneg %p58
      $region18: #{_forward_core.2} parent=11 // pred_check_branch
        %235 = sbr.rel (%p233) target = $region20
      $region19: #{_forward_core.2} parent=11 // pred_region
        _
      $region20: #{_forward_core.2} parent=11 // pred_fallthru
        _
      // Predicated region
      $region21: #{_forward_core.2} parent=11 // pred_check
        %p236 = pneg %p105
      $region22: #{_forward_core.2} parent=11 // pred_check_branch
        %238 = sbr.rel (%p236) target = $region24
      $region23: #{_forward_core.2} parent=11 // pred_region
        _
      $region24: #{_forward_core.2} parent=11 // pred_fallthru
        _
      // Predicated region
      $region25: #{_forward_core.2} parent=11 // pred_check
        %p239 = pneg %p126
      $region26: #{_forward_core.2} parent=11 // pred_check_branch
        %241 = sbr.rel (%p239) target = $region28
      $region27: #{_forward_core.2} parent=11 // pred_region
        _
      $region28: #{_forward_core.2} parent=11 // pred_fallthru
        _
      // Predicated region
      $region29: #{_forward_core.2} parent=11 // pred_check
        %p242 = pneg %p173
      $region30: #{_forward_core.2} parent=11 // pred_check_branch
        %244 = sbr.rel (%p242) target = $region32
      $region31: #{_forward_core.2} parent=11 // pred_region
        _
      $region32: #{_forward_core.2} parent=11 // pred_fallthru
        _
    $region12: #{_forward_core.2} parent=5 // pred_fallthru
      _
    %p245 = scmp.lt.s32.totalorder %s16, 2
    // Predicated region
    $region33: #{_forward_core.2} parent=5 // pred_check
      %p246 = pneg %p245
    $region34: #{_forward_core.2} parent=5 // pred_check_branch
      %248 = sbr.rel (%p246) target = $region36
    $region35: #{_forward_core.2} parent=5 // pred_region
      // Predicated region
      $region37: #{_forward_core.2} parent=35 // pred_check
        %p249 = pneg %p78
      $region38: #{_forward_core.2} parent=35 // pred_check_branch
        %251 = sbr.rel (%p249) target = $region40
      $region39: #{_forward_core.2} parent=35 // pred_region
        %p252 = scmp.lt.s32.totalorder %s16, 1
        %s253 = scalar_select %p252, %s16, 1
        %s254 = smul.addr %s253, 32
        %s255 = smul.addr %s254, 8
        %s256 = scalar_lea.vmem %s2, %s255
      $region40: #{_forward_core.2} parent=35 // pred_fallthru
        _
      // Predicated region
      $region41: #{_forward_core.2} parent=35 // pred_check
        %p257 = pneg %p146
      $region42: #{_forward_core.2} parent=35 // pred_check_branch
        %259 = sbr.rel (%p257) target = $region44
      $region43: #{_forward_core.2} parent=35 // pred_region
        %p260 = scmp.lt.s32.totalorder %s16, 1
        %s261 = scalar_select %p260, %s16, 1
        %s262 = smul.addr %s261, 2
        %s263 = scalar_lea.vmem %s5, %s262
      $region44: #{_forward_core.2} parent=35 // pred_fallthru
        _
    $region36: #{_forward_core.2} parent=5 // pred_fallthru
      _
    %p264 = scmp.le.s32.totalorder 1, %s16
    %p265 = scmp.lt.s32.totalorder %s16, 3
    %p266 = pnand %p264, %p265
    %p267 = pneg %p266
    // Predicated region
    $region45: #{_forward_core.2} parent=5 // pred_check
      _
    $region46: #{_forward_core.2} parent=5 // pred_check_branch
      %269 = sbr.rel (%p266) target = $region48
    $region47: #{_forward_core.2} parent=5 // pred_region
      %s270 = ssub.s32 %s16, 1
      %p271 = pneg %p37
      %p272 = pneg %p34
      %p273 = pneg %p58
      %p274 = pneg %p55
      %p275 = scmp.lt.s32.totalorder %s21, 1
      %s276 = scalar_select %p275, %s21, 1
      %s277 = smul.addr %s276, 32
      %s278 = smul.addr %s277, 8
      %s279 = scalar_lea.vmem %s2, %s278
      %p280 = pneg %p84
      %p281 = pneg %p81
      %p282 = pneg %p105
      %p283 = pneg %p102
      %p284 = pneg %p126
      %p285 = pneg %p123
      %p286 = scmp.lt.s32.totalorder %s21, 1
      %s287 = scalar_select %p286, %s21, 1
      %s288 = smul.addr %s287, 2
      %s289 = scalar_lea.vmem %s5, %s288
      %p290 = pneg %p152
      %p291 = pneg %p149
      %p292 = pneg %p173
      %p293 = pneg %p170
      %p294 = pneg %p194
      %p295 = pneg %p191
      %p296 = pneg %p215
      %p297 = pneg %p212
      %p298 = scmp.lt.s32.totalorder %s21, 1
      %s299 = scalar_select %p298, %s21, 1
      %s300 = smul.addr %s299, 32
      %s301 = smul.addr %s300, 8
      %s302 = scalar_lea.vmem %s2, %s301
      %p303 = scmp.lt.s32.totalorder %s21, 1
      %s304 = scalar_select %p303, %s21, 1
      %s305 = smul.addr %s304, 2
      %s306 = scalar_lea.vmem %s5, %s305
      %v307 = vld [vmem:[%s302] sm:$0xff]
      %v308 = vld [vmem:[%s302 + $0x8] sm:$0xff]
      %v309 = vld [vmem:[%s302 + $0x10] sm:$0xff]
      %v310 = vld [vmem:[%s302 + $0x18] sm:$0xff]
      %v311 = vld [vmem:[%s302 + $0x20] sm:$0xff]
      %v312 = vld [vmem:[%s302 + $0x28] sm:$0xff]
      %v313 = vld [vmem:[%s302 + $0x30] sm:$0xff]
      %v314 = vld [vmem:[%s302 + $0x38] sm:$0xff]
      %v315 = vld [vmem:[%s302 + $0x40] sm:$0xff]
      %v316 = vld [vmem:[%s302 + $0x48] sm:$0xff]
      %v317 = vld [vmem:[%s302 + $0x50] sm:$0xff]
      %v318 = vld [vmem:[%s302 + $0x58] sm:$0xff]
      %v319 = vld [vmem:[%s302 + $0x60] sm:$0xff]
      %v320 = vld [vmem:[%s302 + $0x68] sm:$0xff]
      %v321 = vld [vmem:[%s302 + $0x70] sm:$0xff]
      %v322 = vld [vmem:[%s302 + $0x78] sm:$0xff]
      %v323 = vld [vmem:[%s302 + $0x80] sm:$0xff]
      %v324 = vld [vmem:[%s302 + $0x88] sm:$0xff]
      %v325 = vld [vmem:[%s302 + $0x90] sm:$0xff]
      %v326 = vld [vmem:[%s302 + $0x98] sm:$0xff]
      %v327 = vld [vmem:[%s302 + $0xa0] sm:$0xff]
      %v328 = vld [vmem:[%s302 + $0xa8] sm:$0xff]
      %v329 = vld [vmem:[%s302 + $0xb0] sm:$0xff]
      %v330 = vld [vmem:[%s302 + $0xb8] sm:$0xff]
      %v331 = vld [vmem:[%s302 + $0xc0] sm:$0xff]
      %v332 = vld [vmem:[%s302 + $0xc8] sm:$0xff]
      %v333 = vld [vmem:[%s302 + $0xd0] sm:$0xff]
      %v334 = vld [vmem:[%s302 + $0xd8] sm:$0xff]
      %v335 = vld [vmem:[%s302 + $0xe0] sm:$0xff]
      %v336 = vld [vmem:[%s302 + $0xe8] sm:$0xff]
      %v337 = vld [vmem:[%s302 + $0xf0] sm:$0xff]
      %v338 = vld [vmem:[%s302 + $0xf8] sm:$0xff]
      %v339 = vld [vmem:[%s3] sm:$0xff]
      %v340 = vld [vmem:[%s4] sm:$0x1]
      %v342 = vlaneseq
      %v343 = vshrl.u32 %v342, 7
      %v344 = vsub.s32 0, %v343
      %v345 = vrot.slane %v340, %v344
      %vm347 = vcmask 64512
      %v349 = vsel %vm347, %v307, 0
      %v352 = vsel %vm347, %v308, 0
      %v355 = vsel %vm347, %v309, 0
      %v358 = vsel %vm347, %v310, 0
      %v361 = vsel %vm347, %v311, 0
      %v364 = vsel %vm347, %v312, 0
      %v367 = vsel %vm347, %v313, 0
      %v370 = vsel %vm347, %v314, 0
      %v373 = vsel %vm347, %v315, 0
      %v376 = vsel %vm347, %v316, 0
      %v379 = vsel %vm347, %v317, 0
      %v382 = vsel %vm347, %v318, 0
      %v385 = vsel %vm347, %v319, 0
      %v388 = vsel %vm347, %v320, 0
      %v391 = vsel %vm347, %v321, 0
      %v394 = vsel %vm347, %v322, 0
      %v397 = vsel %vm347, %v323, 0
      %v400 = vsel %vm347, %v324, 0
      %v403 = vsel %vm347, %v325, 0
      %v406 = vsel %vm347, %v326, 0
      %v409 = vsel %vm347, %v327, 0
      %v412 = vsel %vm347, %v328, 0
      %v415 = vsel %vm347, %v329, 0
      %v418 = vsel %vm347, %v330, 0
      %v421 = vsel %vm347, %v331, 0
      %v424 = vsel %vm347, %v332, 0
      %v427 = vsel %vm347, %v333, 0
      %v430 = vsel %vm347, %v334, 0
      %v433 = vsel %vm347, %v335, 0
      %v436 = vsel %vm347, %v336, 0
      %v439 = vsel %vm347, %v337, 0
      %v442 = vsel %vm347, %v338, 0
      %444 = vmatprep.subr.mxu0 0.0
      %445 = vmatpush1.msra.mxu0 0.0
      %446 = vmatprep.subr.mxu0 0.0
      %447 = vmatpush1.msra.mxu0 0.0
      %448 = vmatprep.subr.mxu0 0.0
      %449 = vmatpush1.msra.mxu0 0.0
      %450 = vmatprep.subr.mxu0 0.0
      %451 = vmatpush1.msra.mxu0 0.0
      %452 = vmatprep.subr.mxu0 0.0
      %453 = vmatpush1.msra.mxu0 0.0
      %454 = vmatprep.subr.mxu0 0.0
      %455 = vmatpush1.msra.mxu0 0.0
      %456 = vmatprep.subr.mxu0 0.0
      %457 = vmatpush1.msra.mxu0 0.0
      %458 = vmatprep.subr.mxu0 0.0
      %459 = vmatpush1.msra.mxu0 0.0
      %460 = vmatprep.subr.mxu0 0.0
      %461 = vmatpush1.msra.mxu0 0.0
      %462 = vmatprep.subr.mxu0 0.0
      %463 = vmatpush1.msra.mxu0 0.0
      %464 = vmatprep.subr.mxu0 0.0
      %465 = vmatpush1.msra.mxu0 0.0
      %466 = vmatprep.subr.mxu0 0.0
      %467 = vmatpush1.msra.mxu0 0.0
      %468 = vmatprep.subr.mxu0 0.0
      %469 = vmatpush1.msra.mxu0 0.0
      %470 = vmatprep.subr.mxu0 0.0
      %471 = vmatpush1.msra.mxu0 0.0
      %472 = vmatprep.subr.mxu0 0.0
      %473 = vmatpush1.msra.mxu0 0.0
      %474 = vmatprep.subr.mxu0 0.0
      %475 = vmatpush1.msra.mxu0 %v339
      %476 = vmatprep.subr.mxu0 0.0
      %477 = vmatpush2.msra.mxu0 0.0
      %478 = vmatprep.subr.mxu0 0.0
      %479 = vmatpush2.msra.mxu0 0.0
      %480 = vmatprep.subr.mxu0 0.0
      %481 = vmatpush2.msra.mxu0 0.0
      %482 = vmatprep.subr.mxu0 0.0
      %483 = vmatpush2.msra.mxu0 0.0
      %484 = vmatprep.subr.mxu0 0.0
      %485 = vmatpush2.msra.mxu0 0.0
      %486 = vmatprep.subr.mxu0 0.0
      %487 = vmatpush2.msra.mxu0 0.0
      %488 = vmatprep.subr.mxu0 0.0
      %489 = vmatpush2.msra.mxu0 0.0
      %490 = vmatprep.subr.mxu0 0.0
      %491 = vmatpush2.msra.mxu0 0.0
      %492 = vmatprep.subr.mxu0 0.0
      %493 = vmatpush2.msra.mxu0 0.0
      %494 = vmatprep.subr.mxu0 0.0
      %495 = vmatpush2.msra.mxu0 0.0
      %496 = vmatprep.subr.mxu0 0.0
      %497 = vmatpush2.msra.mxu0 0.0
      %498 = vmatprep.subr.mxu0 0.0
      %499 = vmatpush2.msra.mxu0 0.0
      %500 = vmatprep.subr.mxu0 0.0
      %501 = vmatpush2.msra.mxu0 0.0
      %502 = vmatprep.subr.mxu0 0.0
      %503 = vmatpush2.msra.mxu0 0.0
      %504 = vmatprep.subr.mxu0 0.0
      %505 = vmatpush2.msra.mxu0 0.0
      %506 = vmatprep.subr.mxu0 0.0
      %507 = vmatpush2.msra.mxu0 0.0
      %508 = vmatprep.mubr.f32.mxu0 0.0
      %509 = vmatmul.mubr.f32.gmra.mxu0 %v349
      %v510 = vpop.f32.mrf.mxu0
      %v511 = vadd.f32 %v345, %v510
      %v512 = vpop.f32.mrf.mxu0
      %513 = vmatprep.mubr.f32.mxu0 0.0
      %514 = vmatmul.mubr.f32.gmra.mxu0 %v352
      %v515 = vpop.f32.mrf.mxu0
      %v516 = vadd.f32 %v345, %v515
      %v517 = vpop.f32.mrf.mxu0
      %518 = vmatprep.mubr.f32.mxu0 0.0
      %519 = vmatmul.mubr.f32.gmra.mxu0 %v355
      %v520 = vpop.f32.mrf.mxu0
      %v521 = vadd.f32 %v345, %v520
      %v522 = vpop.f32.mrf.mxu0
      %523 = vmatprep.mubr.f32.mxu0 0.0
      %524 = vmatmul.mubr.f32.gmra.mxu0 %v358
      %v525 = vpop.f32.mrf.mxu0
      %v526 = vadd.f32 %v345, %v525
      %v527 = vpop.f32.mrf.mxu0
      %528 = vmatprep.mubr.f32.mxu0 0.0
      %529 = vmatmul.mubr.f32.gmra.mxu0 %v361
      %v530 = vpop.f32.mrf.mxu0
      %v531 = vadd.f32 %v345, %v530
      %v532 = vpop.f32.mrf.mxu0
      %533 = vmatprep.mubr.f32.mxu0 0.0
      %534 = vmatmul.mubr.f32.gmra.mxu0 %v364
      %v535 = vpop.f32.mrf.mxu0
      %v536 = vadd.f32 %v345, %v535
      %v537 = vpop.f32.mrf.mxu0
      %538 = vmatprep.mubr.f32.mxu0 0.0
      %539 = vmatmul.mubr.f32.gmra.mxu0 %v367
      %v540 = vpop.f32.mrf.mxu0
      %v541 = vadd.f32 %v345, %v540
      %v542 = vpop.f32.mrf.mxu0
      %543 = vmatprep.mubr.f32.mxu0 0.0
      %544 = vmatmul.mubr.f32.gmra.mxu0 %v370
      %v545 = vpop.f32.mrf.mxu0
      %v546 = vadd.f32 %v345, %v545
      %v547 = vpop.f32.mrf.mxu0
      %548 = vmatprep.mubr.f32.mxu0 0.0
      %549 = vmatmul.mubr.f32.gmra.mxu0 %v373
      %v550 = vpop.f32.mrf.mxu0
      %v551 = vadd.f32 %v345, %v550
      %v552 = vpop.f32.mrf.mxu0
      %553 = vmatprep.mubr.f32.mxu0 0.0
      %554 = vmatmul.mubr.f32.gmra.mxu0 %v376
      %v555 = vpop.f32.mrf.mxu0
      %v556 = vadd.f32 %v345, %v555
      %v557 = vpop.f32.mrf.mxu0
      %558 = vmatprep.mubr.f32.mxu0 0.0
      %559 = vmatmul.mubr.f32.gmra.mxu0 %v379
      %v560 = vpop.f32.mrf.mxu0
      %v561 = vadd.f32 %v345, %v560
      %v562 = vpop.f32.mrf.mxu0
      %563 = vmatprep.mubr.f32.mxu0 0.0
      %564 = vmatmul.mubr.f32.gmra.mxu0 %v382
      %v565 = vpop.f32.mrf.mxu0
      %v566 = vadd.f32 %v345, %v565
      %v567 = vpop.f32.mrf.mxu0
      %568 = vmatprep.mubr.f32.mxu0 0.0
      %569 = vmatmul.mubr.f32.gmra.mxu0 %v385
      %v570 = vpop.f32.mrf.mxu0
      %v571 = vadd.f32 %v345, %v570
      %v572 = vpop.f32.mrf.mxu0
      %573 = vmatprep.mubr.f32.mxu0 0.0
      %574 = vmatmul.mubr.f32.gmra.mxu0 %v388
      %v575 = vpop.f32.mrf.mxu0
      %v576 = vadd.f32 %v345, %v575
      %v577 = vpop.f32.mrf.mxu0
      %578 = vmatprep.mubr.f32.mxu0 0.0
      %579 = vmatmul.mubr.f32.gmra.mxu0 %v391
      %v580 = vpop.f32.mrf.mxu0
      %v581 = vadd.f32 %v345, %v580
      %v582 = vpop.f32.mrf.mxu0
      %583 = vmatprep.mubr.f32.mxu0 0.0
      %584 = vmatmul.mubr.f32.gmra.mxu0 %v394
      %v585 = vpop.f32.mrf.mxu0
      %v586 = vadd.f32 %v345, %v585
      %v587 = vpop.f32.mrf.mxu0
      %588 = vmatprep.mubr.f32.mxu0 0.0
      %589 = vmatmul.mubr.f32.gmra.mxu0 %v397
      %v590 = vpop.f32.mrf.mxu0
      %v591 = vadd.f32 %v345, %v590
      %v592 = vpop.f32.mrf.mxu0
      %593 = vmatprep.mubr.f32.mxu0 0.0
      %594 = vmatmul.mubr.f32.gmra.mxu0 %v400
      %v595 = vpop.f32.mrf.mxu0
      %v596 = vadd.f32 %v345, %v595
      %v597 = vpop.f32.mrf.mxu0
      %598 = vmatprep.mubr.f32.mxu0 0.0
      %599 = vmatmul.mubr.f32.gmra.mxu0 %v403
      %v600 = vpop.f32.mrf.mxu0
      %v601 = vadd.f32 %v345, %v600
      %v602 = vpop.f32.mrf.mxu0
      %603 = vmatprep.mubr.f32.mxu0 0.0
      %604 = vmatmul.mubr.f32.gmra.mxu0 %v406
      %v605 = vpop.f32.mrf.mxu0
      %v606 = vadd.f32 %v345, %v605
      %v607 = vpop.f32.mrf.mxu0
      %608 = vmatprep.mubr.f32.mxu0 0.0
      %609 = vmatmul.mubr.f32.gmra.mxu0 %v409
      %v610 = vpop.f32.mrf.mxu0
      %v611 = vadd.f32 %v345, %v610
      %v612 = vpop.f32.mrf.mxu0
      %613 = vmatprep.mubr.f32.mxu0 0.0
      %614 = vmatmul.mubr.f32.gmra.mxu0 %v412
      %v615 = vpop.f32.mrf.mxu0
      %v616 = vadd.f32 %v345, %v615
      %v617 = vpop.f32.mrf.mxu0
      %618 = vmatprep.mubr.f32.mxu0 0.0
      %619 = vmatmul.mubr.f32.gmra.mxu0 %v415
      %v620 = vpop.f32.mrf.mxu0
      %v621 = vadd.f32 %v345, %v620
      %v622 = vpop.f32.mrf.mxu0
      %623 = vmatprep.mubr.f32.mxu0 0.0
      %624 = vmatmul.mubr.f32.gmra.mxu0 %v418
      %v625 = vpop.f32.mrf.mxu0
      %v626 = vadd.f32 %v345, %v625
      %v627 = vpop.f32.mrf.mxu0
      %628 = vmatprep.mubr.f32.mxu0 0.0
      %629 = vmatmul.mubr.f32.gmra.mxu0 %v421
      %v630 = vpop.f32.mrf.mxu0
      %v631 = vadd.f32 %v345, %v630
      %v632 = vpop.f32.mrf.mxu0
      %633 = vmatprep.mubr.f32.mxu0 0.0
      %634 = vmatmul.mubr.f32.gmra.mxu0 %v424
      %v635 = vpop.f32.mrf.mxu0
      %v636 = vadd.f32 %v345, %v635
      %v637 = vpop.f32.mrf.mxu0
      %638 = vmatprep.mubr.f32.mxu0 0.0
      %639 = vmatmul.mubr.f32.gmra.mxu0 %v427
      %v640 = vpop.f32.mrf.mxu0
      %v641 = vadd.f32 %v345, %v640
      %v642 = vpop.f32.mrf.mxu0
      %643 = vmatprep.mubr.f32.mxu0 0.0
      %644 = vmatmul.mubr.f32.gmra.mxu0 %v430
      %v645 = vpop.f32.mrf.mxu0
      %v646 = vadd.f32 %v345, %v645
      %v647 = vpop.f32.mrf.mxu0
      %648 = vmatprep.mubr.f32.mxu0 0.0
      %649 = vmatmul.mubr.f32.gmra.mxu0 %v433
      %v650 = vpop.f32.mrf.mxu0
      %v651 = vadd.f32 %v345, %v650
      %v652 = vpop.f32.mrf.mxu0
      %653 = vmatprep.mubr.f32.mxu0 0.0
      %654 = vmatmul.mubr.f32.gmra.mxu0 %v436
      %v655 = vpop.f32.mrf.mxu0
      %v656 = vadd.f32 %v345, %v655
      %v657 = vpop.f32.mrf.mxu0
      %658 = vmatprep.mubr.f32.mxu0 0.0
      %659 = vmatmul.mubr.f32.gmra.mxu0 %v439
      %v660 = vpop.f32.mrf.mxu0
      %v661 = vadd.f32 %v345, %v660
      %v662 = vpop.f32.mrf.mxu0
      %663 = vmatprep.mubr.f32.mxu0 0.0
      %664 = vmatmul.mubr.f32.gmra.mxu0 %v442
      %v665 = vpop.f32.mrf.mxu0
      %v666 = vadd.f32 %v345, %v665
      %v667 = vpop.f32.mrf.mxu0
      %668 = vdwg.mxu0
      %v669 = vlaneseq
      %v670 = vand.u32 %v669, 127
      %vm671 = vcmp.lt.s32.totalorder %v670, 32
      %v672 = vsel %vm671, %v511, 0.0
      %v673 = vsel %vm671, %v516, 0.0
      %v674 = vsel %vm671, %v521, 0.0
      %v675 = vsel %vm671, %v526, 0.0
      %v676 = vsel %vm671, %v531, 0.0
      %v677 = vsel %vm671, %v536, 0.0
      %v678 = vsel %vm671, %v541, 0.0
      %v679 = vsel %vm671, %v546, 0.0
      %v680 = vsel %vm671, %v551, 0.0
      %v681 = vsel %vm671, %v556, 0.0
      %v682 = vsel %vm671, %v561, 0.0
      %v683 = vsel %vm671, %v566, 0.0
      %v684 = vsel %vm671, %v571, 0.0
      %v685 = vsel %vm671, %v576, 0.0
      %v686 = vsel %vm671, %v581, 0.0
      %v687 = vsel %vm671, %v586, 0.0
      %v688 = vsel %vm671, %v591, 0.0
      %v689 = vsel %vm671, %v596, 0.0
      %v690 = vsel %vm671, %v601, 0.0
      %v691 = vsel %vm671, %v606, 0.0
      %v692 = vsel %vm671, %v611, 0.0
      %v693 = vsel %vm671, %v616, 0.0
      %v694 = vsel %vm671, %v621, 0.0
      %v695 = vsel %vm671, %v626, 0.0
      %v696 = vsel %vm671, %v631, 0.0
      %v697 = vsel %vm671, %v636, 0.0
      %v698 = vsel %vm671, %v641, 0.0
      %v699 = vsel %vm671, %v646, 0.0
      %v700 = vsel %vm671, %v651, 0.0
      %v701 = vsel %vm671, %v656, 0.0
      %v702 = vsel %vm671, %v661, 0.0
      %v703 = vsel %vm671, %v666, 0.0
      %v704 = vmul.f32 %v672, %v672
      %v705 = vmul.f32 %v673, %v673
      %v706 = vmul.f32 %v674, %v674
      %v707 = vmul.f32 %v675, %v675
      %v708 = vmul.f32 %v676, %v676
      %v709 = vmul.f32 %v677, %v677
      %v710 = vmul.f32 %v678, %v678
      %v711 = vmul.f32 %v679, %v679
      %v712 = vmul.f32 %v680, %v680
      %v713 = vmul.f32 %v681, %v681
      %v714 = vmul.f32 %v682, %v682
      %v715 = vmul.f32 %v683, %v683
      %v716 = vmul.f32 %v684, %v684
      %v717 = vmul.f32 %v685, %v685
      %v718 = vmul.f32 %v686, %v686
      %v719 = vmul.f32 %v687, %v687
      %v720 = vmul.f32 %v688, %v688
      %v721 = vmul.f32 %v689, %v689
      %v722 = vmul.f32 %v690, %v690
      %v723 = vmul.f32 %v691, %v691
      %v724 = vmul.f32 %v692, %v692
      %v725 = vmul.f32 %v693, %v693
      %v726 = vmul.f32 %v694, %v694
      %v727 = vmul.f32 %v695, %v695
      %v728 = vmul.f32 %v696, %v696
      %v729 = vmul.f32 %v697, %v697
      %v730 = vmul.f32 %v698, %v698
      %v731 = vmul.f32 %v699, %v699
      %v732 = vmul.f32 %v700, %v700
      %v733 = vmul.f32 %v701, %v701
      %v734 = vmul.f32 %v702, %v702
      %v735 = vmul.f32 %v703, %v703
      %736 = vadd.xlane.f32.xlu0 %v704
      %v737 = vpop.xlane.xlu0 %736
      %738 = vadd.xlane.f32.xlu0 %v705
      %v739 = vpop.xlane.xlu0 %738
      %740 = vadd.xlane.f32.xlu0 %v706
      %v741 = vpop.xlane.xlu0 %740
      %742 = vadd.xlane.f32.xlu0 %v707
      %v743 = vpop.xlane.xlu0 %742
      %744 = vadd.xlane.f32.xlu0 %v708
      %v745 = vpop.xlane.xlu0 %744
      %746 = vadd.xlane.f32.xlu0 %v709
      %v747 = vpop.xlane.xlu0 %746
      %748 = vadd.xlane.f32.xlu0 %v710
      %v749 = vpop.xlane.xlu0 %748
      %750 = vadd.xlane.f32.xlu0 %v711
      %v751 = vpop.xlane.xlu0 %750
      %752 = vadd.xlane.f32.xlu0 %v712
      %v753 = vpop.xlane.xlu0 %752
      %754 = vadd.xlane.f32.xlu0 %v713
      %v755 = vpop.xlane.xlu0 %754
      %756 = vadd.xlane.f32.xlu0 %v714
      %v757 = vpop.xlane.xlu0 %756
      %758 = vadd.xlane.f32.xlu0 %v715
      %v759 = vpop.xlane.xlu0 %758
      %760 = vadd.xlane.f32.xlu0 %v716
      %v761 = vpop.xlane.xlu0 %760
      %762 = vadd.xlane.f32.xlu0 %v717
      %v763 = vpop.xlane.xlu0 %762
      %764 = vadd.xlane.f32.xlu0 %v718
      %v765 = vpop.xlane.xlu0 %764
      %766 = vadd.xlane.f32.xlu0 %v719
      %v767 = vpop.xlane.xlu0 %766
      %768 = vadd.xlane.f32.xlu0 %v720
      %v769 = vpop.xlane.xlu0 %768
      %770 = vadd.xlane.f32.xlu0 %v721
      %v771 = vpop.xlane.xlu0 %770
      %772 = vadd.xlane.f32.xlu0 %v722
      %v773 = vpop.xlane.xlu0 %772
      %774 = vadd.xlane.f32.xlu0 %v723
      %v775 = vpop.xlane.xlu0 %774
      %776 = vadd.xlane.f32.xlu0 %v724
      %v777 = vpop.xlane.xlu0 %776
      %778 = vadd.xlane.f32.xlu0 %v725
      %v779 = vpop.xlane.xlu0 %778
      %780 = vadd.xlane.f32.xlu0 %v726
      %v781 = vpop.xlane.xlu0 %780
      %782 = vadd.xlane.f32.xlu0 %v727
      %v783 = vpop.xlane.xlu0 %782
      %784 = vadd.xlane.f32.xlu0 %v728
      %v785 = vpop.xlane.xlu0 %784
      %786 = vadd.xlane.f32.xlu0 %v729
      %v787 = vpop.xlane.xlu0 %786
      %788 = vadd.xlane.f32.xlu0 %v730
      %v789 = vpop.xlane.xlu0 %788
      %790 = vadd.xlane.f32.xlu0 %v731
      %v791 = vpop.xlane.xlu0 %790
      %792 = vadd.xlane.f32.xlu0 %v732
      %v793 = vpop.xlane.xlu0 %792
      %794 = vadd.xlane.f32.xlu0 %v733
      %v795 = vpop.xlane.xlu0 %794
      %796 = vadd.xlane.f32.xlu0 %v734
      %v797 = vpop.xlane.xlu0 %796
      %798 = vadd.xlane.f32.xlu0 %v735
      %v799 = vpop.xlane.xlu0 %798
      %v800 = vmax.f32 %v737, 1e-24
      %v801 = vmax.f32 %v739, 1e-24
      %v802 = vmax.f32 %v741, 1e-24
      %v803 = vmax.f32 %v743, 1e-24
      %v804 = vmax.f32 %v745, 1e-24
      %v805 = vmax.f32 %v747, 1e-24
      %v806 = vmax.f32 %v749, 1e-24
      %v807 = vmax.f32 %v751, 1e-24
      %v808 = vmax.f32 %v753, 1e-24
      %v809 = vmax.f32 %v755, 1e-24
      %v810 = vmax.f32 %v757, 1e-24
      %v811 = vmax.f32 %v759, 1e-24
      %v812 = vmax.f32 %v761, 1e-24
      %v813 = vmax.f32 %v763, 1e-24
      %v814 = vmax.f32 %v765, 1e-24
      %v815 = vmax.f32 %v767, 1e-24
      %v816 = vmax.f32 %v769, 1e-24
      %v817 = vmax.f32 %v771, 1e-24
      %v818 = vmax.f32 %v773, 1e-24
      %v819 = vmax.f32 %v775, 1e-24
      %v820 = vmax.f32 %v777, 1e-24
      %v821 = vmax.f32 %v779, 1e-24
      %v822 = vmax.f32 %v781, 1e-24
      %v823 = vmax.f32 %v783, 1e-24
      %v824 = vmax.f32 %v785, 1e-24
      %v825 = vmax.f32 %v787, 1e-24
      %v826 = vmax.f32 %v789, 1e-24
      %v827 = vmax.f32 %v791, 1e-24
      %v828 = vmax.f32 %v793, 1e-24
      %v829 = vmax.f32 %v795, 1e-24
      %v830 = vmax.f32 %v797, 1e-24
      %v831 = vmax.f32 %v799, 1e-24
      %v832 = vrsqrt.pop %v800
      %v833 = vrsqrt.pop %v801
      %v834 = vrsqrt.pop %v802
      %v835 = vrsqrt.pop %v803
      %v836 = vrsqrt.pop %v804
      %v837 = vrsqrt.pop %v805
      %v838 = vrsqrt.pop %v806
      %v839 = vrsqrt.pop %v807
      %v840 = vrsqrt.pop %v808
      %v841 = vrsqrt.pop %v809
      %v842 = vrsqrt.pop %v810
      %v843 = vrsqrt.pop %v811
      %v844 = vrsqrt.pop %v812
      %v845 = vrsqrt.pop %v813
      %v846 = vrsqrt.pop %v814
      %v847 = vrsqrt.pop %v815
      %v848 = vrsqrt.pop %v816
      %v849 = vrsqrt.pop %v817
      %v850 = vrsqrt.pop %v818
      %v851 = vrsqrt.pop %v819
      %v852 = vrsqrt.pop %v820
      %v853 = vrsqrt.pop %v821
      %v854 = vrsqrt.pop %v822
      %v855 = vrsqrt.pop %v823
      %v856 = vrsqrt.pop %v824
      %v857 = vrsqrt.pop %v825
      %v858 = vrsqrt.pop %v826
      %v859 = vrsqrt.pop %v827
      %v860 = vrsqrt.pop %v828
      %v861 = vrsqrt.pop %v829
      %v862 = vrsqrt.pop %v830
      %v863 = vrsqrt.pop %v831
      %v864 = vmul.f32 %v672, %v832
      %v865 = vmul.f32 %v673, %v833
      %v866 = vmul.f32 %v674, %v834
      %v867 = vmul.f32 %v675, %v835
      %v868 = vmul.f32 %v676, %v836
      %v869 = vmul.f32 %v677, %v837
      %v870 = vmul.f32 %v678, %v838
      %v871 = vmul.f32 %v679, %v839
      %v872 = vmul.f32 %v680, %v840
      %v873 = vmul.f32 %v681, %v841
      %v874 = vmul.f32 %v682, %v842
      %v875 = vmul.f32 %v683, %v843
      %v876 = vmul.f32 %v684, %v844
      %v877 = vmul.f32 %v685, %v845
      %v878 = vmul.f32 %v686, %v846
      %v879 = vmul.f32 %v687, %v847
      %v880 = vmul.f32 %v688, %v848
      %v881 = vmul.f32 %v689, %v849
      %v882 = vmul.f32 %v690, %v850
      %v883 = vmul.f32 %v691, %v851
      %v884 = vmul.f32 %v692, %v852
      %v885 = vmul.f32 %v693, %v853
      %v886 = vmul.f32 %v694, %v854
      %v887 = vmul.f32 %v695, %v855
      %v888 = vmul.f32 %v696, %v856
      %v889 = vmul.f32 %v697, %v857
      %v890 = vmul.f32 %v698, %v858
      %v891 = vmul.f32 %v699, %v859
      %v892 = vmul.f32 %v700, %v860
      %v893 = vmul.f32 %v701, %v861
      %v894 = vmul.f32 %v702, %v862
      %v895 = vmul.f32 %v703, %v863
      %v896 = vld [vmem:[%s306] sm:$0x3]
      %v898 = vlaneseq
      %v899 = vshrl.u32 %v898, 7
      %v900 = vsub.s32 0, %v899
      %v901 = vrot.slane %v896, %v900
      %v902 = vlaneseq
      %v903 = vshrl.u32 %v902, 7
      %v904 = vsub.s32 1, %v903
      %v905 = vrot.slane %v896, %v904
      %908 = vmatprep.subr.mxu0 0.0
      %909 = vmatpush1.msra.mxu0 %v879
      %910 = vmatprep.subr.mxu0 0.0
      %911 = vmatpush1.msra.mxu0 %v878
      %912 = vmatprep.subr.mxu0 0.0
      %913 = vmatpush1.msra.mxu0 %v877
      %914 = vmatprep.subr.mxu0 0.0
      %915 = vmatpush1.msra.mxu0 %v876
      %916 = vmatprep.subr.mxu0 0.0
      %917 = vmatpush1.msra.mxu0 %v875
      %918 = vmatprep.subr.mxu0 0.0
      %919 = vmatpush1.msra.mxu0 %v874
      %920 = vmatprep.subr.mxu0 0.0
      %921 = vmatpush1.msra.mxu0 %v873
      %922 = vmatprep.subr.mxu0 0.0
      %923 = vmatpush1.msra.mxu0 %v872
      %924 = vmatprep.subr.mxu0 0.0
      %925 = vmatpush1.msra.mxu0 %v871
      %926 = vmatprep.subr.mxu0 0.0
      %927 = vmatpush1.msra.mxu0 %v870
      %928 = vmatprep.subr.mxu0 0.0
      %929 = vmatpush1.msra.mxu0 %v869
      %930 = vmatprep.subr.mxu0 0.0
      %931 = vmatpush1.msra.mxu0 %v868
      %932 = vmatprep.subr.mxu0 0.0
      %933 = vmatpush1.msra.mxu0 %v867
      %934 = vmatprep.subr.mxu0 0.0
      %935 = vmatpush1.msra.mxu0 %v866
      %936 = vmatprep.subr.mxu0 0.0
      %937 = vmatpush1.msra.mxu0 %v865
      %938 = vmatprep.subr.mxu0 0.0
      %939 = vmatpush1.msra.mxu0 %v864
      %940 = vmatprep.subr.mxu0 0.0
      %941 = vmatpush2.msra.mxu0 %v895
      %942 = vmatprep.subr.mxu0 0.0
      %943 = vmatpush2.msra.mxu0 %v894
      %944 = vmatprep.subr.mxu0 0.0
      %945 = vmatpush2.msra.mxu0 %v893
      %946 = vmatprep.subr.mxu0 0.0
      %947 = vmatpush2.msra.mxu0 %v892
      %948 = vmatprep.subr.mxu0 0.0
      %949 = vmatpush2.msra.mxu0 %v891
      %950 = vmatprep.subr.mxu0 0.0
      %951 = vmatpush2.msra.mxu0 %v890
      %952 = vmatprep.subr.mxu0 0.0
      %953 = vmatpush2.msra.mxu0 %v889
      %954 = vmatprep.subr.mxu0 0.0
      %955 = vmatpush2.msra.mxu0 %v888
      %956 = vmatprep.subr.mxu0 0.0
      %957 = vmatpush2.msra.mxu0 %v887
      %958 = vmatprep.subr.mxu0 0.0
      %959 = vmatpush2.msra.mxu0 %v886
      %960 = vmatprep.subr.mxu0 0.0
      %961 = vmatpush2.msra.mxu0 %v885
      %962 = vmatprep.subr.mxu0 0.0
      %963 = vmatpush2.msra.mxu0 %v884
      %964 = vmatprep.subr.mxu0 0.0
      %965 = vmatpush2.msra.mxu0 %v883
      %966 = vmatprep.subr.mxu0 0.0
      %967 = vmatpush2.msra.mxu0 %v882
      %968 = vmatprep.subr.mxu0 0.0
      %969 = vmatpush2.msra.mxu0 %v881
      %970 = vmatprep.subr.mxu0 0.0
      %971 = vmatpush2.msra.mxu0 %v880
      %972 = vmatprep.mubr.f32.mxu0 %v905
      %973 = vmatmul.mubr.f32.gmra.mxu0 %v901
      %v974 = vpop.f32.mrf.mxu0
      %v975 = vadd.f32 0.0, %v974
      %v976 = vpop.f32.mrf.mxu0
      %977 = vdwg.mxu0
      %s978 = scalar_lea.vmem [#allocation2], %s21
      %979 = vst [vmem:[%s978] sm:$0x1] %v975
      %p980 = scmp.eq.s32.totalorder %s21, 1
      // Predicated region
      $region49: #{_forward_core.2} parent=47 // pred_check
        %p981 = pneg %p980
      $region50: #{_forward_core.2} parent=47 // pred_check_branch
        %983 = sbr.rel (%p981) target = $region52
      $region51: #{_forward_core.2} parent=47 // pred_region
        %v984 = vld [vmem:[#allocation2] sm:$0x3]
        %v985 = vld [vmem:[%s6] sm:$0x3]
        %vm986 = vcmask 15360
        %v988 = vsel %vm986, %v985, 0
        %vm990 = vcmask 1041408
        %v992 = vsel %vm990, %v984, 0
        %994 = vmatprep.subr.mxu0 0.0
        %995 = vmatpush1.msra.mxu0 0.0
        %996 = vmatprep.subr.mxu0 0.0
        %997 = vmatpush1.msra.mxu0 0.0
        %998 = vmatprep.subr.mxu0 0.0
        %999 = vmatpush1.msra.mxu0 0.0
        %1000 = vmatprep.subr.mxu0 0.0
        %1001 = vmatpush1.msra.mxu0 0.0
        %1002 = vmatprep.subr.mxu0 0.0
        %1003 = vmatpush1.msra.mxu0 0.0
        %1004 = vmatprep.subr.mxu0 0.0
        %1005 = vmatpush1.msra.mxu0 0.0
        %1006 = vmatprep.subr.mxu0 0.0
        %1007 = vmatpush1.msra.mxu0 0.0
        %1008 = vmatprep.subr.mxu0 0.0
        %1009 = vmatpush1.msra.mxu0 0.0
        %1010 = vmatprep.subr.mxu0 0.0
        %1011 = vmatpush1.msra.mxu0 0.0
        %1012 = vmatprep.subr.mxu0 0.0
        %1013 = vmatpush1.msra.mxu0 0.0
        %1014 = vmatprep.subr.mxu0 0.0
        %1015 = vmatpush1.msra.mxu0 0.0
        %1016 = vmatprep.subr.mxu0 0.0
        %1017 = vmatpush1.msra.mxu0 0.0
        %1018 = vmatprep.subr.mxu0 0.0
        %1019 = vmatpush1.msra.mxu0 0.0
        %1020 = vmatprep.subr.mxu0 0.0
        %1021 = vmatpush1.msra.mxu0 0.0
        %1022 = vmatprep.subr.mxu0 0.0
        %1023 = vmatpush1.msra.mxu0 0.0
        %1024 = vmatprep.subr.mxu0 0.0
        %1025 = vmatpush1.msra.mxu0 %v992
        %1026 = vmatprep.subr.mxu0 0.0
        %1027 = vmatpush2.msra.mxu0 0.0
        %1028 = vmatprep.subr.mxu0 0.0
        %1029 = vmatpush2.msra.mxu0 0.0
        %1030 = vmatprep.subr.mxu0 0.0
        %1031 = vmatpush2.msra.mxu0 0.0
        %1032 = vmatprep.subr.mxu0 0.0
        %1033 = vmatpush2.msra.mxu0 0.0
        %1034 = vmatprep.subr.mxu0 0.0
        %1035 = vmatpush2.msra.mxu0 0.0
        %1036 = vmatprep.subr.mxu0 0.0
        %1037 = vmatpush2.msra.mxu0 0.0
        %1038 = vmatprep.subr.mxu0 0.0
        %1039 = vmatpush2.msra.mxu0 0.0
        %1040 = vmatprep.subr.mxu0 0.0
        %1041 = vmatpush2.msra.mxu0 0.0
        %1042 = vmatprep.subr.mxu0 0.0
        %1043 = vmatpush2.msra.mxu0 0.0
        %1044 = vmatprep.subr.mxu0 0.0
        %1045 = vmatpush2.msra.mxu0 0.0
        %1046 = vmatprep.subr.mxu0 0.0
        %1047 = vmatpush2.msra.mxu0 0.0
        %1048 = vmatprep.subr.mxu0 0.0
        %1049 = vmatpush2.msra.mxu0 0.0
        %1050 = vmatprep.subr.mxu0 0.0
        %1051 = vmatpush2.msra.mxu0 0.0
        %1052 = vmatprep.subr.mxu0 0.0
        %1053 = vmatpush2.msra.mxu0 0.0
        %1054 = vmatprep.subr.mxu0 0.0
        %1055 = vmatpush2.msra.mxu0 0.0
        %1056 = vmatprep.subr.mxu0 0.0
        %1057 = vmatpush2.msra.mxu0 0.0
        %1058 = vmatprep.mubr.f32.mxu0 0.0
        %1059 = vmatmul.mubr.f32.gmra.mxu0 %v988
        %v1060 = vpop.f32.mrf.mxu0
        %v1061 = vadd.f32 0.0, %v1060
        %v1062 = vpop.f32.mrf.mxu0
        %1063 = vdwg.mxu0
        %v1064 = vmul.f32 %v1061, %v1061
        %v1065 = vsel %vm990, %v1064, 0.0
        %1066 = vadd.xlane.f32.xlu0 %v1065
        %v1067 = vpop.xlane.xlu0 %1066
        %v1068 = vmax.f32 %v1067, 1e-24
        %v1069 = vrsqrt.pop %v1068
        %v1070 = vmul.f32 %v1061, %v1069
        %v1071 = vld [vmem:[%s0] sm:$0xff]
        %v1072 = vld [vmem:[%s0 + $0x8] sm:$0xff]
        %v1073 = vld [vmem:[%s0 + $0x10] sm:$0xff]
        %v1074 = vld [vmem:[%s0 + $0x18] sm:$0xff]
        %v1075 = vld [vmem:[%s0 + $0x20] sm:$0xff]
        %v1076 = vld [vmem:[%s0 + $0x28] sm:$0xff]
        %v1077 = vld [vmem:[%s0 + $0x30] sm:$0xff]
        %v1078 = vld [vmem:[%s0 + $0x38] sm:$0xff]
        %s1079 = sld [smem:[#allocation3]]
        %1080 = vst [vmem:[%s7] sm:$0xff] %v1071
        %1081 = vst [vmem:[%s7 + $0x8] sm:$0xff] %v1072
        %1082 = vst [vmem:[%s7 + $0x10] sm:$0xff] %v1073
        %1083 = vst [vmem:[%s7 + $0x18] sm:$0xff] %v1074
        %1084 = vst [vmem:[%s7 + $0x20] sm:$0xff] %v1075
        %1085 = vst [vmem:[%s7 + $0x28] sm:$0xff] %v1076
        %1086 = vst [vmem:[%s7 + $0x30] sm:$0xff] %v1077
        %1087 = vst [vmem:[%s7 + $0x38] sm:$0xff] %v1078
        %s1088 = scalar_lea.vmem %s7, %s1079
        %1089 = vst [vmem:[%s1088] sm:$0x3] %v1070
        %v1090 = vlaneseq
        %v1091 = vshrl.u32 %v1090, 7
        %v1092 = vadd.s32 %v1091, 8
        %v1093 = vadd.s32 %v1091, 16
        %v1094 = vadd.s32 %v1091, 24
        %v1095 = vadd.s32 %v1091, 32
        %v1096 = vadd.s32 %v1091, 40
        %v1097 = vadd.s32 %v1091, 48
        %v1098 = vadd.s32 %v1091, 56
        %v1099 = vadd.s32 %v1091, 64
        %v1100 = vadd.s32 %v1091, 72
        %v1101 = vadd.s32 %v1091, 80
        %v1102 = vadd.s32 %v1091, 88
        %v1103 = vadd.s32 %v1091, 96
        %v1104 = vadd.s32 %v1091, 104
        %v1105 = vadd.s32 %v1091, 112
        %v1106 = vadd.s32 %v1091, 120
        %vm1107 = vcmp.eq.s32.totalorder %v1091, %v670
        %vm1108 = vcmp.eq.s32.totalorder %v1092, %v670
        %vm1109 = vcmp.eq.s32.totalorder %v1093, %v670
        %vm1110 = vcmp.eq.s32.totalorder %v1094, %v670
        %vm1111 = vcmp.eq.s32.totalorder %v1095, %v670
        %vm1112 = vcmp.eq.s32.totalorder %v1096, %v670
        %vm1113 = vcmp.eq.s32.totalorder %v1097, %v670
        %vm1114 = vcmp.eq.s32.totalorder %v1098, %v670
        %vm1115 = vcmp.eq.s32.totalorder %v1099, %v670
        %vm1116 = vcmp.eq.s32.totalorder %v1100, %v670
        %vm1117 = vcmp.eq.s32.totalorder %v1101, %v670
        %vm1118 = vcmp.eq.s32.totalorder %v1102, %v670
        %vm1119 = vcmp.eq.s32.totalorder %v1103, %v670
        %vm1120 = vcmp.eq.s32.totalorder %v1104, %v670
        %vm1121 = vcmp.eq.s32.totalorder %v1105, %v670
        %vm1122 = vcmp.eq.s32.totalorder %v1106, %v670
        %v1123 = vsel %vm1107, 1, 0
        %v1124 = vsel %vm1108, 1, 0
        %v1125 = vsel %vm1109, 1, 0
        %v1126 = vsel %vm1110, 1, 0
        %v1127 = vsel %vm1111, 1, 0
        %v1128 = vsel %vm1112, 1, 0
        %v1129 = vsel %vm1113, 1, 0
        %v1130 = vsel %vm1114, 1, 0
        %v1131 = vsel %vm1115, 1, 0
        %v1132 = vsel %vm1116, 1, 0
        %v1133 = vsel %vm1117, 1, 0
        %v1134 = vsel %vm1118, 1, 0
        %v1135 = vsel %vm1119, 1, 0
        %v1136 = vsel %vm1120, 1, 0
        %v1137 = vsel %vm1121, 1, 0
        %v1138 = vsel %vm1122, 1, 0
        %v1139 = vcvt.s32.f32 %v1123
        %v1140 = vcvt.s32.f32 %v1124
        %v1141 = vcvt.s32.f32 %v1125
        %v1142 = vcvt.s32.f32 %v1126
        %v1143 = vcvt.s32.f32 %v1127
        %v1144 = vcvt.s32.f32 %v1128
        %v1145 = vcvt.s32.f32 %v1129
        %v1146 = vcvt.s32.f32 %v1130
        %v1147 = vcvt.s32.f32 %v1131
        %v1148 = vcvt.s32.f32 %v1132
        %v1149 = vcvt.s32.f32 %v1133
        %v1150 = vcvt.s32.f32 %v1134
        %v1151 = vcvt.s32.f32 %v1135
        %v1152 = vcvt.s32.f32 %v1136
        %v1153 = vcvt.s32.f32 %v1137
        %v1154 = vcvt.s32.f32 %v1138
        %v1155 = vadd.s32 %v670, 2
        %vm1156 = vcmp.eq.s32.totalorder %v1091, %v1155
        %vm1157 = vcmp.eq.s32.totalorder %v1092, %v1155
        %vm1158 = vcmp.eq.s32.totalorder %v1093, %v1155
        %vm1159 = vcmp.eq.s32.totalorder %v1094, %v1155
        %vm1160 = vcmp.eq.s32.totalorder %v1095, %v1155
        %vm1161 = vcmp.eq.s32.totalorder %v1096, %v1155
        %vm1162 = vcmp.eq.s32.totalorder %v1097, %v1155
        %vm1163 = vcmp.eq.s32.totalorder %v1098, %v1155
        %vm1164 = vcmp.eq.s32.totalorder %v1099, %v1155
        %vm1165 = vcmp.eq.s32.totalorder %v1100, %v1155
        %vm1166 = vcmp.eq.s32.totalorder %v1101, %v1155
        %vm1167 = vcmp.eq.s32.totalorder %v1102, %v1155
        %vm1168 = vcmp.eq.s32.totalorder %v1103, %v1155
        %vm1169 = vcmp.eq.s32.totalorder %v1104, %v1155
        %vm1170 = vcmp.eq.s32.totalorder %v1105, %v1155
        %vm1171 = vcmp.eq.s32.totalorder %v1106, %v1155
        %v1172 = vsel %vm1156, 1, 0
        %v1173 = vsel %vm1157, 1, 0
        %v1174 = vsel %vm1158, 1, 0
        %v1175 = vsel %vm1159, 1, 0
        %v1176 = vsel %vm1160, 1, 0
        %v1177 = vsel %vm1161, 1, 0
        %v1178 = vsel %vm1162, 1, 0
        %v1179 = vsel %vm1163, 1, 0
        %v1180 = vsel %vm1164, 1, 0
        %v1181 = vsel %vm1165, 1, 0
        %v1182 = vsel %vm1166, 1, 0
        %v1183 = vsel %vm1167, 1, 0
        %v1184 = vsel %vm1168, 1, 0
        %v1185 = vsel %vm1169, 1, 0
        %v1186 = vsel %vm1170, 1, 0
        %v1187 = vsel %vm1171, 1, 0
        %v1188 = vcvt.s32.f32 %v1172
        %v1189 = vcvt.s32.f32 %v1173
        %v1190 = vcvt.s32.f32 %v1174
        %v1191 = vcvt.s32.f32 %v1175
        %v1192 = vcvt.s32.f32 %v1176
        %v1193 = vcvt.s32.f32 %v1177
        %v1194 = vcvt.s32.f32 %v1178
        %v1195 = vcvt.s32.f32 %v1179
        %v1196 = vcvt.s32.f32 %v1180
        %v1197 = vcvt.s32.f32 %v1181
        %v1198 = vcvt.s32.f32 %v1182
        %v1199 = vcvt.s32.f32 %v1183
        %v1200 = vcvt.s32.f32 %v1184
        %v1201 = vcvt.s32.f32 %v1185
        %v1202 = vcvt.s32.f32 %v1186
        %v1203 = vcvt.s32.f32 %v1187
        %vm1204 = vcmask 523264
        %v1206 = vsel %vm1204, %v1188, 0
        %v1209 = vsel %vm1204, %v1189, 0
        %v1212 = vsel %vm1204, %v1190, 0
        %v1215 = vsel %vm1204, %v1191, 0
        %v1218 = vsel %vm1204, %v1192, 0
        %v1221 = vsel %vm1204, %v1193, 0
        %v1224 = vsel %vm1204, %v1194, 0
        %v1227 = vsel %vm1204, %v1195, 0
        %v1230 = vsel %vm1204, %v1196, 0
        %v1233 = vsel %vm1204, %v1197, 0
        %v1236 = vsel %vm1204, %v1198, 0
        %v1239 = vsel %vm1204, %v1199, 0
        %v1242 = vsel %vm1204, %v1200, 0
        %v1245 = vsel %vm1204, %v1201, 0
        %v1248 = vsel %vm1204, %v1202, 0
        %v1251 = vsel %vm1204, %v1203, 0
        %1253 = vmatprep.subr.mxu0 0.0
        %1254 = vmatpush1.msra.mxu0 0.0
        %1255 = vmatprep.subr.mxu0 0.0
        %1256 = vmatpush1.msra.mxu0 0.0
        %1257 = vmatprep.subr.mxu0 0.0
        %1258 = vmatpush1.msra.mxu0 0.0
        %1259 = vmatprep.subr.mxu0 0.0
        %1260 = vmatpush1.msra.mxu0 0.0
        %1261 = vmatprep.subr.mxu0 0.0
        %1262 = vmatpush1.msra.mxu0 0.0
        %1263 = vmatprep.subr.mxu0 0.0
        %1264 = vmatpush1.msra.mxu0 0.0
        %1265 = vmatprep.subr.mxu0 0.0
        %1266 = vmatpush1.msra.mxu0 0.0
        %1267 = vmatprep.subr.mxu0 0.0
        %1268 = vmatpush1.msra.mxu0 0.0
        %1269 = vmatprep.subr.mxu0 0.0
        %1270 = vmatpush1.msra.mxu0 %v1078
        %1271 = vmatprep.subr.mxu0 0.0
        %1272 = vmatpush1.msra.mxu0 %v1077
        %1273 = vmatprep.subr.mxu0 0.0
        %1274 = vmatpush1.msra.mxu0 %v1076
        %1275 = vmatprep.subr.mxu0 0.0
        %1276 = vmatpush1.msra.mxu0 %v1075
        %1277 = vmatprep.subr.mxu0 0.0
        %1278 = vmatpush1.msra.mxu0 %v1074
        %1279 = vmatprep.subr.mxu0 0.0
        %1280 = vmatpush1.msra.mxu0 %v1073
        %1281 = vmatprep.subr.mxu0 0.0
        %1282 = vmatpush1.msra.mxu0 %v1072
        %1283 = vmatprep.subr.mxu0 0.0
        %1284 = vmatpush1.msra.mxu0 %v1071
        %1285 = vmatprep.subr.mxu0 0.0
        %1286 = vmatpush2.msra.mxu0 0.0
        %1287 = vmatprep.subr.mxu0 0.0
        %1288 = vmatpush2.msra.mxu0 0.0
        %1289 = vmatprep.subr.mxu0 0.0
        %1290 = vmatpush2.msra.mxu0 0.0
        %1291 = vmatprep.subr.mxu0 0.0
        %1292 = vmatpush2.msra.mxu0 0.0
        %1293 = vmatprep.subr.mxu0 0.0
        %1294 = vmatpush2.msra.mxu0 0.0
        %1295 = vmatprep.subr.mxu0 0.0
        %1296 = vmatpush2.msra.mxu0 0.0
        %1297 = vmatprep.subr.mxu0 0.0
        %1298 = vmatpush2.msra.mxu0 0.0
        %1299 = vmatprep.subr.mxu0 0.0
        %1300 = vmatpush2.msra.mxu0 0.0
        %1301 = vmatprep.subr.mxu0 0.0
        %1302 = vmatpush2.msra.mxu0 0.0
        %1303 = vmatprep.subr.mxu0 0.0
        %1304 = vmatpush2.msra.mxu0 0.0
        %1305 = vmatprep.subr.mxu0 0.0
        %1306 = vmatpush2.msra.mxu0 0.0
        %1307 = vmatprep.subr.mxu0 0.0
        %1308 = vmatpush2.msra.mxu0 0.0
        %1309 = vmatprep.subr.mxu0 0.0
        %1310 = vmatpush2.msra.mxu0 0.0
        %1311 = vmatprep.subr.mxu0 0.0
        %1312 = vmatpush2.msra.mxu0 0.0
        %1313 = vmatprep.subr.mxu0 0.0
        %1314 = vmatpush2.msra.mxu0 0.0
        %1315 = vmatprep.subr.mxu0 0.0
        %1316 = vmatpush2.msra.mxu0 0.0
        %1317 = vmatprep.mubr.f32.mxu0 0.0
        %1318 = vmatmul.mubr.f32.gmra.mxu0 %v1206
        %v1319 = vpop.f32.mrf.mxu0
        %v1320 = vadd.f32 0.0, %v1319
        %v1321 = vpop.f32.mrf.mxu0
        %1322 = vmatprep.mubr.f32.mxu0 0.0
        %1323 = vmatmul.mubr.f32.gmra.mxu0 %v1209
        %v1324 = vpop.f32.mrf.mxu0
        %v1325 = vadd.f32 0.0, %v1324
        %v1326 = vpop.f32.mrf.mxu0
        %1327 = vmatprep.mubr.f32.mxu0 0.0
        %1328 = vmatmul.mubr.f32.gmra.mxu0 %v1212
        %v1329 = vpop.f32.mrf.mxu0
        %v1330 = vadd.f32 0.0, %v1329
        %v1331 = vpop.f32.mrf.mxu0
        %1332 = vmatprep.mubr.f32.mxu0 0.0
        %1333 = vmatmul.mubr.f32.gmra.mxu0 %v1215
        %v1334 = vpop.f32.mrf.mxu0
        %v1335 = vadd.f32 0.0, %v1334
        %v1336 = vpop.f32.mrf.mxu0
        %1337 = vmatprep.mubr.f32.mxu0 0.0
        %1338 = vmatmul.mubr.f32.gmra.mxu0 %v1218
        %v1339 = vpop.f32.mrf.mxu0
        %v1340 = vadd.f32 0.0, %v1339
        %v1341 = vpop.f32.mrf.mxu0
        %1342 = vmatprep.mubr.f32.mxu0 0.0
        %1343 = vmatmul.mubr.f32.gmra.mxu0 %v1221
        %v1344 = vpop.f32.mrf.mxu0
        %v1345 = vadd.f32 0.0, %v1344
        %v1346 = vpop.f32.mrf.mxu0
        %1347 = vmatprep.mubr.f32.mxu0 0.0
        %1348 = vmatmul.mubr.f32.gmra.mxu0 %v1224
        %v1349 = vpop.f32.mrf.mxu0
        %v1350 = vadd.f32 0.0, %v1349
        %v1351 = vpop.f32.mrf.mxu0
        %1352 = vmatprep.mubr.f32.mxu0 0.0
        %1353 = vmatmul.mubr.f32.gmra.mxu0 %v1227
        %v1354 = vpop.f32.mrf.mxu0
        %v1355 = vadd.f32 0.0, %v1354
        %v1356 = vpop.f32.mrf.mxu0
        %1357 = vmatprep.mubr.f32.mxu0 0.0
        %1358 = vmatmul.mubr.f32.gmra.mxu0 %v1230
        %v1359 = vpop.f32.mrf.mxu0
        %v1360 = vadd.f32 0.0, %v1359
        %v1361 = vpop.f32.mrf.mxu0
        %1362 = vmatprep.mubr.f32.mxu0 0.0
        %1363 = vmatmul.mubr.f32.gmra.mxu0 %v1233
        %v1364 = vpop.f32.mrf.mxu0
        %v1365 = vadd.f32 0.0, %v1364
        %v1366 = vpop.f32.mrf.mxu0
        %1367 = vmatprep.mubr.f32.mxu0 0.0
        %1368 = vmatmul.mubr.f32.gmra.mxu0 %v1236
        %v1369 = vpop.f32.mrf.mxu0
        %v1370 = vadd.f32 0.0, %v1369
        %v1371 = vpop.f32.mrf.mxu0
        %1372 = vmatprep.mubr.f32.mxu0 0.0
        %1373 = vmatmul.mubr.f32.gmra.mxu0 %v1239
        %v1374 = vpop.f32.mrf.mxu0
        %v1375 = vadd.f32 0.0, %v1374
        %v1376 = vpop.f32.mrf.mxu0
        %1377 = vmatprep.mubr.f32.mxu0 0.0
        %1378 = vmatmul.mubr.f32.gmra.mxu0 %v1242
        %v1379 = vpop.f32.mrf.mxu0
        %v1380 = vadd.f32 0.0, %v1379
        %v1381 = vpop.f32.mrf.mxu0
        %1382 = vmatprep.mubr.f32.mxu0 0.0
        %1383 = vmatmul.mubr.f32.gmra.mxu0 %v1245
        %v1384 = vpop.f32.mrf.mxu0
        %v1385 = vadd.f32 0.0, %v1384
        %v1386 = vpop.f32.mrf.mxu0
        %1387 = vmatprep.mubr.f32.mxu0 0.0
        %1388 = vmatmul.mubr.f32.gmra.mxu0 %v1248
        %v1389 = vpop.f32.mrf.mxu0
        %v1390 = vadd.f32 0.0, %v1389
        %v1391 = vpop.f32.mrf.mxu0
        %1392 = vmatprep.mubr.f32.mxu0 0.0
        %1393 = vmatmul.mubr.f32.gmra.mxu0 %v1251
        %v1394 = vpop.f32.mrf.mxu0
        %v1395 = vadd.f32 0.0, %v1394
        %v1396 = vpop.f32.mrf.mxu0
        %1397 = vdwg.mxu0
        %v1399 = vsel %vm986, %v1139, 0
        %v1402 = vsel %vm986, %v1140, 0
        %v1405 = vsel %vm986, %v1141, 0
        %v1408 = vsel %vm986, %v1142, 0
        %v1411 = vsel %vm986, %v1143, 0
        %v1414 = vsel %vm986, %v1144, 0
        %v1417 = vsel %vm986, %v1145, 0
        %v1420 = vsel %vm986, %v1146, 0
        %v1423 = vsel %vm986, %v1147, 0
        %v1426 = vsel %vm986, %v1148, 0
        %v1429 = vsel %vm986, %v1149, 0
        %v1432 = vsel %vm986, %v1150, 0
        %v1435 = vsel %vm986, %v1151, 0
        %v1438 = vsel %vm986, %v1152, 0
        %v1441 = vsel %vm986, %v1153, 0
        %v1444 = vsel %vm986, %v1154, 0
        %v1447 = vsel %vm990, %v1070, 0
        %1449 = vmatprep.subr.mxu0 0.0
        %1450 = vmatpush1.msra.mxu0 0.0
        %1451 = vmatprep.subr.mxu0 0.0
        %1452 = vmatpush1.msra.mxu0 0.0
        %1453 = vmatprep.subr.mxu0 0.0
        %1454 = vmatpush1.msra.mxu0 0.0
        %1455 = vmatprep.subr.mxu0 0.0
        %1456 = vmatpush1.msra.mxu0 0.0
        %1457 = vmatprep.subr.mxu0 0.0
        %1458 = vmatpush1.msra.mxu0 0.0
        %1459 = vmatprep.subr.mxu0 0.0
        %1460 = vmatpush1.msra.mxu0 0.0
        %1461 = vmatprep.subr.mxu0 0.0
        %1462 = vmatpush1.msra.mxu0 0.0
        %1463 = vmatprep.subr.mxu0 0.0
        %1464 = vmatpush1.msra.mxu0 0.0
        %1465 = vmatprep.subr.mxu0 0.0
        %1466 = vmatpush1.msra.mxu0 0.0
        %1467 = vmatprep.subr.mxu0 0.0
        %1468 = vmatpush1.msra.mxu0 0.0
        %1469 = vmatprep.subr.mxu0 0.0
        %1470 = vmatpush1.msra.mxu0 0.0
        %1471 = vmatprep.subr.mxu0 0.0
        %1472 = vmatpush1.msra.mxu0 0.0
        %1473 = vmatprep.subr.mxu0 0.0
        %1474 = vmatpush1.msra.mxu0 0.0
        %1475 = vmatprep.subr.mxu0 0.0
        %1476 = vmatpush1.msra.mxu0 0.0
        %1477 = vmatprep.subr.mxu0 0.0
        %1478 = vmatpush1.msra.mxu0 0.0
        %1479 = vmatprep.subr.mxu0 0.0
        %1480 = vmatpush1.msra.mxu0 %v1447
        %1481 = vmatprep.subr.mxu0 0.0
        %1482 = vmatpush2.msra.mxu0 0.0
        %1483 = vmatprep.subr.mxu0 0.0
        %1484 = vmatpush2.msra.mxu0 0.0
        %1485 = vmatprep.subr.mxu0 0.0
        %1486 = vmatpush2.msra.mxu0 0.0
        %1487 = vmatprep.subr.mxu0 0.0
        %1488 = vmatpush2.msra.mxu0 0.0
        %1489 = vmatprep.subr.mxu0 0.0
        %1490 = vmatpush2.msra.mxu0 0.0
        %1491 = vmatprep.subr.mxu0 0.0
        %1492 = vmatpush2.msra.mxu0 0.0
        %1493 = vmatprep.subr.mxu0 0.0
        %1494 = vmatpush2.msra.mxu0 0.0
        %1495 = vmatprep.subr.mxu0 0.0
        %1496 = vmatpush2.msra.mxu0 0.0
        %1497 = vmatprep.subr.mxu0 0.0
        %1498 = vmatpush2.msra.mxu0 0.0
        %1499 = vmatprep.subr.mxu0 0.0
        %1500 = vmatpush2.msra.mxu0 0.0
        %1501 = vmatprep.subr.mxu0 0.0
        %1502 = vmatpush2.msra.mxu0 0.0
        %1503 = vmatprep.subr.mxu0 0.0
        %1504 = vmatpush2.msra.mxu0 0.0
        %1505 = vmatprep.subr.mxu0 0.0
        %1506 = vmatpush2.msra.mxu0 0.0
        %1507 = vmatprep.subr.mxu0 0.0
        %1508 = vmatpush2.msra.mxu0 0.0
        %1509 = vmatprep.subr.mxu0 0.0
        %1510 = vmatpush2.msra.mxu0 0.0
        %1511 = vmatprep.subr.mxu0 0.0
        %1512 = vmatpush2.msra.mxu0 0.0
        %1513 = vmatprep.mubr.f32.mxu0 0.0
        %1514 = vmatmul.mubr.f32.gmra.mxu0 %v1399
        %v1515 = vpop.f32.mrf.mxu0
        %v1516 = vadd.f32 %v1320, %v1515
        %v1517 = vpop.f32.mrf.mxu0
        %1518 = vmatprep.mubr.f32.mxu0 0.0
        %1519 = vmatmul.mubr.f32.gmra.mxu0 %v1402
        %v1520 = vpop.f32.mrf.mxu0
        %v1521 = vadd.f32 %v1325, %v1520
        %v1522 = vpop.f32.mrf.mxu0
        %1523 = vmatprep.mubr.f32.mxu0 0.0
        %1524 = vmatmul.mubr.f32.gmra.mxu0 %v1405
        %v1525 = vpop.f32.mrf.mxu0
        %v1526 = vadd.f32 %v1330, %v1525
        %v1527 = vpop.f32.mrf.mxu0
        %1528 = vmatprep.mubr.f32.mxu0 0.0
        %1529 = vmatmul.mubr.f32.gmra.mxu0 %v1408
        %v1530 = vpop.f32.mrf.mxu0
        %v1531 = vadd.f32 %v1335, %v1530
        %v1532 = vpop.f32.mrf.mxu0
        %1533 = vmatprep.mubr.f32.mxu0 0.0
        %1534 = vmatmul.mubr.f32.gmra.mxu0 %v1411
        %v1535 = vpop.f32.mrf.mxu0
        %v1536 = vadd.f32 %v1340, %v1535
        %v1537 = vpop.f32.mrf.mxu0
        %1538 = vmatprep.mubr.f32.mxu0 0.0
        %1539 = vmatmul.mubr.f32.gmra.mxu0 %v1414
        %v1540 = vpop.f32.mrf.mxu0
        %v1541 = vadd.f32 %v1345, %v1540
        %v1542 = vpop.f32.mrf.mxu0
        %1543 = vmatprep.mubr.f32.mxu0 0.0
        %1544 = vmatmul.mubr.f32.gmra.mxu0 %v1417
        %v1545 = vpop.f32.mrf.mxu0
        %v1546 = vadd.f32 %v1350, %v1545
        %v1547 = vpop.f32.mrf.mxu0
        %1548 = vmatprep.mubr.f32.mxu0 0.0
        %1549 = vmatmul.mubr.f32.gmra.mxu0 %v1420
        %v1550 = vpop.f32.mrf.mxu0
        %v1551 = vadd.f32 %v1355, %v1550
        %v1552 = vpop.f32.mrf.mxu0
        %1553 = vmatprep.mubr.f32.mxu0 0.0
        %1554 = vmatmul.mubr.f32.gmra.mxu0 %v1423
        %v1555 = vpop.f32.mrf.mxu0
        %v1556 = vadd.f32 %v1360, %v1555
        %v1557 = vpop.f32.mrf.mxu0
        %1558 = vmatprep.mubr.f32.mxu0 0.0
        %1559 = vmatmul.mubr.f32.gmra.mxu0 %v1426
        %v1560 = vpop.f32.mrf.mxu0
        %v1561 = vadd.f32 %v1365, %v1560
        %v1562 = vpop.f32.mrf.mxu0
        %1563 = vmatprep.mubr.f32.mxu0 0.0
        %1564 = vmatmul.mubr.f32.gmra.mxu0 %v1429
        %v1565 = vpop.f32.mrf.mxu0
        %v1566 = vadd.f32 %v1370, %v1565
        %v1567 = vpop.f32.mrf.mxu0
        %1568 = vmatprep.mubr.f32.mxu0 0.0
        %1569 = vmatmul.mubr.f32.gmra.mxu0 %v1432
        %v1570 = vpop.f32.mrf.mxu0
        %v1571 = vadd.f32 %v1375, %v1570
        %v1572 = vpop.f32.mrf.mxu0
        %1573 = vmatprep.mubr.f32.mxu0 0.0
        %1574 = vmatmul.mubr.f32.gmra.mxu0 %v1435
        %v1575 = vpop.f32.mrf.mxu0
        %v1576 = vadd.f32 %v1380, %v1575
        %v1577 = vpop.f32.mrf.mxu0
        %1578 = vmatprep.mubr.f32.mxu0 0.0
        %1579 = vmatmul.mubr.f32.gmra.mxu0 %v1438
        %v1580 = vpop.f32.mrf.mxu0
        %v1581 = vadd.f32 %v1385, %v1580
        %v1582 = vpop.f32.mrf.mxu0
        %1583 = vmatprep.mubr.f32.mxu0 0.0
        %1584 = vmatmul.mubr.f32.gmra.mxu0 %v1441
        %v1585 = vpop.f32.mrf.mxu0
        %v1586 = vadd.f32 %v1390, %v1585
        %v1587 = vpop.f32.mrf.mxu0
        %1588 = vmatprep.mubr.f32.mxu0 0.0
        %1589 = vmatmul.mubr.f32.gmra.mxu0 %v1444
        %v1590 = vpop.f32.mrf.mxu0
        %v1591 = vadd.f32 %v1395, %v1590
        %v1592 = vpop.f32.mrf.mxu0
        %1593 = vdwg.mxu0
        %1594 = vxpose.xlu0.b32.start [1/16] %v1516, 128
        %1595 = vxpose.xlu0.b32.cont [2/16] %v1521, 128
        %1596 = vxpose.xlu0.b32.cont [3/16] %v1526, 128
        %1597 = vxpose.xlu0.b32.cont [4/16] %v1531, 128
        %1598 = vxpose.xlu0.b32.cont [5/16] %v1536, 128
        %1599 = vxpose.xlu0.b32.cont [6/16] %v1541, 128
        %1600 = vxpose.xlu0.b32.cont [7/16] %v1546, 128
        %1601 = vxpose.xlu0.b32.cont [8/16] %v1551, 128
        %1602 = vxpose.xlu0.b32.cont [9/16] %v1556, 128
        %1603 = vxpose.xlu0.b32.cont [10/16] %v1561, 128
        %1604 = vxpose.xlu0.b32.cont [11/16] %v1566, 128
        %1605 = vxpose.xlu0.b32.cont [12/16] %v1571, 128
        %1606 = vxpose.xlu0.b32.cont [13/16] %v1576, 128
        %1607 = vxpose.xlu0.b32.cont [14/16] %v1581, 128
        %1608 = vxpose.xlu0.b32.cont [15/16] %v1586, 128
        %1609 = vxpose.xlu0.b32.end [16/16] %v1591, 128
        %v1610 = vpop.trf.xlu0
        %v1611 = vpop.trf.xlu0
        %v1612 = vpop.trf.xlu0
        %v1613 = vpop.trf.xlu0
        %v1614 = vpop.trf.xlu0
        %v1615 = vpop.trf.xlu0
        %v1616 = vpop.trf.xlu0
        %v1617 = vpop.trf.xlu0
        %v1618 = vpop.trf.xlu0
        %v1619 = vpop.trf.xlu0
        %v1620 = vpop.trf.xlu0
        %v1621 = vpop.trf.xlu0
        %v1622 = vpop.trf.xlu0
        %v1623 = vpop.trf.xlu0
        %v1624 = vpop.trf.xlu0
        %v1625 = vpop.trf.xlu0
        %v1626 = vpack.c.bf16 %v1611, %v1610
        %v1627 = vpack.c.bf16 %v1613, %v1612
        %v1628 = vpack.c.bf16 %v1615, %v1614
        %v1629 = vpack.c.bf16 %v1617, %v1616
        %v1630 = vpack.c.bf16 %v1619, %v1618
        %v1631 = vpack.c.bf16 %v1621, %v1620
        %v1632 = vpack.c.bf16 %v1623, %v1622
        %v1633 = vpack.c.bf16 %v1625, %v1624
        %v1642 = vunpack.c.l.b16 %v1626
        %v1643 = vunpack.c.h.b16 %v1626
        %v1644 = vunpack.c.l.b16 %v1627
        %v1645 = vunpack.c.h.b16 %v1627
        %v1646 = vunpack.c.l.b16 %v1628
        %v1647 = vunpack.c.h.b16 %v1628
        %v1648 = vunpack.c.l.b16 %v1629
        %v1649 = vunpack.c.h.b16 %v1629
        %v1650 = vunpack.c.l.b16 %v1630
        %v1651 = vunpack.c.h.b16 %v1630
        %v1652 = vunpack.c.l.b16 %v1631
        %v1653 = vunpack.c.h.b16 %v1631
        %v1654 = vunpack.c.l.b16 %v1632
        %v1655 = vunpack.c.h.b16 %v1632
        %v1656 = vunpack.c.l.b16 %v1633
        %v1657 = vunpack.c.h.b16 %v1633
        %v1658 = vpack.c.b16 %v1642, %v1642
        %v1659 = vpack.c.b16 %v1643, %v1643
        %v1660 = vpack.c.b16 %v1644, %v1644
        %v1661 = vpack.c.b16 %v1645, %v1645
        %v1662 = vpack.c.b16 %v1646, %v1646
        %v1663 = vpack.c.b16 %v1647, %v1647
        %v1664 = vpack.c.b16 %v1648, %v1648
        %v1665 = vpack.c.b16 %v1649, %v1649
        %v1666 = vpack.c.b16 %v1650, %v1650
        %v1667 = vpack.c.b16 %v1651, %v1651
        %v1668 = vpack.c.b16 %v1652, %v1652
        %v1669 = vpack.c.b16 %v1653, %v1653
        %v1670 = vpack.c.b16 %v1654, %v1654
        %v1671 = vpack.c.b16 %v1655, %v1655
        %v1672 = vpack.c.b16 %v1656, %v1656
        %v1673 = vpack.c.b16 %v1657, %v1657
        %1690 = vst [vmem:[%s8] sm:$0xf] %v1658
        %1691 = vst [vmem:[%s8 + $0x4] sm:$0xf] %v1659
        %1692 = vst [vmem:[%s8 + $0x8] sm:$0xf] %v1660
        %1693 = vst [vmem:[%s8 + $0xc] sm:$0xf] %v1661
        %1694 = vst [vmem:[%s8 + $0x10] sm:$0xf] %v1662
        %1695 = vst [vmem:[%s8 + $0x14] sm:$0xf] %v1663
        %1696 = vst [vmem:[%s8 + $0x18] sm:$0xf] %v1664
        %1697 = vst [vmem:[%s8 + $0x1c] sm:$0xf] %v1665
        %1698 = vst [vmem:[%s8 + $0x20] sm:$0xf] %v1666
        %1699 = vst [vmem:[%s8 + $0x24] sm:$0xf] %v1667
        %1700 = vst [vmem:[%s8 + $0x28] sm:$0xf] %v1668
        %1701 = vst [vmem:[%s8 + $0x2c] sm:$0xf] %v1669
        %1702 = vst [vmem:[%s8 + $0x30] sm:$0xf] %v1670
        %1703 = vst [vmem:[%s8 + $0x34] sm:$0xf] %v1671
        %1704 = vst [vmem:[%s8 + $0x38] sm:$0xf] %v1672
        %1705 = vst [vmem:[%s8 + $0x3c] sm:$0xf] %v1673
      $region52: #{_forward_core.2} parent=47 // pred_fallthru
        _
      // Predicated region
      $region53: #{_forward_core.2} parent=47 // pred_check
        %p1706 = pneg %p191
      $region54: #{_forward_core.2} parent=47 // pred_check_branch
        %1708 = sbr.rel (%p1706) target = $region56
      $region55: #{_forward_core.2} parent=47 // pred_region
        _
      $region56: #{_forward_core.2} parent=47 // pred_fallthru
        _
      // Predicated region
      $region57: #{_forward_core.2} parent=47 // pred_check
        %p1709 = pneg %p212
      $region58: #{_forward_core.2} parent=47 // pred_check_branch
        %1711 = sbr.rel (%p1709) target = $region60
      $region59: #{_forward_core.2} parent=47 // pred_region
        _
      $region60: #{_forward_core.2} parent=47 // pred_fallthru
        _
      // Predicated region
      $region61: #{_forward_core.2} parent=47 // pred_check
        %p1712 = pneg %p191
      $region62: #{_forward_core.2} parent=47 // pred_check_branch
        %1714 = sbr.rel (%p1712) target = $region64
      $region63: #{_forward_core.2} parent=47 // pred_region
        _
      $region64: #{_forward_core.2} parent=47 // pred_fallthru
        _
      // Predicated region
      $region65: #{_forward_core.2} parent=47 // pred_check
        %p1715 = pneg %p212
      $region66: #{_forward_core.2} parent=47 // pred_check_branch
        %1717 = sbr.rel (%p1715) target = $region68
      $region67: #{_forward_core.2} parent=47 // pred_region
        _
      $region68: #{_forward_core.2} parent=47 // pred_fallthru
        _
    $region48: #{_forward_core.2} parent=5 // pred_fallthru
      _
    %p1718 = scmp.le.s32.totalorder 2, %s16
    // Predicated region
    $region69: #{_forward_core.2} parent=5 // pred_check
      %p1719 = pneg %p1718
    $region70: #{_forward_core.2} parent=5 // pred_check_branch
      %1721 = sbr.rel (%p1719) target = $region72
    $region71: #{_forward_core.2} parent=5 // pred_region
      %s1722 = ssub.s32 %s16, 2
    $region72: #{_forward_core.2} parent=5 // pred_fallthru
      _
  $region6: #{_forward_core.2} parent=0 // loop_footer
    %s20 = sadd.s32 1, %s16
  $region7: #{_forward_core.2} parent=0 // loop_footer_branch
    %15 = sbr.rel target = $region3
  $region8: #{_forward_core.2} parent=0 // loop_exit
    _

// kernel: _forward_core.3
$region0: #{_forward_core.3}
  #allocation0 [shape = 'u32[]', space=smem, size = 0x4, offset = 0x4, fixed_abs, tag = 'smem constant byte address 0x4 - core index']
  #allocation1 [shape = 'u32[144,128]{1,0:T(1,128)}', space=vmem, size = 0x12000, scoped, tag = 'internal scratch']
  %s0 = inlined_call_operand.vmem [shape: f32[2,256,8], index: 0, kind: input, shape index: {}]
  %s1 = inlined_call_operand.vmem [shape: f32[8,128], index: 1, kind: input, shape index: {}]
  %s2 = inlined_call_operand.vmem [shape: f32[1,128], index: 2, kind: input, shape index: {}]
  %s3 = inlined_call_operand.vmem [shape: f32[2,1,256], index: 3, kind: input, shape index: {}]
  %s4 = inlined_call_operand.vmem [shape: f32[2,256,1], index: 4, kind: input, shape index: {}]
  %s5 = inlined_call_operand.vmem [shape: bf16[128,128], index: 5, kind: input, shape index: {}]
  %s6 = inlined_call_operand.vmem [shape: f32[2,256,128], index: 6, kind: output, shape index: {0}]
  %s7 = inlined_call_operand.hbm [shape: f32[2,1,128], index: 7, kind: output, shape index: {1}]
  %s8 = inlined_call_operand.vmem [shape: f32[2,1,128], index: 8, kind: output, shape index: {2}]
  %9 = xla_tuple %s6, %s7, %s8
  %s10 = sld [smem:[#allocation0]]
  $region73: #{_forward_core.3} parent=0
    _
  %s12 = ssub.s32 1, %s10
  %s13 = scalar_select 0, %s12, %s10
  $region1: #{_forward_core.3} parent=0
    #allocation2 [shape = 'u8[1024]{0}', space=vmem, size = 0x400, scoped, tag = 'output window, operand 1']
    #allocation3 [shape = 's32[2]{0}', space=sflag, size = 0x8, scoped, tag = 'scoped memory for _forward_core.3']
    %14 = vsyncpa [#allocation3], 0
    %s15 = scalar_lea.sflag [#allocation3], 1
    %16 = vsyncpa %s15, 0
    loop: start=0, step=1, limit=4
    $region2: #{_forward_core.3} parent=1 // loop_pre_header
      _
    $region3: #{_forward_core.3} parent=1 // loop_header
      %s18 = sphi 0, %s22
      %p19 = scmp.ge.s32.totalorder %s18, 4
      %s28 = sphi 0, %s30
      %s31 = sphi 0, %s28
      %s32 = sphi 0, %s31
      %s48 = sphi 0, %s32
      %s52 = sphi 0, %s52
      %s54 = sphi 0, %s52
      %s55 = sphi 0, %s54
      %s69 = sphi 0, %s55
      %s73 = sphi 0, %s73
      %s75 = sphi 0, %s73
      %s76 = sphi 0, %s75
      %s90 = sphi 0, %s76
      %s96 = sphi 0, %s98
      %s99 = sphi 0, %s96
      %s100 = sphi 0, %s99
      %s116 = sphi 0, %s100
      %s122 = sphi 0, %s124
      %s125 = sphi 0, %s122
      %s126 = sphi 0, %s125
      %s142 = sphi 0, %s126
      %s146 = sphi 0, %s146
      %s148 = sphi 0, %s146
      %s149 = sphi 0, %s148
      %s163 = sphi 0, %s149
      %s169 = sphi 0, %s171
      %s172 = sphi 0, %s169
      %s173 = sphi 0, %s172
      %s189 = sphi 0, %s173
      %s195 = sphi 0, %s197
      %s198 = sphi 0, %s195
      %s199 = sphi 0, %s198
      %s215 = sphi 0, %s199
      %s221 = sphi 0, %s223
      %s224 = sphi 0, %s221
      %s225 = sphi 0, %s224
      %s241 = sphi 0, %s225
    $region4: #{_forward_core.3} parent=1 // loop_header_branch
      %21 = sbr.rel (%p19) target = $region8
    $region5: #{_forward_core.3} parent=1 // loop_body
      %s23 = ssub.s32 %s18, 1
      %s24 = ssub.s32 %s18, 2
      %s25 = sadd.s32 %s18, 1
      %s26 = ssub.s32 %s18, %s25
      %p27 = scmp.eq.s32.totalorder %s26, 0
      %s29 = sadd.s32 %s28, 1
      %s30 = scalar_select %p27, %s28, %s29
      %p33 = pneg %p27
      %p34 = scmp.eq.s32.totalorder %s18, 1
      %p35 = por %p33, %p34
      %p36 = scmp.ne.s32.totalorder %s28, %s31
      %p37 = scmp.eq.s32.totalorder %s18, 0
      %p38 = por %p36, %p37
      %p39 = scmp.ne.s32.totalorder %s28, %s31
      %p40 = scmp.eq.s32.totalorder %s23, 1
      %p41 = por %p39, %p40
      %p42 = scmp.ne.s32.totalorder %s31, %s32
      %p43 = scmp.eq.s32.totalorder %s23, 0
      %p44 = por %p42, %p43
      %p45 = scmp.ne.s32.totalorder %s31, %s32
      %p46 = scmp.eq.s32.totalorder %s24, 1
      %p47 = por %p45, %p46
      %p49 = scmp.ne.s32.totalorder %s32, %s48
      %p50 = scmp.eq.s32.totalorder %s24, 0
      %p51 = por %p49, %p50
      %s53 = sadd.s32 %s52, 1
      %p56 = scmp.eq.s32.totalorder %s18, 1
      %p57 = scmp.ne.s32.totalorder %s52, %s54
      %p58 = scmp.eq.s32.totalorder %s18, 0
      %p59 = por %p57, %p58
      %p60 = scmp.ne.s32.totalorder %s52, %s54
      %p61 = scmp.eq.s32.totalorder %s23, 1
      %p62 = por %p60, %p61
      %p63 = scmp.ne.s32.totalorder %s54, %s55
      %p64 = scmp.eq.s32.totalorder %s23, 0
      %p65 = por %p63, %p64
      %p66 = scmp.ne.s32.totalorder %s54, %s55
      %p67 = scmp.eq.s32.totalorder %s24, 1
      %p68 = por %p66, %p67
      %p70 = scmp.ne.s32.totalorder %s55, %s69
      %p71 = scmp.eq.s32.totalorder %s24, 0
      %p72 = por %p70, %p71
      %s74 = sadd.s32 %s73, 1
      %p77 = scmp.eq.s32.totalorder %s18, 1
      %p78 = scmp.ne.s32.totalorder %s73, %s75
      %p79 = scmp.eq.s32.totalorder %s18, 0
      %p80 = por %p78, %p79
      %p81 = scmp.ne.s32.totalorder %s73, %s75
      %p82 = scmp.eq.s32.totalorder %s23, 1
      %p83 = por %p81, %p82
      %p84 = scmp.ne.s32.totalorder %s75, %s76
      %p85 = scmp.eq.s32.totalorder %s23, 0
      %p86 = por %p84, %p85
      %p87 = scmp.ne.s32.totalorder %s75, %s76
      %p88 = scmp.eq.s32.totalorder %s24, 1
      %p89 = por %p87, %p88
      %p91 = scmp.ne.s32.totalorder %s76, %s90
      %p92 = scmp.eq.s32.totalorder %s24, 0
      %p93 = por %p91, %p92
      %s94 = ssub.s32 %s18, %s25
      %p95 = scmp.eq.s32.totalorder %s94, 0
      %s97 = sadd.s32 %s96, 1
      %s98 = scalar_select %p95, %s96, %s97
      %p101 = pneg %p95
      %p102 = scmp.eq.s32.totalorder %s18, 1
      %p103 = por %p101, %p102
      %p104 = scmp.ne.s32.totalorder %s96, %s99
      %p105 = scmp.eq.s32.totalorder %s18, 0
      %p106 = por %p104, %p105
      %p107 = scmp.ne.s32.totalorder %s96, %s99
      %p108 = scmp.eq.s32.totalorder %s23, 1
      %p109 = por %p107, %p108
      %p110 = scmp.ne.s32.totalorder %s99, %s100
      %p111 = scmp.eq.s32.totalorder %s23, 0
      %p112 = por %p110, %p111
      %p113 = scmp.ne.s32.totalorder %s99, %s100
      %p114 = scmp.eq.s32.totalorder %s24, 1
      %p115 = por %p113, %p114
      %p117 = scmp.ne.s32.totalorder %s100, %s116
      %p118 = scmp.eq.s32.totalorder %s24, 0
      %p119 = por %p117, %p118
      %s120 = ssub.s32 %s18, %s25
      %p121 = scmp.eq.s32.totalorder %s120, 0
      %s123 = sadd.s32 %s122, 1
      %s124 = scalar_select %p121, %s122, %s123
      %p127 = pneg %p121
      %p128 = scmp.eq.s32.totalorder %s18, 1
      %p129 = por %p127, %p128
      %p130 = scmp.ne.s32.totalorder %s122, %s125
      %p131 = scmp.eq.s32.totalorder %s18, 0
      %p132 = por %p130, %p131
      %p133 = scmp.ne.s32.totalorder %s122, %s125
      %p134 = scmp.eq.s32.totalorder %s23, 1
      %p135 = por %p133, %p134
      %p136 = scmp.ne.s32.totalorder %s125, %s126
      %p137 = scmp.eq.s32.totalorder %s23, 0
      %p138 = por %p136, %p137
      %p139 = scmp.ne.s32.totalorder %s125, %s126
      %p140 = scmp.eq.s32.totalorder %s24, 1
      %p141 = por %p139, %p140
      %p143 = scmp.ne.s32.totalorder %s126, %s142
      %p144 = scmp.eq.s32.totalorder %s24, 0
      %p145 = por %p143, %p144
      %s147 = sadd.s32 %s146, 1
      %p150 = scmp.eq.s32.totalorder %s18, 1
      %p151 = scmp.ne.s32.totalorder %s146, %s148
      %p152 = scmp.eq.s32.totalorder %s18, 0
      %p153 = por %p151, %p152
      %p154 = scmp.ne.s32.totalorder %s146, %s148
      %p155 = scmp.eq.s32.totalorder %s23, 1
      %p156 = por %p154, %p155
      %p157 = scmp.ne.s32.totalorder %s148, %s149
      %p158 = scmp.eq.s32.totalorder %s23, 0
      %p159 = por %p157, %p158
      %p160 = scmp.ne.s32.totalorder %s148, %s149
      %p161 = scmp.eq.s32.totalorder %s24, 1
      %p162 = por %p160, %p161
      %p164 = scmp.ne.s32.totalorder %s149, %s163
      %p165 = scmp.eq.s32.totalorder %s24, 0
      %p166 = por %p164, %p165
      %s167 = ssub.s32 %s18, %s25
      %p168 = scmp.eq.s32.totalorder %s167, 0
      %s170 = sadd.s32 %s169, 1
      %s171 = scalar_select %p168, %s169, %s170
      %p174 = pneg %p168
      %p175 = scmp.eq.s32.totalorder %s18, 1
      %p176 = por %p174, %p175
      %p177 = scmp.ne.s32.totalorder %s169, %s172
      %p178 = scmp.eq.s32.totalorder %s18, 0
      %p179 = por %p177, %p178
      %p180 = scmp.ne.s32.totalorder %s169, %s172
      %p181 = scmp.eq.s32.totalorder %s23, 1
      %p182 = por %p180, %p181
      %p183 = scmp.ne.s32.totalorder %s172, %s173
      %p184 = scmp.eq.s32.totalorder %s23, 0
      %p185 = por %p183, %p184
      %p186 = scmp.ne.s32.totalorder %s172, %s173
      %p187 = scmp.eq.s32.totalorder %s24, 1
      %p188 = por %p186, %p187
      %p190 = scmp.ne.s32.totalorder %s173, %s189
      %p191 = scmp.eq.s32.totalorder %s24, 0
      %p192 = por %p190, %p191
      %s193 = ssub.s32 %s18, %s25
      %p194 = scmp.eq.s32.totalorder %s193, 0
      %s196 = sadd.s32 %s195, 1
      %s197 = scalar_select %p194, %s195, %s196
      %p200 = pneg %p194
      %p201 = scmp.eq.s32.totalorder %s18, 1
      %p202 = por %p200, %p201
      %p203 = scmp.ne.s32.totalorder %s195, %s198
      %p204 = scmp.eq.s32.totalorder %s18, 0
      %p205 = por %p203, %p204
      %p206 = scmp.ne.s32.totalorder %s195, %s198
      %p207 = scmp.eq.s32.totalorder %s23, 1
      %p208 = por %p206, %p207
      %p209 = scmp.ne.s32.totalorder %s198, %s199
      %p210 = scmp.eq.s32.totalorder %s23, 0
      %p211 = por %p209, %p210
      %p212 = scmp.ne.s32.totalorder %s198, %s199
      %p213 = scmp.eq.s32.totalorder %s24, 1
      %p214 = por %p212, %p213
      %p216 = scmp.ne.s32.totalorder %s199, %s215
      %p217 = scmp.eq.s32.totalorder %s24, 0
      %p218 = por %p216, %p217
      %s219 = ssub.s32 %s18, %s25
      %p220 = scmp.eq.s32.totalorder %s219, 0
      %s222 = sadd.s32 %s221, 1
      %s223 = scalar_select %p220, %s221, %s222
      %p226 = pneg %p220
      %p227 = scmp.eq.s32.totalorder %s18, 1
      %p228 = por %p226, %p227
      %p229 = scmp.ne.s32.totalorder %s221, %s224
      %p230 = scmp.eq.s32.totalorder %s18, 0
      %p231 = por %p229, %p230
      %p232 = scmp.ne.s32.totalorder %s221, %s224
      %p233 = scmp.eq.s32.totalorder %s23, 1
      %p234 = por %p232, %p233
      %p235 = scmp.ne.s32.totalorder %s224, %s225
      %p236 = scmp.eq.s32.totalorder %s23, 0
      %p237 = por %p235, %p236
      %p238 = scmp.ne.s32.totalorder %s224, %s225
      %p239 = scmp.eq.s32.totalorder %s24, 1
      %p240 = por %p238, %p239
      %p242 = scmp.ne.s32.totalorder %s225, %s241
      %p243 = scmp.eq.s32.totalorder %s24, 0
      %p244 = por %p242, %p243
      %p245 = scmp.le.s32.totalorder 1, %s18
      %p246 = scmp.lt.s32.totalorder %s18, 3
      %p247 = pnand %p245, %p246
      %p248 = pneg %p247
      // Predicated region
      $region9: #{_forward_core.3} parent=5 // pred_check
        _
      $region10: #{_forward_core.3} parent=5 // pred_check_branch
        %250 = sbr.rel (%p247) target = $region12
      $region11: #{_forward_core.3} parent=5 // pred_region
        %s251 = ssub.s32 %s18, 1
        // Predicated region
        $region13: #{_forward_core.3} parent=11 // pred_check
          %p252 = pneg %p65
        $region14: #{_forward_core.3} parent=11 // pred_check_branch
          %254 = sbr.rel (%p252) target = $region16
        $region15: #{_forward_core.3} parent=11 // pred_region
          _
        $region16: #{_forward_core.3} parent=11 // pred_fallthru
          _
        // Predicated region
        $region17: #{_forward_core.3} parent=11 // pred_check
          %p255 = pneg %p86
        $region18: #{_forward_core.3} parent=11 // pred_check_branch
          %257 = sbr.rel (%p255) target = $region20
        $region19: #{_forward_core.3} parent=11 // pred_region
          _
        $region20: #{_forward_core.3} parent=11 // pred_fallthru
          _
        // Predicated region
        $region21: #{_forward_core.3} parent=11 // pred_check
          %p258 = pneg %p159
        $region22: #{_forward_core.3} parent=11 // pred_check_branch
          %260 = sbr.rel (%p258) target = $region24
        $region23: #{_forward_core.3} parent=11 // pred_region
          _
        $region24: #{_forward_core.3} parent=11 // pred_fallthru
          _
      $region12: #{_forward_core.3} parent=5 // pred_fallthru
        _
      %p261 = scmp.lt.s32.totalorder %s18, 2
      // Predicated region
      $region25: #{_forward_core.3} parent=5 // pred_check
        %p262 = pneg %p261
      $region26: #{_forward_core.3} parent=5 // pred_check_branch
        %264 = sbr.rel (%p262) target = $region28
      $region27: #{_forward_core.3} parent=5 // pred_region
        // Predicated region
        $region29: #{_forward_core.3} parent=27 // pred_check
          %p265 = pneg %p38
        $region30: #{_forward_core.3} parent=27 // pred_check_branch
          %267 = sbr.rel (%p265) target = $region32
        $region31: #{_forward_core.3} parent=27 // pred_region
          %p268 = scmp.lt.s32.totalorder %s18, 1
          %s269 = scalar_select %p268, %s18, 1
          %s270 = smul.addr %s269, 32
          %s271 = smul.addr %s270, 8
          %s272 = scalar_lea.vmem %s0, %s271
        $region32: #{_forward_core.3} parent=27 // pred_fallthru
          _
        // Predicated region
        $region33: #{_forward_core.3} parent=27 // pred_check
          %p273 = pneg %p106
        $region34: #{_forward_core.3} parent=27 // pred_check_branch
          %275 = sbr.rel (%p273) target = $region36
        $region35: #{_forward_core.3} parent=27 // pred_region
          %p276 = scmp.lt.s32.totalorder %s18, 1
          %s277 = scalar_select %p276, %s18, 1
          %s278 = smul.addr %s277, 2
          %s279 = scalar_lea.vmem %s3, %s278
        $region36: #{_forward_core.3} parent=27 // pred_fallthru
          _
        // Predicated region
        $region37: #{_forward_core.3} parent=27 // pred_check
          %p280 = pneg %p132
        $region38: #{_forward_core.3} parent=27 // pred_check_branch
          %282 = sbr.rel (%p280) target = $region40
        $region39: #{_forward_core.3} parent=27 // pred_region
          %p283 = scmp.lt.s32.totalorder %s18, 1
          %s284 = scalar_select %p283, %s18, 1
          %s285 = smul.addr %s284, 32
          %s286 = smul.addr %s285, 8
          %s287 = scalar_lea.vmem %s4, %s286
        $region40: #{_forward_core.3} parent=27 // pred_fallthru
          _
      $region28: #{_forward_core.3} parent=5 // pred_fallthru
        _
      %p288 = scmp.le.s32.totalorder 1, %s18
      %p289 = scmp.lt.s32.totalorder %s18, 3
      %p290 = pnand %p288, %p289
      %p291 = pneg %p290
      // Predicated region
      $region41: #{_forward_core.3} parent=5 // pred_check
        _
      $region42: #{_forward_core.3} parent=5 // pred_check_branch
        %293 = sbr.rel (%p290) target = $region44
      $region43: #{_forward_core.3} parent=5 // pred_region
        %s294 = ssub.s32 %s18, 1
        %p295 = scmp.lt.s32.totalorder %s23, 1
        %s296 = scalar_select %p295, %s23, 1
        %s297 = smul.addr %s296, 32
        %s298 = smul.addr %s297, 8
        %s299 = scalar_lea.vmem %s0, %s298
        %p300 = pneg %p44
        %p301 = pneg %p41
        %p302 = pneg %p65
        %p303 = pneg %p62
        %p304 = pneg %p86
        %p305 = pneg %p83
        %p306 = scmp.lt.s32.totalorder %s23, 1
        %s307 = scalar_select %p306, %s23, 1
        %s308 = smul.addr %s307, 2
        %s309 = scalar_lea.vmem %s3, %s308
        %p310 = pneg %p112
        %p311 = pneg %p109
        %p312 = scmp.lt.s32.totalorder %s23, 1
        %s313 = scalar_select %p312, %s23, 1
        %s314 = smul.addr %s313, 32
        %s315 = smul.addr %s314, 8
        %s316 = scalar_lea.vmem %s4, %s315
        %p317 = pneg %p138
        %p318 = pneg %p135
        %p319 = pneg %p159
        %p320 = pneg %p156
        %p321 = pneg %p185
        %p322 = pneg %p182
        %p323 = scmp.lt.s32.totalorder %s23, 1
        %s324 = scalar_select %p323, %s23, 1
        %s325 = smul.addr %s324, 32
        %s326 = smul.addr %s325, 8
        %s327 = scalar_lea.vmem %s6, %s326
        %p328 = pneg %p211
        %p329 = pneg %p208
        %s330 = sand.u32 %s198, 1
        %s331 = scalar_lea.sflag [#allocation3], %s330
        %s332 = sand.u32 %s198, 1
        %s333 = scalar_lea.vmem [#allocation2], %s332
        %p334 = pneg %p237
        %p335 = pneg %p234
        %p336 = scmp.lt.s32.totalorder %s23, 1
        %s337 = scalar_select %p336, %s23, 1
        %s338 = scalar_lea.vmem %s8, %s337
        %p339 = scmp.lt.s32.totalorder %s23, 1
        %s340 = scalar_select %p339, %s23, 1
        %s341 = smul.addr %s340, 32
        %s342 = smul.addr %s341, 8
        %s343 = scalar_lea.vmem %s0, %s342
        %p344 = scmp.lt.s32.totalorder %s23, 1
        %s345 = scalar_select %p344, %s23, 1
        %s346 = smul.addr %s345, 2
        %s347 = scalar_lea.vmem %s3, %s346
        %p348 = scmp.lt.s32.totalorder %s23, 1
        %s349 = scalar_select %p348, %s23, 1
        %s350 = smul.addr %s349, 32
        %s351 = smul.addr %s350, 8
        %s352 = scalar_lea.vmem %s4, %s351
        %p353 = scmp.lt.s32.totalorder %s23, 1
        %s354 = scalar_select %p353, %s23, 1
        %s355 = smul.addr %s354, 32
        %s356 = smul.addr %s355, 8
        %s357 = scalar_lea.vmem %s6, %s356
        %p358 = scmp.lt.s32.totalorder %s23, 1
        %s359 = scalar_select %p358, %s23, 1
        %s360 = scalar_lea.vmem %s8, %s359
        %v362 = vld [vmem:[%s343] sm:$0xff]
        %v363 = vld [vmem:[%s343 + $0x8] sm:$0xff]
        %v364 = vld [vmem:[%s343 + $0x10] sm:$0xff]
        %v365 = vld [vmem:[%s343 + $0x18] sm:$0xff]
        %v366 = vld [vmem:[%s343 + $0x20] sm:$0xff]
        %v367 = vld [vmem:[%s343 + $0x28] sm:$0xff]
        %v368 = vld [vmem:[%s343 + $0x30] sm:$0xff]
        %v369 = vld [vmem:[%s343 + $0x38] sm:$0xff]
        %v370 = vld [vmem:[%s343 + $0x40] sm:$0xff]
        %v371 = vld [vmem:[%s343 + $0x48] sm:$0xff]
        %v372 = vld [vmem:[%s343 + $0x50] sm:$0xff]
        %v373 = vld [vmem:[%s343 + $0x58] sm:$0xff]
        %v374 = vld [vmem:[%s343 + $0x60] sm:$0xff]
        %v375 = vld [vmem:[%s343 + $0x68] sm:$0xff]
        %v376 = vld [vmem:[%s343 + $0x70] sm:$0xff]
        %v377 = vld [vmem:[%s343 + $0x78] sm:$0xff]
        %v378 = vld [vmem:[%s343 + $0x80] sm:$0xff]
        %v379 = vld [vmem:[%s343 + $0x88] sm:$0xff]
        %v380 = vld [vmem:[%s343 + $0x90] sm:$0xff]
        %v381 = vld [vmem:[%s343 + $0x98] sm:$0xff]
        %v382 = vld [vmem:[%s343 + $0xa0] sm:$0xff]
        %v383 = vld [vmem:[%s343 + $0xa8] sm:$0xff]
        %v384 = vld [vmem:[%s343 + $0xb0] sm:$0xff]
        %v385 = vld [vmem:[%s343 + $0xb8] sm:$0xff]
        %v386 = vld [vmem:[%s343 + $0xc0] sm:$0xff]
        %v387 = vld [vmem:[%s343 + $0xc8] sm:$0xff]
        %v388 = vld [vmem:[%s343 + $0xd0] sm:$0xff]
        %v389 = vld [vmem:[%s343 + $0xd8] sm:$0xff]
        %v390 = vld [vmem:[%s343 + $0xe0] sm:$0xff]
        %v391 = vld [vmem:[%s343 + $0xe8] sm:$0xff]
        %v392 = vld [vmem:[%s343 + $0xf0] sm:$0xff]
        %v393 = vld [vmem:[%s343 + $0xf8] sm:$0xff]
        %v394 = vld [vmem:[%s1] sm:$0xff]
        %v395 = vld [vmem:[%s2] sm:$0x1]
        %v397 = vlaneseq
        %v398 = vshrl.u32 %v397, 7
        %v399 = vsub.s32 0, %v398
        %v400 = vrot.slane %v395, %v399
        %vm402 = vcmask 64512
        %v404 = vsel %vm402, %v362, 0
        %v407 = vsel %vm402, %v363, 0
        %v410 = vsel %vm402, %v364, 0
        %v413 = vsel %vm402, %v365, 0
        %v416 = vsel %vm402, %v366, 0
        %v419 = vsel %vm402, %v367, 0
        %v422 = vsel %vm402, %v368, 0
        %v425 = vsel %vm402, %v369, 0
        %v428 = vsel %vm402, %v370, 0
        %v431 = vsel %vm402, %v371, 0
        %v434 = vsel %vm402, %v372, 0
        %v437 = vsel %vm402, %v373, 0
        %v440 = vsel %vm402, %v374, 0
        %v443 = vsel %vm402, %v375, 0
        %v446 = vsel %vm402, %v376, 0
        %v449 = vsel %vm402, %v377, 0
        %v452 = vsel %vm402, %v378, 0
        %v455 = vsel %vm402, %v379, 0
        %v458 = vsel %vm402, %v380, 0
        %v461 = vsel %vm402, %v381, 0
        %v464 = vsel %vm402, %v382, 0
        %v467 = vsel %vm402, %v383, 0
        %v470 = vsel %vm402, %v384, 0
        %v473 = vsel %vm402, %v385, 0
        %v476 = vsel %vm402, %v386, 0
        %v479 = vsel %vm402, %v387, 0
        %v482 = vsel %vm402, %v388, 0
        %v485 = vsel %vm402, %v389, 0
        %v488 = vsel %vm402, %v390, 0
        %v491 = vsel %vm402, %v391, 0
        %v494 = vsel %vm402, %v392, 0
        %v497 = vsel %vm402, %v393, 0
        %499 = vmatprep.subr.mxu0 0.0
        %500 = vmatpush1.msra.mxu0 0.0
        %501 = vmatprep.subr.mxu0 0.0
        %502 = vmatpush1.msra.mxu0 0.0
        %503 = vmatprep.subr.mxu0 0.0
        %504 = vmatpush1.msra.mxu0 0.0
        %505 = vmatprep.subr.mxu0 0.0
        %506 = vmatpush1.msra.mxu0 0.0
        %507 = vmatprep.subr.mxu0 0.0
        %508 = vmatpush1.msra.mxu0 0.0
        %509 = vmatprep.subr.mxu0 0.0
        %510 = vmatpush1.msra.mxu0 0.0
        %511 = vmatprep.subr.mxu0 0.0
        %512 = vmatpush1.msra.mxu0 0.0
        %513 = vmatprep.subr.mxu0 0.0
        %514 = vmatpush1.msra.mxu0 0.0
        %515 = vmatprep.subr.mxu0 0.0
        %516 = vmatpush1.msra.mxu0 0.0
        %517 = vmatprep.subr.mxu0 0.0
        %518 = vmatpush1.msra.mxu0 0.0
        %519 = vmatprep.subr.mxu0 0.0
        %520 = vmatpush1.msra.mxu0 0.0
        %521 = vmatprep.subr.mxu0 0.0
        %522 = vmatpush1.msra.mxu0 0.0
        %523 = vmatprep.subr.mxu0 0.0
        %524 = vmatpush1.msra.mxu0 0.0
        %525 = vmatprep.subr.mxu0 0.0
        %526 = vmatpush1.msra.mxu0 0.0
        %527 = vmatprep.subr.mxu0 0.0
        %528 = vmatpush1.msra.mxu0 0.0
        %529 = vmatprep.subr.mxu0 0.0
        %530 = vmatpush1.msra.mxu0 %v394
        %531 = vmatprep.subr.mxu0 0.0
        %532 = vmatpush2.msra.mxu0 0.0
        %533 = vmatprep.subr.mxu0 0.0
        %534 = vmatpush2.msra.mxu0 0.0
        %535 = vmatprep.subr.mxu0 0.0
        %536 = vmatpush2.msra.mxu0 0.0
        %537 = vmatprep.subr.mxu0 0.0
        %538 = vmatpush2.msra.mxu0 0.0
        %539 = vmatprep.subr.mxu0 0.0
        %540 = vmatpush2.msra.mxu0 0.0
        %541 = vmatprep.subr.mxu0 0.0
        %542 = vmatpush2.msra.mxu0 0.0
        %543 = vmatprep.subr.mxu0 0.0
        %544 = vmatpush2.msra.mxu0 0.0
        %545 = vmatprep.subr.mxu0 0.0
        %546 = vmatpush2.msra.mxu0 0.0
        %547 = vmatprep.subr.mxu0 0.0
        %548 = vmatpush2.msra.mxu0 0.0
        %549 = vmatprep.subr.mxu0 0.0
        %550 = vmatpush2.msra.mxu0 0.0
        %551 = vmatprep.subr.mxu0 0.0
        %552 = vmatpush2.msra.mxu0 0.0
        %553 = vmatprep.subr.mxu0 0.0
        %554 = vmatpush2.msra.mxu0 0.0
        %555 = vmatprep.subr.mxu0 0.0
        %556 = vmatpush2.msra.mxu0 0.0
        %557 = vmatprep.subr.mxu0 0.0
        %558 = vmatpush2.msra.mxu0 0.0
        %559 = vmatprep.subr.mxu0 0.0
        %560 = vmatpush2.msra.mxu0 0.0
        %561 = vmatprep.subr.mxu0 0.0
        %562 = vmatpush2.msra.mxu0 0.0
        %563 = vmatprep.mubr.f32.mxu0 0.0
        %564 = vmatmul.mubr.f32.gmra.mxu0 %v404
        %v565 = vpop.f32.mrf.mxu0
        %v566 = vadd.f32 %v400, %v565
        %v567 = vpop.f32.mrf.mxu0
        %568 = vmatprep.mubr.f32.mxu0 0.0
        %569 = vmatmul.mubr.f32.gmra.mxu0 %v407
        %v570 = vpop.f32.mrf.mxu0
        %v571 = vadd.f32 %v400, %v570
        %v572 = vpop.f32.mrf.mxu0
        %573 = vmatprep.mubr.f32.mxu0 0.0
        %574 = vmatmul.mubr.f32.gmra.mxu0 %v410
        %v575 = vpop.f32.mrf.mxu0
        %v576 = vadd.f32 %v400, %v575
        %v577 = vpop.f32.mrf.mxu0
        %578 = vmatprep.mubr.f32.mxu0 0.0
        %579 = vmatmul.mubr.f32.gmra.mxu0 %v413
        %v580 = vpop.f32.mrf.mxu0
        %v581 = vadd.f32 %v400, %v580
        %v582 = vpop.f32.mrf.mxu0
        %583 = vmatprep.mubr.f32.mxu0 0.0
        %584 = vmatmul.mubr.f32.gmra.mxu0 %v416
        %v585 = vpop.f32.mrf.mxu0
        %v586 = vadd.f32 %v400, %v585
        %v587 = vpop.f32.mrf.mxu0
        %588 = vmatprep.mubr.f32.mxu0 0.0
        %589 = vmatmul.mubr.f32.gmra.mxu0 %v419
        %v590 = vpop.f32.mrf.mxu0
        %v591 = vadd.f32 %v400, %v590
        %v592 = vpop.f32.mrf.mxu0
        %593 = vmatprep.mubr.f32.mxu0 0.0
        %594 = vmatmul.mubr.f32.gmra.mxu0 %v422
        %v595 = vpop.f32.mrf.mxu0
        %v596 = vadd.f32 %v400, %v595
        %v597 = vpop.f32.mrf.mxu0
        %598 = vmatprep.mubr.f32.mxu0 0.0
        %599 = vmatmul.mubr.f32.gmra.mxu0 %v425
        %v600 = vpop.f32.mrf.mxu0
        %v601 = vadd.f32 %v400, %v600
        %v602 = vpop.f32.mrf.mxu0
        %603 = vmatprep.mubr.f32.mxu0 0.0
        %604 = vmatmul.mubr.f32.gmra.mxu0 %v428
        %v605 = vpop.f32.mrf.mxu0
        %v606 = vadd.f32 %v400, %v605
        %v607 = vpop.f32.mrf.mxu0
        %608 = vmatprep.mubr.f32.mxu0 0.0
        %609 = vmatmul.mubr.f32.gmra.mxu0 %v431
        %v610 = vpop.f32.mrf.mxu0
        %v611 = vadd.f32 %v400, %v610
        %v612 = vpop.f32.mrf.mxu0
        %613 = vmatprep.mubr.f32.mxu0 0.0
        %614 = vmatmul.mubr.f32.gmra.mxu0 %v434
        %v615 = vpop.f32.mrf.mxu0
        %v616 = vadd.f32 %v400, %v615
        %v617 = vpop.f32.mrf.mxu0
        %618 = vmatprep.mubr.f32.mxu0 0.0
        %619 = vmatmul.mubr.f32.gmra.mxu0 %v437
        %v620 = vpop.f32.mrf.mxu0
        %v621 = vadd.f32 %v400, %v620
        %v622 = vpop.f32.mrf.mxu0
        %623 = vmatprep.mubr.f32.mxu0 0.0
        %624 = vmatmul.mubr.f32.gmra.mxu0 %v440
        %v625 = vpop.f32.mrf.mxu0
        %v626 = vadd.f32 %v400, %v625
        %v627 = vpop.f32.mrf.mxu0
        %628 = vmatprep.mubr.f32.mxu0 0.0
        %629 = vmatmul.mubr.f32.gmra.mxu0 %v443
        %v630 = vpop.f32.mrf.mxu0
        %v631 = vadd.f32 %v400, %v630
        %v632 = vpop.f32.mrf.mxu0
        %633 = vmatprep.mubr.f32.mxu0 0.0
        %634 = vmatmul.mubr.f32.gmra.mxu0 %v446
        %v635 = vpop.f32.mrf.mxu0
        %v636 = vadd.f32 %v400, %v635
        %v637 = vpop.f32.mrf.mxu0
        %638 = vmatprep.mubr.f32.mxu0 0.0
        %639 = vmatmul.mubr.f32.gmra.mxu0 %v449
        %v640 = vpop.f32.mrf.mxu0
        %v641 = vadd.f32 %v400, %v640
        %v642 = vpop.f32.mrf.mxu0
        %643 = vmatprep.mubr.f32.mxu0 0.0
        %644 = vmatmul.mubr.f32.gmra.mxu0 %v452
        %v645 = vpop.f32.mrf.mxu0
        %v646 = vadd.f32 %v400, %v645
        %v647 = vpop.f32.mrf.mxu0
        %648 = vmatprep.mubr.f32.mxu0 0.0
        %649 = vmatmul.mubr.f32.gmra.mxu0 %v455
        %v650 = vpop.f32.mrf.mxu0
        %v651 = vadd.f32 %v400, %v650
        %v652 = vpop.f32.mrf.mxu0
        %653 = vmatprep.mubr.f32.mxu0 0.0
        %654 = vmatmul.mubr.f32.gmra.mxu0 %v458
        %v655 = vpop.f32.mrf.mxu0
        %v656 = vadd.f32 %v400, %v655
        %v657 = vpop.f32.mrf.mxu0
        %658 = vmatprep.mubr.f32.mxu0 0.0
        %659 = vmatmul.mubr.f32.gmra.mxu0 %v461
        %v660 = vpop.f32.mrf.mxu0
        %v661 = vadd.f32 %v400, %v660
        %v662 = vpop.f32.mrf.mxu0
        %663 = vmatprep.mubr.f32.mxu0 0.0
        %664 = vmatmul.mubr.f32.gmra.mxu0 %v464
        %v665 = vpop.f32.mrf.mxu0
        %v666 = vadd.f32 %v400, %v665
        %v667 = vpop.f32.mrf.mxu0
        %668 = vmatprep.mubr.f32.mxu0 0.0
        %669 = vmatmul.mubr.f32.gmra.mxu0 %v467
        %v670 = vpop.f32.mrf.mxu0
        %v671 = vadd.f32 %v400, %v670
        %v672 = vpop.f32.mrf.mxu0
        %673 = vmatprep.mubr.f32.mxu0 0.0
        %674 = vmatmul.mubr.f32.gmra.mxu0 %v470
        %v675 = vpop.f32.mrf.mxu0
        %v676 = vadd.f32 %v400, %v675
        %v677 = vpop.f32.mrf.mxu0
        %678 = vmatprep.mubr.f32.mxu0 0.0
        %679 = vmatmul.mubr.f32.gmra.mxu0 %v473
        %v680 = vpop.f32.mrf.mxu0
        %v681 = vadd.f32 %v400, %v680
        %v682 = vpop.f32.mrf.mxu0
        %683 = vmatprep.mubr.f32.mxu0 0.0
        %684 = vmatmul.mubr.f32.gmra.mxu0 %v476
        %v685 = vpop.f32.mrf.mxu0
        %v686 = vadd.f32 %v400, %v685
        %v687 = vpop.f32.mrf.mxu0
        %688 = vmatprep.mubr.f32.mxu0 0.0
        %689 = vmatmul.mubr.f32.gmra.mxu0 %v479
        %v690 = vpop.f32.mrf.mxu0
        %v691 = vadd.f32 %v400, %v690
        %v692 = vpop.f32.mrf.mxu0
        %693 = vmatprep.mubr.f32.mxu0 0.0
        %694 = vmatmul.mubr.f32.gmra.mxu0 %v482
        %v695 = vpop.f32.mrf.mxu0
        %v696 = vadd.f32 %v400, %v695
        %v697 = vpop.f32.mrf.mxu0
        %698 = vmatprep.mubr.f32.mxu0 0.0
        %699 = vmatmul.mubr.f32.gmra.mxu0 %v485
        %v700 = vpop.f32.mrf.mxu0
        %v701 = vadd.f32 %v400, %v700
        %v702 = vpop.f32.mrf.mxu0
        %703 = vmatprep.mubr.f32.mxu0 0.0
        %704 = vmatmul.mubr.f32.gmra.mxu0 %v488
        %v705 = vpop.f32.mrf.mxu0
        %v706 = vadd.f32 %v400, %v705
        %v707 = vpop.f32.mrf.mxu0
        %708 = vmatprep.mubr.f32.mxu0 0.0
        %709 = vmatmul.mubr.f32.gmra.mxu0 %v491
        %v710 = vpop.f32.mrf.mxu0
        %v711 = vadd.f32 %v400, %v710
        %v712 = vpop.f32.mrf.mxu0
        %713 = vmatprep.mubr.f32.mxu0 0.0
        %714 = vmatmul.mubr.f32.gmra.mxu0 %v494
        %v715 = vpop.f32.mrf.mxu0
        %v716 = vadd.f32 %v400, %v715
        %v717 = vpop.f32.mrf.mxu0
        %718 = vmatprep.mubr.f32.mxu0 0.0
        %719 = vmatmul.mubr.f32.gmra.mxu0 %v497
        %v720 = vpop.f32.mrf.mxu0
        %v721 = vadd.f32 %v400, %v720
        %v722 = vpop.f32.mrf.mxu0
        %723 = vdwg.mxu0
        %v724 = vlaneseq
        %v725 = vand.u32 %v724, 127
        %vm726 = vcmp.lt.s32.totalorder %v725, 32
        %v727 = vsel %vm726, %v566, 0.0
        %v728 = vsel %vm726, %v571, 0.0
        %v729 = vsel %vm726, %v576, 0.0
        %v730 = vsel %vm726, %v581, 0.0
        %v731 = vsel %vm726, %v586, 0.0
        %v732 = vsel %vm726, %v591, 0.0
        %v733 = vsel %vm726, %v596, 0.0
        %v734 = vsel %vm726, %v601, 0.0
        %v735 = vsel %vm726, %v606, 0.0
        %v736 = vsel %vm726, %v611, 0.0
        %v737 = vsel %vm726, %v616, 0.0
        %v738 = vsel %vm726, %v621, 0.0
        %v739 = vsel %vm726, %v626, 0.0
        %v740 = vsel %vm726, %v631, 0.0
        %v741 = vsel %vm726, %v636, 0.0
        %v742 = vsel %vm726, %v641, 0.0
        %v743 = vsel %vm726, %v646, 0.0
        %v744 = vsel %vm726, %v651, 0.0
        %v745 = vsel %vm726, %v656, 0.0
        %v746 = vsel %vm726, %v661, 0.0
        %v747 = vsel %vm726, %v666, 0.0
        %v748 = vsel %vm726, %v671, 0.0
        %v749 = vsel %vm726, %v676, 0.0
        %v750 = vsel %vm726, %v681, 0.0
        %v751 = vsel %vm726, %v686, 0.0
        %v752 = vsel %vm726, %v691, 0.0
        %v753 = vsel %vm726, %v696, 0.0
        %v754 = vsel %vm726, %v701, 0.0
        %v755 = vsel %vm726, %v706, 0.0
        %v756 = vsel %vm726, %v711, 0.0
        %v757 = vsel %vm726, %v716, 0.0
        %v758 = vsel %vm726, %v721, 0.0
        %v759 = vmul.f32 %v727, %v727
        %v760 = vmul.f32 %v728, %v728
        %v761 = vmul.f32 %v729, %v729
        %v762 = vmul.f32 %v730, %v730
        %v763 = vmul.f32 %v731, %v731
        %v764 = vmul.f32 %v732, %v732
        %v765 = vmul.f32 %v733, %v733
        %v766 = vmul.f32 %v734, %v734
        %v767 = vmul.f32 %v735, %v735
        %v768 = vmul.f32 %v736, %v736
        %v769 = vmul.f32 %v737, %v737
        %v770 = vmul.f32 %v738, %v738
        %v771 = vmul.f32 %v739, %v739
        %v772 = vmul.f32 %v740, %v740
        %v773 = vmul.f32 %v741, %v741
        %v774 = vmul.f32 %v742, %v742
        %v775 = vmul.f32 %v743, %v743
        %v776 = vmul.f32 %v744, %v744
        %v777 = vmul.f32 %v745, %v745
        %v778 = vmul.f32 %v746, %v746
        %v779 = vmul.f32 %v747, %v747
        %v780 = vmul.f32 %v748, %v748
        %v781 = vmul.f32 %v749, %v749
        %v782 = vmul.f32 %v750, %v750
        %v783 = vmul.f32 %v751, %v751
        %v784 = vmul.f32 %v752, %v752
        %v785 = vmul.f32 %v753, %v753
        %v786 = vmul.f32 %v754, %v754
        %v787 = vmul.f32 %v755, %v755
        %v788 = vmul.f32 %v756, %v756
        %v789 = vmul.f32 %v757, %v757
        %v790 = vmul.f32 %v758, %v758
        %791 = vadd.xlane.f32.xlu0 %v759
        %v792 = vpop.xlane.xlu0 %791
        %793 = vadd.xlane.f32.xlu0 %v760
        %v794 = vpop.xlane.xlu0 %793
        %795 = vadd.xlane.f32.xlu0 %v761
        %v796 = vpop.xlane.xlu0 %795
        %797 = vadd.xlane.f32.xlu0 %v762
        %v798 = vpop.xlane.xlu0 %797
        %799 = vadd.xlane.f32.xlu0 %v763
        %v800 = vpop.xlane.xlu0 %799
        %801 = vadd.xlane.f32.xlu0 %v764
        %v802 = vpop.xlane.xlu0 %801
        %803 = vadd.xlane.f32.xlu0 %v765
        %v804 = vpop.xlane.xlu0 %803
        %805 = vadd.xlane.f32.xlu0 %v766
        %v806 = vpop.xlane.xlu0 %805
        %807 = vadd.xlane.f32.xlu0 %v767
        %v808 = vpop.xlane.xlu0 %807
        %809 = vadd.xlane.f32.xlu0 %v768
        %v810 = vpop.xlane.xlu0 %809
        %811 = vadd.xlane.f32.xlu0 %v769
        %v812 = vpop.xlane.xlu0 %811
        %813 = vadd.xlane.f32.xlu0 %v770
        %v814 = vpop.xlane.xlu0 %813
        %815 = vadd.xlane.f32.xlu0 %v771
        %v816 = vpop.xlane.xlu0 %815
        %817 = vadd.xlane.f32.xlu0 %v772
        %v818 = vpop.xlane.xlu0 %817
        %819 = vadd.xlane.f32.xlu0 %v773
        %v820 = vpop.xlane.xlu0 %819
        %821 = vadd.xlane.f32.xlu0 %v774
        %v822 = vpop.xlane.xlu0 %821
        %823 = vadd.xlane.f32.xlu0 %v775
        %v824 = vpop.xlane.xlu0 %823
        %825 = vadd.xlane.f32.xlu0 %v776
        %v826 = vpop.xlane.xlu0 %825
        %827 = vadd.xlane.f32.xlu0 %v777
        %v828 = vpop.xlane.xlu0 %827
        %829 = vadd.xlane.f32.xlu0 %v778
        %v830 = vpop.xlane.xlu0 %829
        %831 = vadd.xlane.f32.xlu0 %v779
        %v832 = vpop.xlane.xlu0 %831
        %833 = vadd.xlane.f32.xlu0 %v780
        %v834 = vpop.xlane.xlu0 %833
        %835 = vadd.xlane.f32.xlu0 %v781
        %v836 = vpop.xlane.xlu0 %835
        %837 = vadd.xlane.f32.xlu0 %v782
        %v838 = vpop.xlane.xlu0 %837
        %839 = vadd.xlane.f32.xlu0 %v783
        %v840 = vpop.xlane.xlu0 %839
        %841 = vadd.xlane.f32.xlu0 %v784
        %v842 = vpop.xlane.xlu0 %841
        %843 = vadd.xlane.f32.xlu0 %v785
        %v844 = vpop.xlane.xlu0 %843
        %845 = vadd.xlane.f32.xlu0 %v786
        %v846 = vpop.xlane.xlu0 %845
        %847 = vadd.xlane.f32.xlu0 %v787
        %v848 = vpop.xlane.xlu0 %847
        %849 = vadd.xlane.f32.xlu0 %v788
        %v850 = vpop.xlane.xlu0 %849
        %851 = vadd.xlane.f32.xlu0 %v789
        %v852 = vpop.xlane.xlu0 %851
        %853 = vadd.xlane.f32.xlu0 %v790
        %v854 = vpop.xlane.xlu0 %853
        %v855 = vmax.f32 %v792, 1e-24
        %v856 = vmax.f32 %v794, 1e-24
        %v857 = vmax.f32 %v796, 1e-24
        %v858 = vmax.f32 %v798, 1e-24
        %v859 = vmax.f32 %v800, 1e-24
        %v860 = vmax.f32 %v802, 1e-24
        %v861 = vmax.f32 %v804, 1e-24
        %v862 = vmax.f32 %v806, 1e-24
        %v863 = vmax.f32 %v808, 1e-24
        %v864 = vmax.f32 %v810, 1e-24
        %v865 = vmax.f32 %v812, 1e-24
        %v866 = vmax.f32 %v814, 1e-24
        %v867 = vmax.f32 %v816, 1e-24
        %v868 = vmax.f32 %v818, 1e-24
        %v869 = vmax.f32 %v820, 1e-24
        %v870 = vmax.f32 %v822, 1e-24
        %v871 = vmax.f32 %v824, 1e-24
        %v872 = vmax.f32 %v826, 1e-24
        %v873 = vmax.f32 %v828, 1e-24
        %v874 = vmax.f32 %v830, 1e-24
        %v875 = vmax.f32 %v832, 1e-24
        %v876 = vmax.f32 %v834, 1e-24
        %v877 = vmax.f32 %v836, 1e-24
        %v878 = vmax.f32 %v838, 1e-24
        %v879 = vmax.f32 %v840, 1e-24
        %v880 = vmax.f32 %v842, 1e-24
        %v881 = vmax.f32 %v844, 1e-24
        %v882 = vmax.f32 %v846, 1e-24
        %v883 = vmax.f32 %v848, 1e-24
        %v884 = vmax.f32 %v850, 1e-24
        %v885 = vmax.f32 %v852, 1e-24
        %v886 = vmax.f32 %v854, 1e-24
        %v887 = vrsqrt.pop %v855
        %v888 = vrsqrt.pop %v856
        %v889 = vrsqrt.pop %v857
        %v890 = vrsqrt.pop %v858
        %v891 = vrsqrt.pop %v859
        %v892 = vrsqrt.pop %v860
        %v893 = vrsqrt.pop %v861
        %v894 = vrsqrt.pop %v862
        %v895 = vrsqrt.pop %v863
        %v896 = vrsqrt.pop %v864
        %v897 = vrsqrt.pop %v865
        %v898 = vrsqrt.pop %v866
        %v899 = vrsqrt.pop %v867
        %v900 = vrsqrt.pop %v868
        %v901 = vrsqrt.pop %v869
        %v902 = vrsqrt.pop %v870
        %v903 = vrsqrt.pop %v871
        %v904 = vrsqrt.pop %v872
        %v905 = vrsqrt.pop %v873
        %v906 = vrsqrt.pop %v874
        %v907 = vrsqrt.pop %v875
        %v908 = vrsqrt.pop %v876
        %v909 = vrsqrt.pop %v877
        %v910 = vrsqrt.pop %v878
        %v911 = vrsqrt.pop %v879
        %v912 = vrsqrt.pop %v880
        %v913 = vrsqrt.pop %v881
        %v914 = vrsqrt.pop %v882
        %v915 = vrsqrt.pop %v883
        %v916 = vrsqrt.pop %v884
        %v917 = vrsqrt.pop %v885
        %v918 = vrsqrt.pop %v886
        %v919 = vmul.f32 %v727, %v887
        %v920 = vmul.f32 %v728, %v888
        %v921 = vmul.f32 %v729, %v889
        %v922 = vmul.f32 %v730, %v890
        %v923 = vmul.f32 %v731, %v891
        %v924 = vmul.f32 %v732, %v892
        %v925 = vmul.f32 %v733, %v893
        %v926 = vmul.f32 %v734, %v894
        %v927 = vmul.f32 %v735, %v895
        %v928 = vmul.f32 %v736, %v896
        %v929 = vmul.f32 %v737, %v897
        %v930 = vmul.f32 %v738, %v898
        %v931 = vmul.f32 %v739, %v899
        %v932 = vmul.f32 %v740, %v900
        %v933 = vmul.f32 %v741, %v901
        %v934 = vmul.f32 %v742, %v902
        %v935 = vmul.f32 %v743, %v903
        %v936 = vmul.f32 %v744, %v904
        %v937 = vmul.f32 %v745, %v905
        %v938 = vmul.f32 %v746, %v906
        %v939 = vmul.f32 %v747, %v907
        %v940 = vmul.f32 %v748, %v908
        %v941 = vmul.f32 %v749, %v909
        %v942 = vmul.f32 %v750, %v910
        %v943 = vmul.f32 %v751, %v911
        %v944 = vmul.f32 %v752, %v912
        %v945 = vmul.f32 %v753, %v913
        %v946 = vmul.f32 %v754, %v914
        %v947 = vmul.f32 %v755, %v915
        %v948 = vmul.f32 %v756, %v916
        %v949 = vmul.f32 %v757, %v917
        %v950 = vmul.f32 %v758, %v918
        %vm951 = vcmp.eq.s32.totalorder %v725, 32
        %v952 = vsel %vm951, %v566, 0.0
        %v953 = vsel %vm951, %v571, 0.0
        %v954 = vsel %vm951, %v576, 0.0
        %v955 = vsel %vm951, %v581, 0.0
        %v956 = vsel %vm951, %v586, 0.0
        %v957 = vsel %vm951, %v591, 0.0
        %v958 = vsel %vm951, %v596, 0.0
        %v959 = vsel %vm951, %v601, 0.0
        %v960 = vsel %vm951, %v606, 0.0
        %v961 = vsel %vm951, %v611, 0.0
        %v962 = vsel %vm951, %v616, 0.0
        %v963 = vsel %vm951, %v621, 0.0
        %v964 = vsel %vm951, %v626, 0.0
        %v965 = vsel %vm951, %v631, 0.0
        %v966 = vsel %vm951, %v636, 0.0
        %v967 = vsel %vm951, %v641, 0.0
        %v968 = vsel %vm951, %v646, 0.0
        %v969 = vsel %vm951, %v651, 0.0
        %v970 = vsel %vm951, %v656, 0.0
        %v971 = vsel %vm951, %v661, 0.0
        %v972 = vsel %vm951, %v666, 0.0
        %v973 = vsel %vm951, %v671, 0.0
        %v974 = vsel %vm951, %v676, 0.0
        %v975 = vsel %vm951, %v681, 0.0
        %v976 = vsel %vm951, %v686, 0.0
        %v977 = vsel %vm951, %v691, 0.0
        %v978 = vsel %vm951, %v696, 0.0
        %v979 = vsel %vm951, %v701, 0.0
        %v980 = vsel %vm951, %v706, 0.0
        %v981 = vsel %vm951, %v711, 0.0
        %v982 = vsel %vm951, %v716, 0.0
        %v983 = vsel %vm951, %v721, 0.0
        %984 = vadd.xlane.f32.xlu0 %v952
        %v985 = vpop.xlane.xlu0 %984
        %986 = vadd.xlane.f32.xlu0 %v953
        %v987 = vpop.xlane.xlu0 %986
        %988 = vadd.xlane.f32.xlu0 %v954
        %v989 = vpop.xlane.xlu0 %988
        %990 = vadd.xlane.f32.xlu0 %v955
        %v991 = vpop.xlane.xlu0 %990
        %992 = vadd.xlane.f32.xlu0 %v956
        %v993 = vpop.xlane.xlu0 %992
        %994 = vadd.xlane.f32.xlu0 %v957
        %v995 = vpop.xlane.xlu0 %994
        %996 = vadd.xlane.f32.xlu0 %v958
        %v997 = vpop.xlane.xlu0 %996
        %998 = vadd.xlane.f32.xlu0 %v959
        %v999 = vpop.xlane.xlu0 %998
        %1000 = vadd.xlane.f32.xlu0 %v960
        %v1001 = vpop.xlane.xlu0 %1000
        %1002 = vadd.xlane.f32.xlu0 %v961
        %v1003 = vpop.xlane.xlu0 %1002
        %1004 = vadd.xlane.f32.xlu0 %v962
        %v1005 = vpop.xlane.xlu0 %1004
        %1006 = vadd.xlane.f32.xlu0 %v963
        %v1007 = vpop.xlane.xlu0 %1006
        %1008 = vadd.xlane.f32.xlu0 %v964
        %v1009 = vpop.xlane.xlu0 %1008
        %1010 = vadd.xlane.f32.xlu0 %v965
        %v1011 = vpop.xlane.xlu0 %1010
        %1012 = vadd.xlane.f32.xlu0 %v966
        %v1013 = vpop.xlane.xlu0 %1012
        %1014 = vadd.xlane.f32.xlu0 %v967
        %v1015 = vpop.xlane.xlu0 %1014
        %1016 = vadd.xlane.f32.xlu0 %v968
        %v1017 = vpop.xlane.xlu0 %1016
        %1018 = vadd.xlane.f32.xlu0 %v969
        %v1019 = vpop.xlane.xlu0 %1018
        %1020 = vadd.xlane.f32.xlu0 %v970
        %v1021 = vpop.xlane.xlu0 %1020
        %1022 = vadd.xlane.f32.xlu0 %v971
        %v1023 = vpop.xlane.xlu0 %1022
        %1024 = vadd.xlane.f32.xlu0 %v972
        %v1025 = vpop.xlane.xlu0 %1024
        %1026 = vadd.xlane.f32.xlu0 %v973
        %v1027 = vpop.xlane.xlu0 %1026
        %1028 = vadd.xlane.f32.xlu0 %v974
        %v1029 = vpop.xlane.xlu0 %1028
        %1030 = vadd.xlane.f32.xlu0 %v975
        %v1031 = vpop.xlane.xlu0 %1030
        %1032 = vadd.xlane.f32.xlu0 %v976
        %v1033 = vpop.xlane.xlu0 %1032
        %1034 = vadd.xlane.f32.xlu0 %v977
        %v1035 = vpop.xlane.xlu0 %1034
        %1036 = vadd.xlane.f32.xlu0 %v978
        %v1037 = vpop.xlane.xlu0 %1036
        %1038 = vadd.xlane.f32.xlu0 %v979
        %v1039 = vpop.xlane.xlu0 %1038
        %1040 = vadd.xlane.f32.xlu0 %v980
        %v1041 = vpop.xlane.xlu0 %1040
        %1042 = vadd.xlane.f32.xlu0 %v981
        %v1043 = vpop.xlane.xlu0 %1042
        %1044 = vadd.xlane.f32.xlu0 %v982
        %v1045 = vpop.xlane.xlu0 %1044
        %1046 = vadd.xlane.f32.xlu0 %v983
        %v1047 = vpop.xlane.xlu0 %1046
        %v1048 = vld [vmem:[%s352] sm:$0xff]
        %v1049 = vld [vmem:[%s352 + $0x8] sm:$0xff]
        %v1050 = vld [vmem:[%s352 + $0x10] sm:$0xff]
        %v1051 = vld [vmem:[%s352 + $0x18] sm:$0xff]
        %v1052 = vld [vmem:[%s352 + $0x20] sm:$0xff]
        %v1053 = vld [vmem:[%s352 + $0x28] sm:$0xff]
        %v1054 = vld [vmem:[%s352 + $0x30] sm:$0xff]
        %v1055 = vld [vmem:[%s352 + $0x38] sm:$0xff]
        %v1056 = vld [vmem:[%s352 + $0x40] sm:$0xff]
        %v1057 = vld [vmem:[%s352 + $0x48] sm:$0xff]
        %v1058 = vld [vmem:[%s352 + $0x50] sm:$0xff]
        %v1059 = vld [vmem:[%s352 + $0x58] sm:$0xff]
        %v1060 = vld [vmem:[%s352 + $0x60] sm:$0xff]
        %v1061 = vld [vmem:[%s352 + $0x68] sm:$0xff]
        %v1062 = vld [vmem:[%s352 + $0x70] sm:$0xff]
        %v1063 = vld [vmem:[%s352 + $0x78] sm:$0xff]
        %v1064 = vld [vmem:[%s352 + $0x80] sm:$0xff]
        %v1065 = vld [vmem:[%s352 + $0x88] sm:$0xff]
        %v1066 = vld [vmem:[%s352 + $0x90] sm:$0xff]
        %v1067 = vld [vmem:[%s352 + $0x98] sm:$0xff]
        %v1068 = vld [vmem:[%s352 + $0xa0] sm:$0xff]
        %v1069 = vld [vmem:[%s352 + $0xa8] sm:$0xff]
        %v1070 = vld [vmem:[%s352 + $0xb0] sm:$0xff]
        %v1071 = vld [vmem:[%s352 + $0xb8] sm:$0xff]
        %v1072 = vld [vmem:[%s352 + $0xc0] sm:$0xff]
        %v1073 = vld [vmem:[%s352 + $0xc8] sm:$0xff]
        %v1074 = vld [vmem:[%s352 + $0xd0] sm:$0xff]
        %v1075 = vld [vmem:[%s352 + $0xd8] sm:$0xff]
        %v1076 = vld [vmem:[%s352 + $0xe0] sm:$0xff]
        %v1077 = vld [vmem:[%s352 + $0xe8] sm:$0xff]
        %v1078 = vld [vmem:[%s352 + $0xf0] sm:$0xff]
        %v1079 = vld [vmem:[%s352 + $0xf8] sm:$0xff]
        %vm1080 = vcmp.ge.f32.partialorder %v1048, 0.5
        %vm1081 = vcmp.ge.f32.partialorder %v1049, 0.5
        %vm1082 = vcmp.ge.f32.partialorder %v1050, 0.5
        %vm1083 = vcmp.ge.f32.partialorder %v1051, 0.5
        %vm1084 = vcmp.ge.f32.partialorder %v1052, 0.5
        %vm1085 = vcmp.ge.f32.partialorder %v1053, 0.5
        %vm1086 = vcmp.ge.f32.partialorder %v1054, 0.5
        %vm1087 = vcmp.ge.f32.partialorder %v1055, 0.5
        %vm1088 = vcmp.ge.f32.partialorder %v1056, 0.5
        %vm1089 = vcmp.ge.f32.partialorder %v1057, 0.5
        %vm1090 = vcmp.ge.f32.partialorder %v1058, 0.5
        %vm1091 = vcmp.ge.f32.partialorder %v1059, 0.5
        %vm1092 = vcmp.ge.f32.partialorder %v1060, 0.5
        %vm1093 = vcmp.ge.f32.partialorder %v1061, 0.5
        %vm1094 = vcmp.ge.f32.partialorder %v1062, 0.5
        %vm1095 = vcmp.ge.f32.partialorder %v1063, 0.5
        %vm1096 = vcmp.ge.f32.partialorder %v1064, 0.5
        %vm1097 = vcmp.ge.f32.partialorder %v1065, 0.5
        %vm1098 = vcmp.ge.f32.partialorder %v1066, 0.5
        %vm1099 = vcmp.ge.f32.partialorder %v1067, 0.5
        %vm1100 = vcmp.ge.f32.partialorder %v1068, 0.5
        %vm1101 = vcmp.ge.f32.partialorder %v1069, 0.5
        %vm1102 = vcmp.ge.f32.partialorder %v1070, 0.5
        %vm1103 = vcmp.ge.f32.partialorder %v1071, 0.5
        %vm1104 = vcmp.ge.f32.partialorder %v1072, 0.5
        %vm1105 = vcmp.ge.f32.partialorder %v1073, 0.5
        %vm1106 = vcmp.ge.f32.partialorder %v1074, 0.5
        %vm1107 = vcmp.ge.f32.partialorder %v1075, 0.5
        %vm1108 = vcmp.ge.f32.partialorder %v1076, 0.5
        %vm1109 = vcmp.ge.f32.partialorder %v1077, 0.5
        %vm1110 = vcmp.ge.f32.partialorder %v1078, 0.5
        %vm1111 = vcmp.ge.f32.partialorder %v1079, 0.5
        %v1112 = vsel %vm1080, 1, 0
        %v1113 = vsel %vm1081, 1, 0
        %v1114 = vsel %vm1082, 1, 0
        %v1115 = vsel %vm1083, 1, 0
        %v1116 = vsel %vm1084, 1, 0
        %v1117 = vsel %vm1085, 1, 0
        %v1118 = vsel %vm1086, 1, 0
        %v1119 = vsel %vm1087, 1, 0
        %v1120 = vsel %vm1088, 1, 0
        %v1121 = vsel %vm1089, 1, 0
        %v1122 = vsel %vm1090, 1, 0
        %v1123 = vsel %vm1091, 1, 0
        %v1124 = vsel %vm1092, 1, 0
        %v1125 = vsel %vm1093, 1, 0
        %v1126 = vsel %vm1094, 1, 0
        %v1127 = vsel %vm1095, 1, 0
        %v1128 = vsel %vm1096, 1, 0
        %v1129 = vsel %vm1097, 1, 0
        %v1130 = vsel %vm1098, 1, 0
        %v1131 = vsel %vm1099, 1, 0
        %v1132 = vsel %vm1100, 1, 0
        %v1133 = vsel %vm1101, 1, 0
        %v1134 = vsel %vm1102, 1, 0
        %v1135 = vsel %vm1103, 1, 0
        %v1136 = vsel %vm1104, 1, 0
        %v1137 = vsel %vm1105, 1, 0
        %v1138 = vsel %vm1106, 1, 0
        %v1139 = vsel %vm1107, 1, 0
        %v1140 = vsel %vm1108, 1, 0
        %v1141 = vsel %vm1109, 1, 0
        %v1142 = vsel %vm1110, 1, 0
        %v1143 = vsel %vm1111, 1, 0
        %v1144 = vcvt.s32.f32 %v1112
        %v1145 = vcvt.s32.f32 %v1113
        %v1146 = vcvt.s32.f32 %v1114
        %v1147 = vcvt.s32.f32 %v1115
        %v1148 = vcvt.s32.f32 %v1116
        %v1149 = vcvt.s32.f32 %v1117
        %v1150 = vcvt.s32.f32 %v1118
        %v1151 = vcvt.s32.f32 %v1119
        %v1152 = vcvt.s32.f32 %v1120
        %v1153 = vcvt.s32.f32 %v1121
        %v1154 = vcvt.s32.f32 %v1122
        %v1155 = vcvt.s32.f32 %v1123
        %v1156 = vcvt.s32.f32 %v1124
        %v1157 = vcvt.s32.f32 %v1125
        %v1158 = vcvt.s32.f32 %v1126
        %v1159 = vcvt.s32.f32 %v1127
        %v1160 = vcvt.s32.f32 %v1128
        %v1161 = vcvt.s32.f32 %v1129
        %v1162 = vcvt.s32.f32 %v1130
        %v1163 = vcvt.s32.f32 %v1131
        %v1164 = vcvt.s32.f32 %v1132
        %v1165 = vcvt.s32.f32 %v1133
        %v1166 = vcvt.s32.f32 %v1134
        %v1167 = vcvt.s32.f32 %v1135
        %v1168 = vcvt.s32.f32 %v1136
        %v1169 = vcvt.s32.f32 %v1137
        %v1170 = vcvt.s32.f32 %v1138
        %v1171 = vcvt.s32.f32 %v1139
        %v1172 = vcvt.s32.f32 %v1140
        %v1173 = vcvt.s32.f32 %v1141
        %v1174 = vcvt.s32.f32 %v1142
        %v1175 = vcvt.s32.f32 %v1143
        %vm1176 = vcmp.ge.f32.partialorder %v985, 0.0
        %vm1177 = vcmp.ge.f32.partialorder %v987, 0.0
        %vm1178 = vcmp.ge.f32.partialorder %v989, 0.0
        %vm1179 = vcmp.ge.f32.partialorder %v991, 0.0
        %vm1180 = vcmp.ge.f32.partialorder %v993, 0.0
        %vm1181 = vcmp.ge.f32.partialorder %v995, 0.0
        %vm1182 = vcmp.ge.f32.partialorder %v997, 0.0
        %vm1183 = vcmp.ge.f32.partialorder %v999, 0.0
        %vm1184 = vcmp.ge.f32.partialorder %v1001, 0.0
        %vm1185 = vcmp.ge.f32.partialorder %v1003, 0.0
        %vm1186 = vcmp.ge.f32.partialorder %v1005, 0.0
        %vm1187 = vcmp.ge.f32.partialorder %v1007, 0.0
        %vm1188 = vcmp.ge.f32.partialorder %v1009, 0.0
        %vm1189 = vcmp.ge.f32.partialorder %v1011, 0.0
        %vm1190 = vcmp.ge.f32.partialorder %v1013, 0.0
        %vm1191 = vcmp.ge.f32.partialorder %v1015, 0.0
        %vm1192 = vcmp.ge.f32.partialorder %v1017, 0.0
        %vm1193 = vcmp.ge.f32.partialorder %v1019, 0.0
        %vm1194 = vcmp.ge.f32.partialorder %v1021, 0.0
        %vm1195 = vcmp.ge.f32.partialorder %v1023, 0.0
        %vm1196 = vcmp.ge.f32.partialorder %v1025, 0.0
        %vm1197 = vcmp.ge.f32.partialorder %v1027, 0.0
        %vm1198 = vcmp.ge.f32.partialorder %v1029, 0.0
        %vm1199 = vcmp.ge.f32.partialorder %v1031, 0.0
        %vm1200 = vcmp.ge.f32.partialorder %v1033, 0.0
        %vm1201 = vcmp.ge.f32.partialorder %v1035, 0.0
        %vm1202 = vcmp.ge.f32.partialorder %v1037, 0.0
        %vm1203 = vcmp.ge.f32.partialorder %v1039, 0.0
        %vm1204 = vcmp.ge.f32.partialorder %v1041, 0.0
        %vm1205 = vcmp.ge.f32.partialorder %v1043, 0.0
        %vm1206 = vcmp.ge.f32.partialorder %v1045, 0.0
        %vm1207 = vcmp.ge.f32.partialorder %v1047, 0.0
        %v1208 = vsel %vm1176, 1, 0
        %v1209 = vsel %vm1177, 1, 0
        %v1210 = vsel %vm1178, 1, 0
        %v1211 = vsel %vm1179, 1, 0
        %v1212 = vsel %vm1180, 1, 0
        %v1213 = vsel %vm1181, 1, 0
        %v1214 = vsel %vm1182, 1, 0
        %v1215 = vsel %vm1183, 1, 0
        %v1216 = vsel %vm1184, 1, 0
        %v1217 = vsel %vm1185, 1, 0
        %v1218 = vsel %vm1186, 1, 0
        %v1219 = vsel %vm1187, 1, 0
        %v1220 = vsel %vm1188, 1, 0
        %v1221 = vsel %vm1189, 1, 0
        %v1222 = vsel %vm1190, 1, 0
        %v1223 = vsel %vm1191, 1, 0
        %v1224 = vsel %vm1192, 1, 0
        %v1225 = vsel %vm1193, 1, 0
        %v1226 = vsel %vm1194, 1, 0
        %v1227 = vsel %vm1195, 1, 0
        %v1228 = vsel %vm1196, 1, 0
        %v1229 = vsel %vm1197, 1, 0
        %v1230 = vsel %vm1198, 1, 0
        %v1231 = vsel %vm1199, 1, 0
        %v1232 = vsel %vm1200, 1, 0
        %v1233 = vsel %vm1201, 1, 0
        %v1234 = vsel %vm1202, 1, 0
        %v1235 = vsel %vm1203, 1, 0
        %v1236 = vsel %vm1204, 1, 0
        %v1237 = vsel %vm1205, 1, 0
        %v1238 = vsel %vm1206, 1, 0
        %v1239 = vsel %vm1207, 1, 0
        %v1240 = vcvt.s32.f32 %v1208
        %v1241 = vcvt.s32.f32 %v1209
        %v1242 = vcvt.s32.f32 %v1210
        %v1243 = vcvt.s32.f32 %v1211
        %v1244 = vcvt.s32.f32 %v1212
        %v1245 = vcvt.s32.f32 %v1213
        %v1246 = vcvt.s32.f32 %v1214
        %v1247 = vcvt.s32.f32 %v1215
        %v1248 = vcvt.s32.f32 %v1216
        %v1249 = vcvt.s32.f32 %v1217
        %v1250 = vcvt.s32.f32 %v1218
        %v1251 = vcvt.s32.f32 %v1219
        %v1252 = vcvt.s32.f32 %v1220
        %v1253 = vcvt.s32.f32 %v1221
        %v1254 = vcvt.s32.f32 %v1222
        %v1255 = vcvt.s32.f32 %v1223
        %v1256 = vcvt.s32.f32 %v1224
        %v1257 = vcvt.s32.f32 %v1225
        %v1258 = vcvt.s32.f32 %v1226
        %v1259 = vcvt.s32.f32 %v1227
        %v1260 = vcvt.s32.f32 %v1228
        %v1261 = vcvt.s32.f32 %v1229
        %v1262 = vcvt.s32.f32 %v1230
        %v1263 = vcvt.s32.f32 %v1231
        %v1264 = vcvt.s32.f32 %v1232
        %v1265 = vcvt.s32.f32 %v1233
        %v1266 = vcvt.s32.f32 %v1234
        %v1267 = vcvt.s32.f32 %v1235
        %v1268 = vcvt.s32.f32 %v1236
        %v1269 = vcvt.s32.f32 %v1237
        %v1270 = vcvt.s32.f32 %v1238
        %v1271 = vcvt.s32.f32 %v1239
        %v1272 = vsub.f32 %v1144, %v1240
        %v1273 = vsub.f32 %v1145, %v1241
        %v1274 = vsub.f32 %v1146, %v1242
        %v1275 = vsub.f32 %v1147, %v1243
        %v1276 = vsub.f32 %v1148, %v1244
        %v1277 = vsub.f32 %v1149, %v1245
        %v1278 = vsub.f32 %v1150, %v1246
        %v1279 = vsub.f32 %v1151, %v1247
        %v1280 = vsub.f32 %v1152, %v1248
        %v1281 = vsub.f32 %v1153, %v1249
        %v1282 = vsub.f32 %v1154, %v1250
        %v1283 = vsub.f32 %v1155, %v1251
        %v1284 = vsub.f32 %v1156, %v1252
        %v1285 = vsub.f32 %v1157, %v1253
        %v1286 = vsub.f32 %v1158, %v1254
        %v1287 = vsub.f32 %v1159, %v1255
        %v1288 = vsub.f32 %v1160, %v1256
        %v1289 = vsub.f32 %v1161, %v1257
        %v1290 = vsub.f32 %v1162, %v1258
        %v1291 = vsub.f32 %v1163, %v1259
        %v1292 = vsub.f32 %v1164, %v1260
        %v1293 = vsub.f32 %v1165, %v1261
        %v1294 = vsub.f32 %v1166, %v1262
        %v1295 = vsub.f32 %v1167, %v1263
        %v1296 = vsub.f32 %v1168, %v1264
        %v1297 = vsub.f32 %v1169, %v1265
        %v1298 = vsub.f32 %v1170, %v1266
        %v1299 = vsub.f32 %v1171, %v1267
        %v1300 = vsub.f32 %v1172, %v1268
        %v1301 = vsub.f32 %v1173, %v1269
        %v1302 = vsub.f32 %v1174, %v1270
        %v1303 = vsub.f32 %v1175, %v1271
        %v1304 = vmul.f32 %v985, %v1272
        %v1305 = vmul.f32 %v987, %v1273
        %v1306 = vmul.f32 %v989, %v1274
        %v1307 = vmul.f32 %v991, %v1275
        %v1308 = vmul.f32 %v993, %v1276
        %v1309 = vmul.f32 %v995, %v1277
        %v1310 = vmul.f32 %v997, %v1278
        %v1311 = vmul.f32 %v999, %v1279
        %v1312 = vmul.f32 %v1001, %v1280
        %v1313 = vmul.f32 %v1003, %v1281
        %v1314 = vmul.f32 %v1005, %v1282
        %v1315 = vmul.f32 %v1007, %v1283
        %v1316 = vmul.f32 %v1009, %v1284
        %v1317 = vmul.f32 %v1011, %v1285
        %v1318 = vmul.f32 %v1013, %v1286
        %v1319 = vmul.f32 %v1015, %v1287
        %v1320 = vmul.f32 %v1017, %v1288
        %v1321 = vmul.f32 %v1019, %v1289
        %v1322 = vmul.f32 %v1021, %v1290
        %v1323 = vmul.f32 %v1023, %v1291
        %v1324 = vmul.f32 %v1025, %v1292
        %v1325 = vmul.f32 %v1027, %v1293
        %v1326 = vmul.f32 %v1029, %v1294
        %v1327 = vmul.f32 %v1031, %v1295
        %v1328 = vmul.f32 %v1033, %v1296
        %v1329 = vmul.f32 %v1035, %v1297
        %v1330 = vmul.f32 %v1037, %v1298
        %v1331 = vmul.f32 %v1039, %v1299
        %v1332 = vmul.f32 %v1041, %v1300
        %v1333 = vmul.f32 %v1043, %v1301
        %v1334 = vmul.f32 %v1045, %v1302
        %v1335 = vmul.f32 %v1047, %v1303
        %v1336 = vmul.f32 %v985, 2.0
        %v1337 = vmul.f32 %v987, 2.0
        %v1338 = vmul.f32 %v989, 2.0
        %v1339 = vmul.f32 %v991, 2.0
        %v1340 = vmul.f32 %v993, 2.0
        %v1341 = vmul.f32 %v995, 2.0
        %v1342 = vmul.f32 %v997, 2.0
        %v1343 = vmul.f32 %v999, 2.0
        %v1344 = vmul.f32 %v1001, 2.0
        %v1345 = vmul.f32 %v1003, 2.0
        %v1346 = vmul.f32 %v1005, 2.0
        %v1347 = vmul.f32 %v1007, 2.0
        %v1348 = vmul.f32 %v1009, 2.0
        %v1349 = vmul.f32 %v1011, 2.0
        %v1350 = vmul.f32 %v1013, 2.0
        %v1351 = vmul.f32 %v1015, 2.0
        %v1352 = vmul.f32 %v1017, 2.0
        %v1353 = vmul.f32 %v1019, 2.0
        %v1354 = vmul.f32 %v1021, 2.0
        %v1355 = vmul.f32 %v1023, 2.0
        %v1356 = vmul.f32 %v1025, 2.0
        %v1357 = vmul.f32 %v1027, 2.0
        %v1358 = vmul.f32 %v1029, 2.0
        %v1359 = vmul.f32 %v1031, 2.0
        %v1360 = vmul.f32 %v1033, 2.0
        %v1361 = vmul.f32 %v1035, 2.0
        %v1362 = vmul.f32 %v1037, 2.0
        %v1363 = vmul.f32 %v1039, 2.0
        %v1364 = vmul.f32 %v1041, 2.0
        %v1365 = vmul.f32 %v1043, 2.0
        %v1366 = vmul.f32 %v1045, 2.0
        %v1367 = vmul.f32 %v1047, 2.0
        %v1368 = vmul.f32 %v1336, %v1240
        %v1369 = vmul.f32 %v1337, %v1241
        %v1370 = vmul.f32 %v1338, %v1242
        %v1371 = vmul.f32 %v1339, %v1243
        %v1372 = vmul.f32 %v1340, %v1244
        %v1373 = vmul.f32 %v1341, %v1245
        %v1374 = vmul.f32 %v1342, %v1246
        %v1375 = vmul.f32 %v1343, %v1247
        %v1376 = vmul.f32 %v1344, %v1248
        %v1377 = vmul.f32 %v1345, %v1249
        %v1378 = vmul.f32 %v1346, %v1250
        %v1379 = vmul.f32 %v1347, %v1251
        %v1380 = vmul.f32 %v1348, %v1252
        %v1381 = vmul.f32 %v1349, %v1253
        %v1382 = vmul.f32 %v1350, %v1254
        %v1383 = vmul.f32 %v1351, %v1255
        %v1384 = vmul.f32 %v1352, %v1256
        %v1385 = vmul.f32 %v1353, %v1257
        %v1386 = vmul.f32 %v1354, %v1258
        %v1387 = vmul.f32 %v1355, %v1259
        %v1388 = vmul.f32 %v1356, %v1260
        %v1389 = vmul.f32 %v1357, %v1261
        %v1390 = vmul.f32 %v1358, %v1262
        %v1391 = vmul.f32 %v1359, %v1263
        %v1392 = vmul.f32 %v1360, %v1264
        %v1393 = vmul.f32 %v1361, %v1265
        %v1394 = vmul.f32 %v1362, %v1266
        %v1395 = vmul.f32 %v1363, %v1267
        %v1396 = vmul.f32 %v1364, %v1268
        %v1397 = vmul.f32 %v1365, %v1269
        %v1398 = vmul.f32 %v1366, %v1270
        %v1399 = vmul.f32 %v1367, %v1271
        %v1400 = vsub.f32 %v985, %v1368
        %v1401 = vsub.f32 %v987, %v1369
        %v1402 = vsub.f32 %v989, %v1370
        %v1403 = vsub.f32 %v991, %v1371
        %v1404 = vsub.f32 %v993, %v1372
        %v1405 = vsub.f32 %v995, %v1373
        %v1406 = vsub.f32 %v997, %v1374
        %v1407 = vsub.f32 %v999, %v1375
        %v1408 = vsub.f32 %v1001, %v1376
        %v1409 = vsub.f32 %v1003, %v1377
        %v1410 = vsub.f32 %v1005, %v1378
        %v1411 = vsub.f32 %v1007, %v1379
        %v1412 = vsub.f32 %v1009, %v1380
        %v1413 = vsub.f32 %v1011, %v1381
        %v1414 = vsub.f32 %v1013, %v1382
        %v1415 = vsub.f32 %v1015, %v1383
        %v1416 = vsub.f32 %v1017, %v1384
        %v1417 = vsub.f32 %v1019, %v1385
        %v1418 = vsub.f32 %v1021, %v1386
        %v1419 = vsub.f32 %v1023, %v1387
        %v1420 = vsub.f32 %v1025, %v1388
        %v1421 = vsub.f32 %v1027, %v1389
        %v1422 = vsub.f32 %v1029, %v1390
        %v1423 = vsub.f32 %v1031, %v1391
        %v1424 = vsub.f32 %v1033, %v1392
        %v1425 = vsub.f32 %v1035, %v1393
        %v1426 = vsub.f32 %v1037, %v1394
        %v1427 = vsub.f32 %v1039, %v1395
        %v1428 = vsub.f32 %v1041, %v1396
        %v1429 = vsub.f32 %v1043, %v1397
        %v1430 = vsub.f32 %v1045, %v1398
        %v1431 = vsub.f32 %v1047, %v1399
        %v1432 = vmul.f32 %v1400, 1.442695
        %v1433 = vpow.pop %v1432
        %v1434 = vmul.f32 %v1401, 1.442695
        %v1435 = vpow.pop %v1434
        %v1436 = vmul.f32 %v1402, 1.442695
        %v1437 = vpow.pop %v1436
        %v1438 = vmul.f32 %v1403, 1.442695
        %v1439 = vpow.pop %v1438
        %v1440 = vmul.f32 %v1404, 1.442695
        %v1441 = vpow.pop %v1440
        %v1442 = vmul.f32 %v1405, 1.442695
        %v1443 = vpow.pop %v1442
        %v1444 = vmul.f32 %v1406, 1.442695
        %v1445 = vpow.pop %v1444
        %v1446 = vmul.f32 %v1407, 1.442695
        %v1447 = vpow.pop %v1446
        %v1448 = vmul.f32 %v1408, 1.442695
        %v1449 = vpow.pop %v1448
        %v1450 = vmul.f32 %v1409, 1.442695
        %v1451 = vpow.pop %v1450
        %v1452 = vmul.f32 %v1410, 1.442695
        %v1453 = vpow.pop %v1452
        %v1454 = vmul.f32 %v1411, 1.442695
        %v1455 = vpow.pop %v1454
        %v1456 = vmul.f32 %v1412, 1.442695
        %v1457 = vpow.pop %v1456
        %v1458 = vmul.f32 %v1413, 1.442695
        %v1459 = vpow.pop %v1458
        %v1460 = vmul.f32 %v1414, 1.442695
        %v1461 = vpow.pop %v1460
        %v1462 = vmul.f32 %v1415, 1.442695
        %v1463 = vpow.pop %v1462
        %v1464 = vmul.f32 %v1416, 1.442695
        %v1465 = vpow.pop %v1464
        %v1466 = vmul.f32 %v1417, 1.442695
        %v1467 = vpow.pop %v1466
        %v1468 = vmul.f32 %v1418, 1.442695
        %v1469 = vpow.pop %v1468
        %v1470 = vmul.f32 %v1419, 1.442695
        %v1471 = vpow.pop %v1470
        %v1472 = vmul.f32 %v1420, 1.442695
        %v1473 = vpow.pop %v1472
        %v1474 = vmul.f32 %v1421, 1.442695
        %v1475 = vpow.pop %v1474
        %v1476 = vmul.f32 %v1422, 1.442695
        %v1477 = vpow.pop %v1476
        %v1478 = vmul.f32 %v1423, 1.442695
        %v1479 = vpow.pop %v1478
        %v1480 = vmul.f32 %v1424, 1.442695
        %v1481 = vpow.pop %v1480
        %v1482 = vmul.f32 %v1425, 1.442695
        %v1483 = vpow.pop %v1482
        %v1484 = vmul.f32 %v1426, 1.442695
        %v1485 = vpow.pop %v1484
        %v1486 = vmul.f32 %v1427, 1.442695
        %v1487 = vpow.pop %v1486
        %v1488 = vmul.f32 %v1428, 1.442695
        %v1489 = vpow.pop %v1488
        %v1490 = vmul.f32 %v1429, 1.442695
        %v1491 = vpow.pop %v1490
        %v1492 = vmul.f32 %v1430, 1.442695
        %v1493 = vpow.pop %v1492
        %v1494 = vmul.f32 %v1431, 1.442695
        %v1495 = vpow.pop %v1494
        %v1496 = vadd.f32 %v1433, 1.0
        %v1497 = vlog2.pop %v1496
        %v1498 = vmul.f32 %v1497, 0.6931472
        %v1499 = vmul.f32 -0.5, %v1433
        %v1500 = vadd.f32 %v1499, 1.0
        %v1501 = vmul.f32 %v1500, %v1433
        %v1502 = vand.u32 2147483647, %v1433
        %vm1503 = vcmp.lt.f32.partialorder %v1502, 0.0004427343
        %v1504 = vsel %vm1503, %v1501, %v1498
        %v1505 = vadd.f32 %v1435, 1.0
        %v1506 = vlog2.pop %v1505
        %v1507 = vmul.f32 %v1506, 0.6931472
        %v1508 = vmul.f32 -0.5, %v1435
        %v1509 = vadd.f32 %v1508, 1.0
        %v1510 = vmul.f32 %v1509, %v1435
        %v1511 = vand.u32 2147483647, %v1435
        %vm1512 = vcmp.lt.f32.partialorder %v1511, 0.0004427343
        %v1513 = vsel %vm1512, %v1510, %v1507
        %v1514 = vadd.f32 %v1437, 1.0
        %v1515 = vlog2.pop %v1514
        %v1516 = vmul.f32 %v1515, 0.6931472
        %v1517 = vmul.f32 -0.5, %v1437
        %v1518 = vadd.f32 %v1517, 1.0
        %v1519 = vmul.f32 %v1518, %v1437
        %v1520 = vand.u32 2147483647, %v1437
        %vm1521 = vcmp.lt.f32.partialorder %v1520, 0.0004427343
        %v1522 = vsel %vm1521, %v1519, %v1516
        %v1523 = vadd.f32 %v1439, 1.0
        %v1524 = vlog2.pop %v1523
        %v1525 = vmul.f32 %v1524, 0.6931472
        %v1526 = vmul.f32 -0.5, %v1439
        %v1527 = vadd.f32 %v1526, 1.0
        %v1528 = vmul.f32 %v1527, %v1439
        %v1529 = vand.u32 2147483647, %v1439
        %vm1530 = vcmp.lt.f32.partialorder %v1529, 0.0004427343
        %v1531 = vsel %vm1530, %v1528, %v1525
        %v1532 = vadd.f32 %v1441, 1.0
        %v1533 = vlog2.pop %v1532
        %v1534 = vmul.f32 %v1533, 0.6931472
        %v1535 = vmul.f32 -0.5, %v1441
        %v1536 = vadd.f32 %v1535, 1.0
        %v1537 = vmul.f32 %v1536, %v1441
        %v1538 = vand.u32 2147483647, %v1441
        %vm1539 = vcmp.lt.f32.partialorder %v1538, 0.0004427343
        %v1540 = vsel %vm1539, %v1537, %v1534
        %v1541 = vadd.f32 %v1443, 1.0
        %v1542 = vlog2.pop %v1541
        %v1543 = vmul.f32 %v1542, 0.6931472
        %v1544 = vmul.f32 -0.5, %v1443
        %v1545 = vadd.f32 %v1544, 1.0
        %v1546 = vmul.f32 %v1545, %v1443
        %v1547 = vand.u32 2147483647, %v1443
        %vm1548 = vcmp.lt.f32.partialorder %v1547, 0.0004427343
        %v1549 = vsel %vm1548, %v1546, %v1543
        %v1550 = vadd.f32 %v1445, 1.0
        %v1551 = vlog2.pop %v1550
        %v1552 = vmul.f32 %v1551, 0.6931472
        %v1553 = vmul.f32 -0.5, %v1445
        %v1554 = vadd.f32 %v1553, 1.0
        %v1555 = vmul.f32 %v1554, %v1445
        %v1556 = vand.u32 2147483647, %v1445
        %vm1557 = vcmp.lt.f32.partialorder %v1556, 0.0004427343
        %v1558 = vsel %vm1557, %v1555, %v1552
        %v1559 = vadd.f32 %v1447, 1.0
        %v1560 = vlog2.pop %v1559
        %v1561 = vmul.f32 %v1560, 0.6931472
        %v1562 = vmul.f32 -0.5, %v1447
        %v1563 = vadd.f32 %v1562, 1.0
        %v1564 = vmul.f32 %v1563, %v1447
        %v1565 = vand.u32 2147483647, %v1447
        %vm1566 = vcmp.lt.f32.partialorder %v1565, 0.0004427343
        %v1567 = vsel %vm1566, %v1564, %v1561
        %v1568 = vadd.f32 %v1449, 1.0
        %v1569 = vlog2.pop %v1568
        %v1570 = vmul.f32 %v1569, 0.6931472
        %v1571 = vmul.f32 -0.5, %v1449
        %v1572 = vadd.f32 %v1571, 1.0
        %v1573 = vmul.f32 %v1572, %v1449
        %v1574 = vand.u32 2147483647, %v1449
        %vm1575 = vcmp.lt.f32.partialorder %v1574, 0.0004427343
        %v1576 = vsel %vm1575, %v1573, %v1570
        %v1577 = vadd.f32 %v1451, 1.0
        %v1578 = vlog2.pop %v1577
        %v1579 = vmul.f32 %v1578, 0.6931472
        %v1580 = vmul.f32 -0.5, %v1451
        %v1581 = vadd.f32 %v1580, 1.0
        %v1582 = vmul.f32 %v1581, %v1451
        %v1583 = vand.u32 2147483647, %v1451
        %vm1584 = vcmp.lt.f32.partialorder %v1583, 0.0004427343
        %v1585 = vsel %vm1584, %v1582, %v1579
        %v1586 = vadd.f32 %v1453, 1.0
        %v1587 = vlog2.pop %v1586
        %v1588 = vmul.f32 %v1587, 0.6931472
        %v1589 = vmul.f32 -0.5, %v1453
        %v1590 = vadd.f32 %v1589, 1.0
        %v1591 = vmul.f32 %v1590, %v1453
        %v1592 = vand.u32 2147483647, %v1453
        %vm1593 = vcmp.lt.f32.partialorder %v1592, 0.0004427343
        %v1594 = vsel %vm1593, %v1591, %v1588
        %v1595 = vadd.f32 %v1455, 1.0
        %v1596 = vlog2.pop %v1595
        %v1597 = vmul.f32 %v1596, 0.6931472
        %v1598 = vmul.f32 -0.5, %v1455
        %v1599 = vadd.f32 %v1598, 1.0
        %v1600 = vmul.f32 %v1599, %v1455
        %v1601 = vand.u32 2147483647, %v1455
        %vm1602 = vcmp.lt.f32.partialorder %v1601, 0.0004427343
        %v1603 = vsel %vm1602, %v1600, %v1597
        %v1604 = vadd.f32 %v1457, 1.0
        %v1605 = vlog2.pop %v1604
        %v1606 = vmul.f32 %v1605, 0.6931472
        %v1607 = vmul.f32 -0.5, %v1457
        %v1608 = vadd.f32 %v1607, 1.0
        %v1609 = vmul.f32 %v1608, %v1457
        %v1610 = vand.u32 2147483647, %v1457
        %vm1611 = vcmp.lt.f32.partialorder %v1610, 0.0004427343
        %v1612 = vsel %vm1611, %v1609, %v1606
        %v1613 = vadd.f32 %v1459, 1.0
        %v1614 = vlog2.pop %v1613
        %v1615 = vmul.f32 %v1614, 0.6931472
        %v1616 = vmul.f32 -0.5, %v1459
        %v1617 = vadd.f32 %v1616, 1.0
        %v1618 = vmul.f32 %v1617, %v1459
        %v1619 = vand.u32 2147483647, %v1459
        %vm1620 = vcmp.lt.f32.partialorder %v1619, 0.0004427343
        %v1621 = vsel %vm1620, %v1618, %v1615
        %v1622 = vadd.f32 %v1461, 1.0
        %v1623 = vlog2.pop %v1622
        %v1624 = vmul.f32 %v1623, 0.6931472
        %v1625 = vmul.f32 -0.5, %v1461
        %v1626 = vadd.f32 %v1625, 1.0
        %v1627 = vmul.f32 %v1626, %v1461
        %v1628 = vand.u32 2147483647, %v1461
        %vm1629 = vcmp.lt.f32.partialorder %v1628, 0.0004427343
        %v1630 = vsel %vm1629, %v1627, %v1624
        %v1631 = vadd.f32 %v1463, 1.0
        %v1632 = vlog2.pop %v1631
        %v1633 = vmul.f32 %v1632, 0.6931472
        %v1634 = vmul.f32 -0.5, %v1463
        %v1635 = vadd.f32 %v1634, 1.0
        %v1636 = vmul.f32 %v1635, %v1463
        %v1637 = vand.u32 2147483647, %v1463
        %vm1638 = vcmp.lt.f32.partialorder %v1637, 0.0004427343
        %v1639 = vsel %vm1638, %v1636, %v1633
        %v1640 = vadd.f32 %v1465, 1.0
        %v1641 = vlog2.pop %v1640
        %v1642 = vmul.f32 %v1641, 0.6931472
        %v1643 = vmul.f32 -0.5, %v1465
        %v1644 = vadd.f32 %v1643, 1.0
        %v1645 = vmul.f32 %v1644, %v1465
        %v1646 = vand.u32 2147483647, %v1465
        %vm1647 = vcmp.lt.f32.partialorder %v1646, 0.0004427343
        %v1648 = vsel %vm1647, %v1645, %v1642
        %v1649 = vadd.f32 %v1467, 1.0
        %v1650 = vlog2.pop %v1649
        %v1651 = vmul.f32 %v1650, 0.6931472
        %v1652 = vmul.f32 -0.5, %v1467
        %v1653 = vadd.f32 %v1652, 1.0
        %v1654 = vmul.f32 %v1653, %v1467
        %v1655 = vand.u32 2147483647, %v1467
        %vm1656 = vcmp.lt.f32.partialorder %v1655, 0.0004427343
        %v1657 = vsel %vm1656, %v1654, %v1651
        %v1658 = vadd.f32 %v1469, 1.0
        %v1659 = vlog2.pop %v1658
        %v1660 = vmul.f32 %v1659, 0.6931472
        %v1661 = vmul.f32 -0.5, %v1469
        %v1662 = vadd.f32 %v1661, 1.0
        %v1663 = vmul.f32 %v1662, %v1469
        %v1664 = vand.u32 2147483647, %v1469
        %vm1665 = vcmp.lt.f32.partialorder %v1664, 0.0004427343
        %v1666 = vsel %vm1665, %v1663, %v1660
        %v1667 = vadd.f32 %v1471, 1.0
        %v1668 = vlog2.pop %v1667
        %v1669 = vmul.f32 %v1668, 0.6931472
        %v1670 = vmul.f32 -0.5, %v1471
        %v1671 = vadd.f32 %v1670, 1.0
        %v1672 = vmul.f32 %v1671, %v1471
        %v1673 = vand.u32 2147483647, %v1471
        %vm1674 = vcmp.lt.f32.partialorder %v1673, 0.0004427343
        %v1675 = vsel %vm1674, %v1672, %v1669
        %v1676 = vadd.f32 %v1473, 1.0
        %v1677 = vlog2.pop %v1676
        %v1678 = vmul.f32 %v1677, 0.6931472
        %v1679 = vmul.f32 -0.5, %v1473
        %v1680 = vadd.f32 %v1679, 1.0
        %v1681 = vmul.f32 %v1680, %v1473
        %v1682 = vand.u32 2147483647, %v1473
        %vm1683 = vcmp.lt.f32.partialorder %v1682, 0.0004427343
        %v1684 = vsel %vm1683, %v1681, %v1678
        %v1685 = vadd.f32 %v1475, 1.0
        %v1686 = vlog2.pop %v1685
        %v1687 = vmul.f32 %v1686, 0.6931472
        %v1688 = vmul.f32 -0.5, %v1475
        %v1689 = vadd.f32 %v1688, 1.0
        %v1690 = vmul.f32 %v1689, %v1475
        %v1691 = vand.u32 2147483647, %v1475
        %vm1692 = vcmp.lt.f32.partialorder %v1691, 0.0004427343
        %v1693 = vsel %vm1692, %v1690, %v1687
        %v1694 = vadd.f32 %v1477, 1.0
        %v1695 = vlog2.pop %v1694
        %v1696 = vmul.f32 %v1695, 0.6931472
        %v1697 = vmul.f32 -0.5, %v1477
        %v1698 = vadd.f32 %v1697, 1.0
        %v1699 = vmul.f32 %v1698, %v1477
        %v1700 = vand.u32 2147483647, %v1477
        %vm1701 = vcmp.lt.f32.partialorder %v1700, 0.0004427343
        %v1702 = vsel %vm1701, %v1699, %v1696
        %v1703 = vadd.f32 %v1479, 1.0
        %v1704 = vlog2.pop %v1703
        %v1705 = vmul.f32 %v1704, 0.6931472
        %v1706 = vmul.f32 -0.5, %v1479
        %v1707 = vadd.f32 %v1706, 1.0
        %v1708 = vmul.f32 %v1707, %v1479
        %v1709 = vand.u32 2147483647, %v1479
        %vm1710 = vcmp.lt.f32.partialorder %v1709, 0.0004427343
        %v1711 = vsel %vm1710, %v1708, %v1705
        %v1712 = vadd.f32 %v1481, 1.0
        %v1713 = vlog2.pop %v1712
        %v1714 = vmul.f32 %v1713, 0.6931472
        %v1715 = vmul.f32 -0.5, %v1481
        %v1716 = vadd.f32 %v1715, 1.0
        %v1717 = vmul.f32 %v1716, %v1481
        %v1718 = vand.u32 2147483647, %v1481
        %vm1719 = vcmp.lt.f32.partialorder %v1718, 0.0004427343
        %v1720 = vsel %vm1719, %v1717, %v1714
        %v1721 = vadd.f32 %v1483, 1.0
        %v1722 = vlog2.pop %v1721
        %v1723 = vmul.f32 %v1722, 0.6931472
        %v1724 = vmul.f32 -0.5, %v1483
        %v1725 = vadd.f32 %v1724, 1.0
        %v1726 = vmul.f32 %v1725, %v1483
        %v1727 = vand.u32 2147483647, %v1483
        %vm1728 = vcmp.lt.f32.partialorder %v1727, 0.0004427343
        %v1729 = vsel %vm1728, %v1726, %v1723
        %v1730 = vadd.f32 %v1485, 1.0
        %v1731 = vlog2.pop %v1730
        %v1732 = vmul.f32 %v1731, 0.6931472
        %v1733 = vmul.f32 -0.5, %v1485
        %v1734 = vadd.f32 %v1733, 1.0
        %v1735 = vmul.f32 %v1734, %v1485
        %v1736 = vand.u32 2147483647, %v1485
        %vm1737 = vcmp.lt.f32.partialorder %v1736, 0.0004427343
        %v1738 = vsel %vm1737, %v1735, %v1732
        %v1739 = vadd.f32 %v1487, 1.0
        %v1740 = vlog2.pop %v1739
        %v1741 = vmul.f32 %v1740, 0.6931472
        %v1742 = vmul.f32 -0.5, %v1487
        %v1743 = vadd.f32 %v1742, 1.0
        %v1744 = vmul.f32 %v1743, %v1487
        %v1745 = vand.u32 2147483647, %v1487
        %vm1746 = vcmp.lt.f32.partialorder %v1745, 0.0004427343
        %v1747 = vsel %vm1746, %v1744, %v1741
        %v1748 = vadd.f32 %v1489, 1.0
        %v1749 = vlog2.pop %v1748
        %v1750 = vmul.f32 %v1749, 0.6931472
        %v1751 = vmul.f32 -0.5, %v1489
        %v1752 = vadd.f32 %v1751, 1.0
        %v1753 = vmul.f32 %v1752, %v1489
        %v1754 = vand.u32 2147483647, %v1489
        %vm1755 = vcmp.lt.f32.partialorder %v1754, 0.0004427343
        %v1756 = vsel %vm1755, %v1753, %v1750
        %v1757 = vadd.f32 %v1491, 1.0
        %v1758 = vlog2.pop %v1757
        %v1759 = vmul.f32 %v1758, 0.6931472
        %v1760 = vmul.f32 -0.5, %v1491
        %v1761 = vadd.f32 %v1760, 1.0
        %v1762 = vmul.f32 %v1761, %v1491
        %v1763 = vand.u32 2147483647, %v1491
        %vm1764 = vcmp.lt.f32.partialorder %v1763, 0.0004427343
        %v1765 = vsel %vm1764, %v1762, %v1759
        %v1766 = vadd.f32 %v1493, 1.0
        %v1767 = vlog2.pop %v1766
        %v1768 = vmul.f32 %v1767, 0.6931472
        %v1769 = vmul.f32 -0.5, %v1493
        %v1770 = vadd.f32 %v1769, 1.0
        %v1771 = vmul.f32 %v1770, %v1493
        %v1772 = vand.u32 2147483647, %v1493
        %vm1773 = vcmp.lt.f32.partialorder %v1772, 0.0004427343
        %v1774 = vsel %vm1773, %v1771, %v1768
        %v1775 = vadd.f32 %v1495, 1.0
        %v1776 = vlog2.pop %v1775
        %v1777 = vmul.f32 %v1776, 0.6931472
        %v1778 = vmul.f32 -0.5, %v1495
        %v1779 = vadd.f32 %v1778, 1.0
        %v1780 = vmul.f32 %v1779, %v1495
        %v1781 = vand.u32 2147483647, %v1495
        %vm1782 = vcmp.lt.f32.partialorder %v1781, 0.0004427343
        %v1783 = vsel %vm1782, %v1780, %v1777
        %v1784 = vsub.f32 %v1304, %v1504
        %v1785 = vsub.f32 %v1305, %v1513
        %v1786 = vsub.f32 %v1306, %v1522
        %v1787 = vsub.f32 %v1307, %v1531
        %v1788 = vsub.f32 %v1308, %v1540
        %v1789 = vsub.f32 %v1309, %v1549
        %v1790 = vsub.f32 %v1310, %v1558
        %v1791 = vsub.f32 %v1311, %v1567
        %v1792 = vsub.f32 %v1312, %v1576
        %v1793 = vsub.f32 %v1313, %v1585
        %v1794 = vsub.f32 %v1314, %v1594
        %v1795 = vsub.f32 %v1315, %v1603
        %v1796 = vsub.f32 %v1316, %v1612
        %v1797 = vsub.f32 %v1317, %v1621
        %v1798 = vsub.f32 %v1318, %v1630
        %v1799 = vsub.f32 %v1319, %v1639
        %v1800 = vsub.f32 %v1320, %v1648
        %v1801 = vsub.f32 %v1321, %v1657
        %v1802 = vsub.f32 %v1322, %v1666
        %v1803 = vsub.f32 %v1323, %v1675
        %v1804 = vsub.f32 %v1324, %v1684
        %v1805 = vsub.f32 %v1325, %v1693
        %v1806 = vsub.f32 %v1326, %v1702
        %v1807 = vsub.f32 %v1327, %v1711
        %v1808 = vsub.f32 %v1328, %v1720
        %v1809 = vsub.f32 %v1329, %v1729
        %v1810 = vsub.f32 %v1330, %v1738
        %v1811 = vsub.f32 %v1331, %v1747
        %v1812 = vsub.f32 %v1332, %v1756
        %v1813 = vsub.f32 %v1333, %v1765
        %v1814 = vsub.f32 %v1334, %v1774
        %v1815 = vsub.f32 %v1335, %v1783
        %v1816 = vsub.f32 0.0, %v1144
        %v1817 = vsub.f32 0.0, %v1145
        %v1818 = vsub.f32 0.0, %v1146
        %v1819 = vsub.f32 0.0, %v1147
        %v1820 = vsub.f32 0.0, %v1148
        %v1821 = vsub.f32 0.0, %v1149
        %v1822 = vsub.f32 0.0, %v1150
        %v1823 = vsub.f32 0.0, %v1151
        %v1824 = vsub.f32 0.0, %v1152
        %v1825 = vsub.f32 0.0, %v1153
        %v1826 = vsub.f32 0.0, %v1154
        %v1827 = vsub.f32 0.0, %v1155
        %v1828 = vsub.f32 0.0, %v1156
        %v1829 = vsub.f32 0.0, %v1157
        %v1830 = vsub.f32 0.0, %v1158
        %v1831 = vsub.f32 0.0, %v1159
        %v1832 = vsub.f32 0.0, %v1160
        %v1833 = vsub.f32 0.0, %v1161
        %v1834 = vsub.f32 0.0, %v1162
        %v1835 = vsub.f32 0.0, %v1163
        %v1836 = vsub.f32 0.0, %v1164
        %v1837 = vsub.f32 0.0, %v1165
        %v1838 = vsub.f32 0.0, %v1166
        %v1839 = vsub.f32 0.0, %v1167
        %v1840 = vsub.f32 0.0, %v1168
        %v1841 = vsub.f32 0.0, %v1169
        %v1842 = vsub.f32 0.0, %v1170
        %v1843 = vsub.f32 0.0, %v1171
        %v1844 = vsub.f32 0.0, %v1172
        %v1845 = vsub.f32 0.0, %v1173
        %v1846 = vsub.f32 0.0, %v1174
        %v1847 = vsub.f32 0.0, %v1175
        %v1848 = vmul.f32 %v1816, %v1784
        %v1849 = vmul.f32 %v1817, %v1785
        %v1850 = vmul.f32 %v1818, %v1786
        %v1851 = vmul.f32 %v1819, %v1787
        %v1852 = vmul.f32 %v1820, %v1788
        %v1853 = vmul.f32 %v1821, %v1789
        %v1854 = vmul.f32 %v1822, %v1790
        %v1855 = vmul.f32 %v1823, %v1791
        %v1856 = vmul.f32 %v1824, %v1792
        %v1857 = vmul.f32 %v1825, %v1793
        %v1858 = vmul.f32 %v1826, %v1794
        %v1859 = vmul.f32 %v1827, %v1795
        %v1860 = vmul.f32 %v1828, %v1796
        %v1861 = vmul.f32 %v1829, %v1797
        %v1862 = vmul.f32 %v1830, %v1798
        %v1863 = vmul.f32 %v1831, %v1799
        %v1864 = vmul.f32 %v1832, %v1800
        %v1865 = vmul.f32 %v1833, %v1801
        %v1866 = vmul.f32 %v1834, %v1802
        %v1867 = vmul.f32 %v1835, %v1803
        %v1868 = vmul.f32 %v1836, %v1804
        %v1869 = vmul.f32 %v1837, %v1805
        %v1870 = vmul.f32 %v1838, %v1806
        %v1871 = vmul.f32 %v1839, %v1807
        %v1872 = vmul.f32 %v1840, %v1808
        %v1873 = vmul.f32 %v1841, %v1809
        %v1874 = vmul.f32 %v1842, %v1810
        %v1875 = vmul.f32 %v1843, %v1811
        %v1876 = vmul.f32 %v1844, %v1812
        %v1877 = vmul.f32 %v1845, %v1813
        %v1878 = vmul.f32 %v1846, %v1814
        %v1879 = vmul.f32 %v1847, %v1815
        %vm1880 = vcmask 7168
        %v1881 = vsel %vm1880, %v1848, 0.0
        %v1882 = vsel %vm1880, %v1849, 0.0
        %v1883 = vadd.f32 %v1881, %v1882
        %v1884 = vsel %vm1880, %v1850, 0.0
        %v1885 = vadd.f32 %v1883, %v1884
        %v1886 = vsel %vm1880, %v1851, 0.0
        %v1887 = vadd.f32 %v1885, %v1886
        %v1888 = vsel %vm1880, %v1852, 0.0
        %v1889 = vadd.f32 %v1887, %v1888
        %v1890 = vsel %vm1880, %v1853, 0.0
        %v1891 = vadd.f32 %v1889, %v1890
        %v1892 = vsel %vm1880, %v1854, 0.0
        %v1893 = vadd.f32 %v1891, %v1892
        %v1894 = vsel %vm1880, %v1855, 0.0
        %v1895 = vadd.f32 %v1893, %v1894
        %v1896 = vsel %vm1880, %v1856, 0.0
        %v1897 = vadd.f32 %v1895, %v1896
        %v1898 = vsel %vm1880, %v1857, 0.0
        %v1899 = vadd.f32 %v1897, %v1898
        %v1900 = vsel %vm1880, %v1858, 0.0
        %v1901 = vadd.f32 %v1899, %v1900
        %v1902 = vsel %vm1880, %v1859, 0.0
        %v1903 = vadd.f32 %v1901, %v1902
        %v1904 = vsel %vm1880, %v1860, 0.0
        %v1905 = vadd.f32 %v1903, %v1904
        %v1906 = vsel %vm1880, %v1861, 0.0
        %v1907 = vadd.f32 %v1905, %v1906
        %v1908 = vsel %vm1880, %v1862, 0.0
        %v1909 = vadd.f32 %v1907, %v1908
        %v1910 = vsel %vm1880, %v1863, 0.0
        %v1911 = vadd.f32 %v1909, %v1910
        %v1912 = vsel %vm1880, %v1864, 0.0
        %v1913 = vadd.f32 %v1911, %v1912
        %v1914 = vsel %vm1880, %v1865, 0.0
        %v1915 = vadd.f32 %v1913, %v1914
        %v1916 = vsel %vm1880, %v1866, 0.0
        %v1917 = vadd.f32 %v1915, %v1916
        %v1918 = vsel %vm1880, %v1867, 0.0
        %v1919 = vadd.f32 %v1917, %v1918
        %v1920 = vsel %vm1880, %v1868, 0.0
        %v1921 = vadd.f32 %v1919, %v1920
        %v1922 = vsel %vm1880, %v1869, 0.0
        %v1923 = vadd.f32 %v1921, %v1922
        %v1924 = vsel %vm1880, %v1870, 0.0
        %v1925 = vadd.f32 %v1923, %v1924
        %v1926 = vsel %vm1880, %v1871, 0.0
        %v1927 = vadd.f32 %v1925, %v1926
        %v1928 = vsel %vm1880, %v1872, 0.0
        %v1929 = vadd.f32 %v1927, %v1928
        %v1930 = vsel %vm1880, %v1873, 0.0
        %v1931 = vadd.f32 %v1929, %v1930
        %v1932 = vsel %vm1880, %v1874, 0.0
        %v1933 = vadd.f32 %v1931, %v1932
        %v1934 = vsel %vm1880, %v1875, 0.0
        %v1935 = vadd.f32 %v1933, %v1934
        %v1936 = vsel %vm1880, %v1876, 0.0
        %v1937 = vadd.f32 %v1935, %v1936
        %v1938 = vsel %vm1880, %v1877, 0.0
        %v1939 = vadd.f32 %v1937, %v1938
        %v1940 = vsel %vm1880, %v1878, 0.0
        %v1941 = vadd.f32 %v1939, %v1940
        %v1942 = vsel %vm1880, %v1879, 0.0
        %v1943 = vadd.f32 %v1941, %v1942
        %1944 = vadd.xlane.f32.xlu0 %v1943
        %v1945 = vpop.xlane.xlu0 %1944
        %v1946 = vrot.slane %v1945, 4
        %v1947 = vadd.f32 %v1945, %v1946
        %v1948 = vrot.slane %v1947, 2
        %v1949 = vadd.f32 %v1947, %v1948
        %v1950 = vrot.slane %v1949, 1
        %v1951 = vadd.f32 %v1949, %v1950
        %s1952 = vtos %v1951
        %v1953 = vsub.f32 1.0, %v1144
        %v1954 = vsub.f32 1.0, %v1145
        %v1955 = vsub.f32 1.0, %v1146
        %v1956 = vsub.f32 1.0, %v1147
        %v1957 = vsub.f32 1.0, %v1148
        %v1958 = vsub.f32 1.0, %v1149
        %v1959 = vsub.f32 1.0, %v1150
        %v1960 = vsub.f32 1.0, %v1151
        %v1961 = vsub.f32 1.0, %v1152
        %v1962 = vsub.f32 1.0, %v1153
        %v1963 = vsub.f32 1.0, %v1154
        %v1964 = vsub.f32 1.0, %v1155
        %v1965 = vsub.f32 1.0, %v1156
        %v1966 = vsub.f32 1.0, %v1157
        %v1967 = vsub.f32 1.0, %v1158
        %v1968 = vsub.f32 1.0, %v1159
        %v1969 = vsub.f32 1.0, %v1160
        %v1970 = vsub.f32 1.0, %v1161
        %v1971 = vsub.f32 1.0, %v1162
        %v1972 = vsub.f32 1.0, %v1163
        %v1973 = vsub.f32 1.0, %v1164
        %v1974 = vsub.f32 1.0, %v1165
        %v1975 = vsub.f32 1.0, %v1166
        %v1976 = vsub.f32 1.0, %v1167
        %v1977 = vsub.f32 1.0, %v1168
        %v1978 = vsub.f32 1.0, %v1169
        %v1979 = vsub.f32 1.0, %v1170
        %v1980 = vsub.f32 1.0, %v1171
        %v1981 = vsub.f32 1.0, %v1172
        %v1982 = vsub.f32 1.0, %v1173
        %v1983 = vsub.f32 1.0, %v1174
        %v1984 = vsub.f32 1.0, %v1175
        %v1985 = vsub.f32 0.0, %v1953
        %v1986 = vsub.f32 0.0, %v1954
        %v1987 = vsub.f32 0.0, %v1955
        %v1988 = vsub.f32 0.0, %v1956
        %v1989 = vsub.f32 0.0, %v1957
        %v1990 = vsub.f32 0.0, %v1958
        %v1991 = vsub.f32 0.0, %v1959
        %v1992 = vsub.f32 0.0, %v1960
        %v1993 = vsub.f32 0.0, %v1961
        %v1994 = vsub.f32 0.0, %v1962
        %v1995 = vsub.f32 0.0, %v1963
        %v1996 = vsub.f32 0.0, %v1964
        %v1997 = vsub.f32 0.0, %v1965
        %v1998 = vsub.f32 0.0, %v1966
        %v1999 = vsub.f32 0.0, %v1967
        %v2000 = vsub.f32 0.0, %v1968
        %v2001 = vsub.f32 0.0, %v1969
        %v2002 = vsub.f32 0.0, %v1970
        %v2003 = vsub.f32 0.0, %v1971
        %v2004 = vsub.f32 0.0, %v1972
        %v2005 = vsub.f32 0.0, %v1973
        %v2006 = vsub.f32 0.0, %v1974
        %v2007 = vsub.f32 0.0, %v1975
        %v2008 = vsub.f32 0.0, %v1976
        %v2009 = vsub.f32 0.0, %v1977
        %v2010 = vsub.f32 0.0, %v1978
        %v2011 = vsub.f32 0.0, %v1979
        %v2012 = vsub.f32 0.0, %v1980
        %v2013 = vsub.f32 0.0, %v1981
        %v2014 = vsub.f32 0.0, %v1982
        %v2015 = vsub.f32 0.0, %v1983
        %v2016 = vsub.f32 0.0, %v1984
        %v2017 = vmul.f32 %v1985, %v1784
        %v2018 = vmul.f32 %v1986, %v1785
        %v2019 = vmul.f32 %v1987, %v1786
        %v2020 = vmul.f32 %v1988, %v1787
        %v2021 = vmul.f32 %v1989, %v1788
        %v2022 = vmul.f32 %v1990, %v1789
        %v2023 = vmul.f32 %v1991, %v1790
        %v2024 = vmul.f32 %v1992, %v1791
        %v2025 = vmul.f32 %v1993, %v1792
        %v2026 = vmul.f32 %v1994, %v1793
        %v2027 = vmul.f32 %v1995, %v1794
        %v2028 = vmul.f32 %v1996, %v1795
        %v2029 = vmul.f32 %v1997, %v1796
        %v2030 = vmul.f32 %v1998, %v1797
        %v2031 = vmul.f32 %v1999, %v1798
        %v2032 = vmul.f32 %v2000, %v1799
        %v2033 = vmul.f32 %v2001, %v1800
        %v2034 = vmul.f32 %v2002, %v1801
        %v2035 = vmul.f32 %v2003, %v1802
        %v2036 = vmul.f32 %v2004, %v1803
        %v2037 = vmul.f32 %v2005, %v1804
        %v2038 = vmul.f32 %v2006, %v1805
        %v2039 = vmul.f32 %v2007, %v1806
        %v2040 = vmul.f32 %v2008, %v1807
        %v2041 = vmul.f32 %v2009, %v1808
        %v2042 = vmul.f32 %v2010, %v1809
        %v2043 = vmul.f32 %v2011, %v1810
        %v2044 = vmul.f32 %v2012, %v1811
        %v2045 = vmul.f32 %v2013, %v1812
        %v2046 = vmul.f32 %v2014, %v1813
        %v2047 = vmul.f32 %v2015, %v1814
        %v2048 = vmul.f32 %v2016, %v1815
        %v2049 = vsel %vm1880, %v2017, 0.0
        %v2050 = vsel %vm1880, %v2018, 0.0
        %v2051 = vadd.f32 %v2049, %v2050
        %v2052 = vsel %vm1880, %v2019, 0.0
        %v2053 = vadd.f32 %v2051, %v2052
        %v2054 = vsel %vm1880, %v2020, 0.0
        %v2055 = vadd.f32 %v2053, %v2054
        %v2056 = vsel %vm1880, %v2021, 0.0
        %v2057 = vadd.f32 %v2055, %v2056
        %v2058 = vsel %vm1880, %v2022, 0.0
        %v2059 = vadd.f32 %v2057, %v2058
        %v2060 = vsel %vm1880, %v2023, 0.0
        %v2061 = vadd.f32 %v2059, %v2060
        %v2062 = vsel %vm1880, %v2024, 0.0
        %v2063 = vadd.f32 %v2061, %v2062
        %v2064 = vsel %vm1880, %v2025, 0.0
        %v2065 = vadd.f32 %v2063, %v2064
        %v2066 = vsel %vm1880, %v2026, 0.0
        %v2067 = vadd.f32 %v2065, %v2066
        %v2068 = vsel %vm1880, %v2027, 0.0
        %v2069 = vadd.f32 %v2067, %v2068
        %v2070 = vsel %vm1880, %v2028, 0.0
        %v2071 = vadd.f32 %v2069, %v2070
        %v2072 = vsel %vm1880, %v2029, 0.0
        %v2073 = vadd.f32 %v2071, %v2072
        %v2074 = vsel %vm1880, %v2030, 0.0
        %v2075 = vadd.f32 %v2073, %v2074
        %v2076 = vsel %vm1880, %v2031, 0.0
        %v2077 = vadd.f32 %v2075, %v2076
        %v2078 = vsel %vm1880, %v2032, 0.0
        %v2079 = vadd.f32 %v2077, %v2078
        %v2080 = vsel %vm1880, %v2033, 0.0
        %v2081 = vadd.f32 %v2079, %v2080
        %v2082 = vsel %vm1880, %v2034, 0.0
        %v2083 = vadd.f32 %v2081, %v2082
        %v2084 = vsel %vm1880, %v2035, 0.0
        %v2085 = vadd.f32 %v2083, %v2084
        %v2086 = vsel %vm1880, %v2036, 0.0
        %v2087 = vadd.f32 %v2085, %v2086
        %v2088 = vsel %vm1880, %v2037, 0.0
        %v2089 = vadd.f32 %v2087, %v2088
        %v2090 = vsel %vm1880, %v2038, 0.0
        %v2091 = vadd.f32 %v2089, %v2090
        %v2092 = vsel %vm1880, %v2039, 0.0
        %v2093 = vadd.f32 %v2091, %v2092
        %v2094 = vsel %vm1880, %v2040, 0.0
        %v2095 = vadd.f32 %v2093, %v2094
        %v2096 = vsel %vm1880, %v2041, 0.0
        %v2097 = vadd.f32 %v2095, %v2096
        %v2098 = vsel %vm1880, %v2042, 0.0
        %v2099 = vadd.f32 %v2097, %v2098
        %v2100 = vsel %vm1880, %v2043, 0.0
        %v2101 = vadd.f32 %v2099, %v2100
        %v2102 = vsel %vm1880, %v2044, 0.0
        %v2103 = vadd.f32 %v2101, %v2102
        %v2104 = vsel %vm1880, %v2045, 0.0
        %v2105 = vadd.f32 %v2103, %v2104
        %v2106 = vsel %vm1880, %v2046, 0.0
        %v2107 = vadd.f32 %v2105, %v2106
        %v2108 = vsel %vm1880, %v2047, 0.0
        %v2109 = vadd.f32 %v2107, %v2108
        %v2110 = vsel %vm1880, %v2048, 0.0
        %v2111 = vadd.f32 %v2109, %v2110
        %2112 = vadd.xlane.f32.xlu0 %v2111
        %v2113 = vpop.xlane.xlu0 %2112
        %v2114 = vrot.slane %v2113, 4
        %v2115 = vadd.f32 %v2113, %v2114
        %v2116 = vrot.slane %v2115, 2
        %v2117 = vadd.f32 %v2115, %v2116
        %v2118 = vrot.slane %v2117, 1
        %v2119 = vadd.f32 %v2117, %v2118
        %s2120 = vtos %v2119
        %v2121 = vsel %vm1880, %v1144, 0.0
        %v2122 = vsel %vm1880, %v1145, 0.0
        %v2123 = vadd.f32 %v2121, %v2122
        %v2124 = vsel %vm1880, %v1146, 0.0
        %v2125 = vadd.f32 %v2123, %v2124
        %v2126 = vsel %vm1880, %v1147, 0.0
        %v2127 = vadd.f32 %v2125, %v2126
        %v2128 = vsel %vm1880, %v1148, 0.0
        %v2129 = vadd.f32 %v2127, %v2128
        %v2130 = vsel %vm1880, %v1149, 0.0
        %v2131 = vadd.f32 %v2129, %v2130
        %v2132 = vsel %vm1880, %v1150, 0.0
        %v2133 = vadd.f32 %v2131, %v2132
        %v2134 = vsel %vm1880, %v1151, 0.0
        %v2135 = vadd.f32 %v2133, %v2134
        %v2136 = vsel %vm1880, %v1152, 0.0
        %v2137 = vadd.f32 %v2135, %v2136
        %v2138 = vsel %vm1880, %v1153, 0.0
        %v2139 = vadd.f32 %v2137, %v2138
        %v2140 = vsel %vm1880, %v1154, 0.0
        %v2141 = vadd.f32 %v2139, %v2140
        %v2142 = vsel %vm1880, %v1155, 0.0
        %v2143 = vadd.f32 %v2141, %v2142
        %v2144 = vsel %vm1880, %v1156, 0.0
        %v2145 = vadd.f32 %v2143, %v2144
        %v2146 = vsel %vm1880, %v1157, 0.0
        %v2147 = vadd.f32 %v2145, %v2146
        %v2148 = vsel %vm1880, %v1158, 0.0
        %v2149 = vadd.f32 %v2147, %v2148
        %v2150 = vsel %vm1880, %v1159, 0.0
        %v2151 = vadd.f32 %v2149, %v2150
        %v2152 = vsel %vm1880, %v1160, 0.0
        %v2153 = vadd.f32 %v2151, %v2152
        %v2154 = vsel %vm1880, %v1161, 0.0
        %v2155 = vadd.f32 %v2153, %v2154
        %v2156 = vsel %vm1880, %v1162, 0.0
        %v2157 = vadd.f32 %v2155, %v2156
        %v2158 = vsel %vm1880, %v1163, 0.0
        %v2159 = vadd.f32 %v2157, %v2158
        %v2160 = vsel %vm1880, %v1164, 0.0
        %v2161 = vadd.f32 %v2159, %v2160
        %v2162 = vsel %vm1880, %v1165, 0.0
        %v2163 = vadd.f32 %v2161, %v2162
        %v2164 = vsel %vm1880, %v1166, 0.0
        %v2165 = vadd.f32 %v2163, %v2164
        %v2166 = vsel %vm1880, %v1167, 0.0
        %v2167 = vadd.f32 %v2165, %v2166
        %v2168 = vsel %vm1880, %v1168, 0.0
        %v2169 = vadd.f32 %v2167, %v2168
        %v2170 = vsel %vm1880, %v1169, 0.0
        %v2171 = vadd.f32 %v2169, %v2170
        %v2172 = vsel %vm1880, %v1170, 0.0
        %v2173 = vadd.f32 %v2171, %v2172
        %v2174 = vsel %vm1880, %v1171, 0.0
        %v2175 = vadd.f32 %v2173, %v2174
        %v2176 = vsel %vm1880, %v1172, 0.0
        %v2177 = vadd.f32 %v2175, %v2176
        %v2178 = vsel %vm1880, %v1173, 0.0
        %v2179 = vadd.f32 %v2177, %v2178
        %v2180 = vsel %vm1880, %v1174, 0.0
        %v2181 = vadd.f32 %v2179, %v2180
        %v2182 = vsel %vm1880, %v1175, 0.0
        %v2183 = vadd.f32 %v2181, %v2182
        %2184 = vadd.xlane.f32.xlu0 %v2183
        %v2185 = vpop.xlane.xlu0 %2184
        %v2186 = vrot.slane %v2185, 4
        %v2187 = vadd.f32 %v2185, %v2186
        %v2188 = vrot.slane %v2187, 2
        %v2189 = vadd.f32 %v2187, %v2188
        %v2190 = vrot.slane %v2189, 1
        %v2191 = vadd.f32 %v2189, %v2190
        %s2192 = vtos %v2191
        %v2193 = vsel %vm1880, %v1953, 0.0
        %v2194 = vsel %vm1880, %v1954, 0.0
        %v2195 = vadd.f32 %v2193, %v2194
        %v2196 = vsel %vm1880, %v1955, 0.0
        %v2197 = vadd.f32 %v2195, %v2196
        %v2198 = vsel %vm1880, %v1956, 0.0
        %v2199 = vadd.f32 %v2197, %v2198
        %v2200 = vsel %vm1880, %v1957, 0.0
        %v2201 = vadd.f32 %v2199, %v2200
        %v2202 = vsel %vm1880, %v1958, 0.0
        %v2203 = vadd.f32 %v2201, %v2202
        %v2204 = vsel %vm1880, %v1959, 0.0
        %v2205 = vadd.f32 %v2203, %v2204
        %v2206 = vsel %vm1880, %v1960, 0.0
        %v2207 = vadd.f32 %v2205, %v2206
        %v2208 = vsel %vm1880, %v1961, 0.0
        %v2209 = vadd.f32 %v2207, %v2208
        %v2210 = vsel %vm1880, %v1962, 0.0
        %v2211 = vadd.f32 %v2209, %v2210
        %v2212 = vsel %vm1880, %v1963, 0.0
        %v2213 = vadd.f32 %v2211, %v2212
        %v2214 = vsel %vm1880, %v1964, 0.0
        %v2215 = vadd.f32 %v2213, %v2214
        %v2216 = vsel %vm1880, %v1965, 0.0
        %v2217 = vadd.f32 %v2215, %v2216
        %v2218 = vsel %vm1880, %v1966, 0.0
        %v2219 = vadd.f32 %v2217, %v2218
        %v2220 = vsel %vm1880, %v1967, 0.0
        %v2221 = vadd.f32 %v2219, %v2220
        %v2222 = vsel %vm1880, %v1968, 0.0
        %v2223 = vadd.f32 %v2221, %v2222
        %v2224 = vsel %vm1880, %v1969, 0.0
        %v2225 = vadd.f32 %v2223, %v2224
        %v2226 = vsel %vm1880, %v1970, 0.0
        %v2227 = vadd.f32 %v2225, %v2226
        %v2228 = vsel %vm1880, %v1971, 0.0
        %v2229 = vadd.f32 %v2227, %v2228
        %v2230 = vsel %vm1880, %v1972, 0.0
        %v2231 = vadd.f32 %v2229, %v2230
        %v2232 = vsel %vm1880, %v1973, 0.0
        %v2233 = vadd.f32 %v2231, %v2232
        %v2234 = vsel %vm1880, %v1974, 0.0
        %v2235 = vadd.f32 %v2233, %v2234
        %v2236 = vsel %vm1880, %v1975, 0.0
        %v2237 = vadd.f32 %v2235, %v2236
        %v2238 = vsel %vm1880, %v1976, 0.0
        %v2239 = vadd.f32 %v2237, %v2238
        %v2240 = vsel %vm1880, %v1977, 0.0
        %v2241 = vadd.f32 %v2239, %v2240
        %v2242 = vsel %vm1880, %v1978, 0.0
        %v2243 = vadd.f32 %v2241, %v2242
        %v2244 = vsel %vm1880, %v1979, 0.0
        %v2245 = vadd.f32 %v2243, %v2244
        %v2246 = vsel %vm1880, %v1980, 0.0
        %v2247 = vadd.f32 %v2245, %v2246
        %v2248 = vsel %vm1880, %v1981, 0.0
        %v2249 = vadd.f32 %v2247, %v2248
        %v2250 = vsel %vm1880, %v1982, 0.0
        %v2251 = vadd.f32 %v2249, %v2250
        %v2252 = vsel %vm1880, %v1983, 0.0
        %v2253 = vadd.f32 %v2251, %v2252
        %v2254 = vsel %vm1880, %v1984, 0.0
        %v2255 = vadd.f32 %v2253, %v2254
        %2256 = vadd.xlane.f32.xlu0 %v2255
        %v2257 = vpop.xlane.xlu0 %2256
        %v2258 = vrot.slane %v2257, 4
        %v2259 = vadd.f32 %v2257, %v2258
        %v2260 = vrot.slane %v2259, 2
        %v2261 = vadd.f32 %v2259, %v2260
        %v2262 = vrot.slane %v2261, 1
        %v2263 = vadd.f32 %v2261, %v2262
        %s2264 = vtos %v2263
        %vm2265 = vcmp.eq.s32.totalorder %v725, 0
        %v2266 = vstv %s1952
        %v2267 = vsel %vm2265, %v2266, 0.0
        %vm2268 = vcmp.eq.s32.totalorder %v725, 1
        %v2269 = vstv %s2120
        %v2270 = vsel %vm2268, %v2269, 0.0
        %v2271 = vadd.f32 %v2267, %v2270
        %vm2272 = vcmp.eq.s32.totalorder %v725, 2
        %v2273 = vstv %s2192
        %v2274 = vsel %vm2272, %v2273, 0.0
        %v2275 = vadd.f32 %v2271, %v2274
        %vm2276 = vcmp.eq.s32.totalorder %v725, 3
        %v2277 = vstv %s2264
        %v2278 = vsel %vm2276, %v2277, 0.0
        %v2279 = vadd.f32 %v2275, %v2278
        %2280 = vst [vmem:[%s360] sm:$0x1] %v2279
        %v2281 = vld [vmem:[%s347] sm:$0x3]
        %v2283 = vlaneseq
        %v2284 = vshrl.u32 %v2283, 7
        %v2285 = vsub.s32 0, %v2284
        %v2286 = vrot.slane %v2281, %v2285
        %v2287 = vlaneseq
        %v2288 = vshrl.u32 %v2287, 7
        %v2289 = vsub.s32 1, %v2288
        %v2290 = vrot.slane %v2281, %v2289
        %2293 = vmatprep.subr.mxu0 0.0
        %2294 = vmatpush1.msra.mxu0 %v934
        %2295 = vmatprep.subr.mxu0 0.0
        %2296 = vmatpush1.msra.mxu0 %v933
        %2297 = vmatprep.subr.mxu0 0.0
        %2298 = vmatpush1.msra.mxu0 %v932
        %2299 = vmatprep.subr.mxu0 0.0
        %2300 = vmatpush1.msra.mxu0 %v931
        %2301 = vmatprep.subr.mxu0 0.0
        %2302 = vmatpush1.msra.mxu0 %v930
        %2303 = vmatprep.subr.mxu0 0.0
        %2304 = vmatpush1.msra.mxu0 %v929
        %2305 = vmatprep.subr.mxu0 0.0
        %2306 = vmatpush1.msra.mxu0 %v928
        %2307 = vmatprep.subr.mxu0 0.0
        %2308 = vmatpush1.msra.mxu0 %v927
        %2309 = vmatprep.subr.mxu0 0.0
        %2310 = vmatpush1.msra.mxu0 %v926
        %2311 = vmatprep.subr.mxu0 0.0
        %2312 = vmatpush1.msra.mxu0 %v925
        %2313 = vmatprep.subr.mxu0 0.0
        %2314 = vmatpush1.msra.mxu0 %v924
        %2315 = vmatprep.subr.mxu0 0.0
        %2316 = vmatpush1.msra.mxu0 %v923
        %2317 = vmatprep.subr.mxu0 0.0
        %2318 = vmatpush1.msra.mxu0 %v922
        %2319 = vmatprep.subr.mxu0 0.0
        %2320 = vmatpush1.msra.mxu0 %v921
        %2321 = vmatprep.subr.mxu0 0.0
        %2322 = vmatpush1.msra.mxu0 %v920
        %2323 = vmatprep.subr.mxu0 0.0
        %2324 = vmatpush1.msra.mxu0 %v919
        %2325 = vmatprep.subr.mxu0 0.0
        %2326 = vmatpush2.msra.mxu0 %v950
        %2327 = vmatprep.subr.mxu0 0.0
        %2328 = vmatpush2.msra.mxu0 %v949
        %2329 = vmatprep.subr.mxu0 0.0
        %2330 = vmatpush2.msra.mxu0 %v948
        %2331 = vmatprep.subr.mxu0 0.0
        %2332 = vmatpush2.msra.mxu0 %v947
        %2333 = vmatprep.subr.mxu0 0.0
        %2334 = vmatpush2.msra.mxu0 %v946
        %2335 = vmatprep.subr.mxu0 0.0
        %2336 = vmatpush2.msra.mxu0 %v945
        %2337 = vmatprep.subr.mxu0 0.0
        %2338 = vmatpush2.msra.mxu0 %v944
        %2339 = vmatprep.subr.mxu0 0.0
        %2340 = vmatpush2.msra.mxu0 %v943
        %2341 = vmatprep.subr.mxu0 0.0
        %2342 = vmatpush2.msra.mxu0 %v942
        %2343 = vmatprep.subr.mxu0 0.0
        %2344 = vmatpush2.msra.mxu0 %v941
        %2345 = vmatprep.subr.mxu0 0.0
        %2346 = vmatpush2.msra.mxu0 %v940
        %2347 = vmatprep.subr.mxu0 0.0
        %2348 = vmatpush2.msra.mxu0 %v939
        %2349 = vmatprep.subr.mxu0 0.0
        %2350 = vmatpush2.msra.mxu0 %v938
        %2351 = vmatprep.subr.mxu0 0.0
        %2352 = vmatpush2.msra.mxu0 %v937
        %2353 = vmatprep.subr.mxu0 0.0
        %2354 = vmatpush2.msra.mxu0 %v936
        %2355 = vmatprep.subr.mxu0 0.0
        %2356 = vmatpush2.msra.mxu0 %v935
        %2357 = vmatprep.mubr.f32.mxu0 %v2290
        %2358 = vmatmul.mubr.f32.gmra.mxu0 %v2286
        %v2359 = vpop.f32.mrf.mxu0
        %v2360 = vadd.f32 0.0, %v2359
        %v2361 = vpop.f32.mrf.mxu0
        %2362 = vdwg.mxu0
        %v2363 = vmul.f32 %v2360, %v2360
        %vm2364 = vcmask 1040384
        %v2365 = vsel %vm2364, %v2363, 0.0
        %2366 = vadd.xlane.f32.xlu0 %v2365
        %v2367 = vpop.xlane.xlu0 %2366
        %v2368 = vmax.f32 %v2367, 1e-24
        %v2369 = vrsqrt.pop %v2368
        %v2370 = vmul.f32 %v2360, %v2369
        %v2371 = vld [vmem:[%s5] sm:$0xf]
        %v2372 = vld [vmem:[%s5 + $0x4] sm:$0xf]
        %v2373 = vld [vmem:[%s5 + $0x8] sm:$0xf]
        %v2374 = vld [vmem:[%s5 + $0xc] sm:$0xf]
        %v2375 = vld [vmem:[%s5 + $0x10] sm:$0xf]
        %v2376 = vld [vmem:[%s5 + $0x14] sm:$0xf]
        %v2377 = vld [vmem:[%s5 + $0x18] sm:$0xf]
        %v2378 = vld [vmem:[%s5 + $0x1c] sm:$0xf]
        %v2379 = vld [vmem:[%s5 + $0x20] sm:$0xf]
        %v2380 = vld [vmem:[%s5 + $0x24] sm:$0xf]
        %v2381 = vld [vmem:[%s5 + $0x28] sm:$0xf]
        %v2382 = vld [vmem:[%s5 + $0x2c] sm:$0xf]
        %v2383 = vld [vmem:[%s5 + $0x30] sm:$0xf]
        %v2384 = vld [vmem:[%s5 + $0x34] sm:$0xf]
        %v2385 = vld [vmem:[%s5 + $0x38] sm:$0xf]
        %v2386 = vld [vmem:[%s5 + $0x3c] sm:$0xf]
        %v2387 = vpack.c.bf16 %v920, %v919
        %v2388 = vpack.c.bf16 %v922, %v921
        %v2389 = vpack.c.bf16 %v924, %v923
        %v2390 = vpack.c.bf16 %v926, %v925
        %v2391 = vpack.c.bf16 %v928, %v927
        %v2392 = vpack.c.bf16 %v930, %v929
        %v2393 = vpack.c.bf16 %v932, %v931
        %v2394 = vpack.c.bf16 %v934, %v933
        %v2395 = vpack.c.bf16 %v936, %v935
        %v2396 = vpack.c.bf16 %v938, %v937
        %v2397 = vpack.c.bf16 %v940, %v939
        %v2398 = vpack.c.bf16 %v942, %v941
        %v2399 = vpack.c.bf16 %v944, %v943
        %v2400 = vpack.c.bf16 %v946, %v945
        %v2401 = vpack.c.bf16 %v948, %v947
        %v2402 = vpack.c.bf16 %v950, %v949
        %v2419 = vunpack.c.l.b16 %v2371
        %v2420 = vunpack.c.l.b16 %v2372
        %v2421 = vunpack.c.l.b16 %v2373
        %v2422 = vunpack.c.l.b16 %v2374
        %v2423 = vunpack.c.l.b16 %v2375
        %v2424 = vunpack.c.l.b16 %v2376
        %v2425 = vunpack.c.l.b16 %v2377
        %v2426 = vunpack.c.l.b16 %v2378
        %v2427 = vunpack.c.l.b16 %v2379
        %v2428 = vunpack.c.l.b16 %v2380
        %v2429 = vunpack.c.l.b16 %v2381
        %v2430 = vunpack.c.l.b16 %v2382
        %v2431 = vunpack.c.l.b16 %v2383
        %v2432 = vunpack.c.l.b16 %v2384
        %v2433 = vunpack.c.l.b16 %v2385
        %v2434 = vunpack.c.l.b16 %v2386
        %v2435 = vpack.c.b16 %v2420, %v2419
        %v2436 = vpack.c.b16 %v2422, %v2421
        %v2437 = vpack.c.b16 %v2424, %v2423
        %v2438 = vpack.c.b16 %v2426, %v2425
        %v2439 = vpack.c.b16 %v2428, %v2427
        %v2440 = vpack.c.b16 %v2430, %v2429
        %v2441 = vpack.c.b16 %v2432, %v2431
        %v2442 = vpack.c.b16 %v2434, %v2433
        %2451 = vmatprep.subr.bf16.mxu0 0
        %2452 = vmatpush1.bf16.msra.mxu0 %v2442
        %2453 = vmatprep.subr.bf16.mxu0 0
        %2454 = vmatpush1.bf16.msra.mxu0 %v2441
        %2455 = vmatprep.subr.bf16.mxu0 0
        %2456 = vmatpush1.bf16.msra.mxu0 %v2440
        %2457 = vmatprep.subr.bf16.mxu0 0
        %2458 = vmatpush1.bf16.msra.mxu0 %v2439
        %2459 = vmatprep.subr.bf16.mxu0 0
        %2460 = vmatpush1.bf16.msra.mxu0 %v2438
        %2461 = vmatprep.subr.bf16.mxu0 0
        %2462 = vmatpush1.bf16.msra.mxu0 %v2437
        %2463 = vmatprep.subr.bf16.mxu0 0
        %2464 = vmatpush1.bf16.msra.mxu0 %v2436
        %2465 = vmatprep.subr.bf16.mxu0 0
        %2466 = vmatpush1.bf16.msra.mxu0 %v2435
        %2467 = vmatprep.subr.bf16.mxu0 0
        %2468 = vmatpush2.bf16.msra.mxu0 0
        %2469 = vmatprep.subr.bf16.mxu0 0
        %2470 = vmatpush2.bf16.msra.mxu0 0
        %2471 = vmatprep.subr.bf16.mxu0 0
        %2472 = vmatpush2.bf16.msra.mxu0 0
        %2473 = vmatprep.subr.bf16.mxu0 0
        %2474 = vmatpush2.bf16.msra.mxu0 0
        %2475 = vmatprep.subr.bf16.mxu0 0
        %2476 = vmatpush2.bf16.msra.mxu0 0
        %2477 = vmatprep.subr.bf16.mxu0 0
        %2478 = vmatpush2.bf16.msra.mxu0 0
        %2479 = vmatprep.subr.bf16.mxu0 0
        %2480 = vmatpush2.bf16.msra.mxu0 0
        %2481 = vmatprep.subr.bf16.mxu0 0
        %2482 = vmatpush2.bf16.msra.mxu0 0
        %2483 = vmatprep.mubr.bf16.mxu0 0
        %2484 = vmatmul.mubr.bf16.gmra.mxu0 %v2387
        %v2485 = vpop.f32.mrf.mxu0
        %v2486 = vadd.f32 0.0, %v2485
        %v2487 = vpop.f32.mrf.mxu0
        %v2488 = vpop.f32.mrf.mxu0
        %v2489 = vadd.f32 0.0, %v2488
        %v2490 = vpop.f32.mrf.mxu0
        %2491 = vmatprep.mubr.bf16.mxu0 0
        %2492 = vmatmul.mubr.bf16.gmra.mxu0 %v2388
        %v2493 = vpop.f32.mrf.mxu0
        %v2494 = vadd.f32 0.0, %v2493
        %v2495 = vpop.f32.mrf.mxu0
        %v2496 = vpop.f32.mrf.mxu0
        %v2497 = vadd.f32 0.0, %v2496
        %v2498 = vpop.f32.mrf.mxu0
        %2499 = vmatprep.mubr.bf16.mxu0 0
        %2500 = vmatmul.mubr.bf16.gmra.mxu0 %v2389
        %v2501 = vpop.f32.mrf.mxu0
        %v2502 = vadd.f32 0.0, %v2501
        %v2503 = vpop.f32.mrf.mxu0
        %v2504 = vpop.f32.mrf.mxu0
        %v2505 = vadd.f32 0.0, %v2504
        %v2506 = vpop.f32.mrf.mxu0
        %2507 = vmatprep.mubr.bf16.mxu0 0
        %2508 = vmatmul.mubr.bf16.gmra.mxu0 %v2390
        %v2509 = vpop.f32.mrf.mxu0
        %v2510 = vadd.f32 0.0, %v2509
        %v2511 = vpop.f32.mrf.mxu0
        %v2512 = vpop.f32.mrf.mxu0
        %v2513 = vadd.f32 0.0, %v2512
        %v2514 = vpop.f32.mrf.mxu0
        %2515 = vmatprep.mubr.bf16.mxu0 0
        %2516 = vmatmul.mubr.bf16.gmra.mxu0 %v2391
        %v2517 = vpop.f32.mrf.mxu0
        %v2518 = vadd.f32 0.0, %v2517
        %v2519 = vpop.f32.mrf.mxu0
        %v2520 = vpop.f32.mrf.mxu0
        %v2521 = vadd.f32 0.0, %v2520
        %v2522 = vpop.f32.mrf.mxu0
        %2523 = vmatprep.mubr.bf16.mxu0 0
        %2524 = vmatmul.mubr.bf16.gmra.mxu0 %v2392
        %v2525 = vpop.f32.mrf.mxu0
        %v2526 = vadd.f32 0.0, %v2525
        %v2527 = vpop.f32.mrf.mxu0
        %v2528 = vpop.f32.mrf.mxu0
        %v2529 = vadd.f32 0.0, %v2528
        %v2530 = vpop.f32.mrf.mxu0
        %2531 = vmatprep.mubr.bf16.mxu0 0
        %2532 = vmatmul.mubr.bf16.gmra.mxu0 %v2393
        %v2533 = vpop.f32.mrf.mxu0
        %v2534 = vadd.f32 0.0, %v2533
        %v2535 = vpop.f32.mrf.mxu0
        %v2536 = vpop.f32.mrf.mxu0
        %v2537 = vadd.f32 0.0, %v2536
        %v2538 = vpop.f32.mrf.mxu0
        %2539 = vmatprep.mubr.bf16.mxu0 0
        %2540 = vmatmul.mubr.bf16.gmra.mxu0 %v2394
        %v2541 = vpop.f32.mrf.mxu0
        %v2542 = vadd.f32 0.0, %v2541
        %v2543 = vpop.f32.mrf.mxu0
        %v2544 = vpop.f32.mrf.mxu0
        %v2545 = vadd.f32 0.0, %v2544
        %v2546 = vpop.f32.mrf.mxu0
        %2547 = vmatprep.mubr.bf16.mxu0 0
        %2548 = vmatmul.mubr.bf16.gmra.mxu0 %v2395
        %v2549 = vpop.f32.mrf.mxu0
        %v2550 = vadd.f32 0.0, %v2549
        %v2551 = vpop.f32.mrf.mxu0
        %v2552 = vpop.f32.mrf.mxu0
        %v2553 = vadd.f32 0.0, %v2552
        %v2554 = vpop.f32.mrf.mxu0
        %2555 = vmatprep.mubr.bf16.mxu0 0
        %2556 = vmatmul.mubr.bf16.gmra.mxu0 %v2396
        %v2557 = vpop.f32.mrf.mxu0
        %v2558 = vadd.f32 0.0, %v2557
        %v2559 = vpop.f32.mrf.mxu0
        %v2560 = vpop.f32.mrf.mxu0
        %v2561 = vadd.f32 0.0, %v2560
        %v2562 = vpop.f32.mrf.mxu0
        %2563 = vmatprep.mubr.bf16.mxu0 0
        %2564 = vmatmul.mubr.bf16.gmra.mxu0 %v2397
        %v2565 = vpop.f32.mrf.mxu0
        %v2566 = vadd.f32 0.0, %v2565
        %v2567 = vpop.f32.mrf.mxu0
        %v2568 = vpop.f32.mrf.mxu0
        %v2569 = vadd.f32 0.0, %v2568
        %v2570 = vpop.f32.mrf.mxu0
        %2571 = vmatprep.mubr.bf16.mxu0 0
        %2572 = vmatmul.mubr.bf16.gmra.mxu0 %v2398
        %v2573 = vpop.f32.mrf.mxu0
        %v2574 = vadd.f32 0.0, %v2573
        %v2575 = vpop.f32.mrf.mxu0
        %v2576 = vpop.f32.mrf.mxu0
        %v2577 = vadd.f32 0.0, %v2576
        %v2578 = vpop.f32.mrf.mxu0
        %2579 = vmatprep.mubr.bf16.mxu0 0
        %2580 = vmatmul.mubr.bf16.gmra.mxu0 %v2399
        %v2581 = vpop.f32.mrf.mxu0
        %v2582 = vadd.f32 0.0, %v2581
        %v2583 = vpop.f32.mrf.mxu0
        %v2584 = vpop.f32.mrf.mxu0
        %v2585 = vadd.f32 0.0, %v2584
        %v2586 = vpop.f32.mrf.mxu0
        %2587 = vmatprep.mubr.bf16.mxu0 0
        %2588 = vmatmul.mubr.bf16.gmra.mxu0 %v2400
        %v2589 = vpop.f32.mrf.mxu0
        %v2590 = vadd.f32 0.0, %v2589
        %v2591 = vpop.f32.mrf.mxu0
        %v2592 = vpop.f32.mrf.mxu0
        %v2593 = vadd.f32 0.0, %v2592
        %v2594 = vpop.f32.mrf.mxu0
        %2595 = vmatprep.mubr.bf16.mxu0 0
        %2596 = vmatmul.mubr.bf16.gmra.mxu0 %v2401
        %v2597 = vpop.f32.mrf.mxu0
        %v2598 = vadd.f32 0.0, %v2597
        %v2599 = vpop.f32.mrf.mxu0
        %v2600 = vpop.f32.mrf.mxu0
        %v2601 = vadd.f32 0.0, %v2600
        %v2602 = vpop.f32.mrf.mxu0
        %2603 = vmatprep.mubr.bf16.mxu0 0
        %2604 = vmatmul.mubr.bf16.gmra.mxu0 %v2402
        %v2605 = vpop.f32.mrf.mxu0
        %v2606 = vadd.f32 0.0, %v2605
        %v2607 = vpop.f32.mrf.mxu0
        %v2608 = vpop.f32.mrf.mxu0
        %v2609 = vadd.f32 0.0, %v2608
        %v2610 = vpop.f32.mrf.mxu0
        %2611 = vdwg.mxu0
        %v2612 = vmul.f32 %v2486, 5.0
        %v2613 = vmul.f32 %v2489, 5.0
        %v2614 = vmul.f32 %v2494, 5.0
        %v2615 = vmul.f32 %v2497, 5.0
        %v2616 = vmul.f32 %v2502, 5.0
        %v2617 = vmul.f32 %v2505, 5.0
        %v2618 = vmul.f32 %v2510, 5.0
        %v2619 = vmul.f32 %v2513, 5.0
        %v2620 = vmul.f32 %v2518, 5.0
        %v2621 = vmul.f32 %v2521, 5.0
        %v2622 = vmul.f32 %v2526, 5.0
        %v2623 = vmul.f32 %v2529, 5.0
        %v2624 = vmul.f32 %v2534, 5.0
        %v2625 = vmul.f32 %v2537, 5.0
        %v2626 = vmul.f32 %v2542, 5.0
        %v2627 = vmul.f32 %v2545, 5.0
        %v2628 = vmul.f32 %v2550, 5.0
        %v2629 = vmul.f32 %v2553, 5.0
        %v2630 = vmul.f32 %v2558, 5.0
        %v2631 = vmul.f32 %v2561, 5.0
        %v2632 = vmul.f32 %v2566, 5.0
        %v2633 = vmul.f32 %v2569, 5.0
        %v2634 = vmul.f32 %v2574, 5.0
        %v2635 = vmul.f32 %v2577, 5.0
        %v2636 = vmul.f32 %v2582, 5.0
        %v2637 = vmul.f32 %v2585, 5.0
        %v2638 = vmul.f32 %v2590, 5.0
        %v2639 = vmul.f32 %v2593, 5.0
        %v2640 = vmul.f32 %v2598, 5.0
        %v2641 = vmul.f32 %v2601, 5.0
        %v2642 = vmul.f32 %v2606, 5.0
        %v2643 = vmul.f32 %v2609, 5.0
        %2644 = vst [vmem:[%s357] sm:$0xff] %v2612
        %2645 = vst [vmem:[%s357 + $0x8] sm:$0xff] %v2613
        %2646 = vst [vmem:[%s357 + $0x10] sm:$0xff] %v2614
        %2647 = vst [vmem:[%s357 + $0x18] sm:$0xff] %v2615
        %2648 = vst [vmem:[%s357 + $0x20] sm:$0xff] %v2616
        %2649 = vst [vmem:[%s357 + $0x28] sm:$0xff] %v2617
        %2650 = vst [vmem:[%s357 + $0x30] sm:$0xff] %v2618
        %2651 = vst [vmem:[%s357 + $0x38] sm:$0xff] %v2619
        %2652 = vst [vmem:[%s357 + $0x40] sm:$0xff] %v2620
        %2653 = vst [vmem:[%s357 + $0x48] sm:$0xff] %v2621
        %2654 = vst [vmem:[%s357 + $0x50] sm:$0xff] %v2622
        %2655 = vst [vmem:[%s357 + $0x58] sm:$0xff] %v2623
        %2656 = vst [vmem:[%s357 + $0x60] sm:$0xff] %v2624
        %2657 = vst [vmem:[%s357 + $0x68] sm:$0xff] %v2625
        %2658 = vst [vmem:[%s357 + $0x70] sm:$0xff] %v2626
        %2659 = vst [vmem:[%s357 + $0x78] sm:$0xff] %v2627
        %2660 = vst [vmem:[%s357 + $0x80] sm:$0xff] %v2628
        %2661 = vst [vmem:[%s357 + $0x88] sm:$0xff] %v2629
        %2662 = vst [vmem:[%s357 + $0x90] sm:$0xff] %v2630
        %2663 = vst [vmem:[%s357 + $0x98] sm:$0xff] %v2631
        %2664 = vst [vmem:[%s357 + $0xa0] sm:$0xff] %v2632
        %2665 = vst [vmem:[%s357 + $0xa8] sm:$0xff] %v2633
        %2666 = vst [vmem:[%s357 + $0xb0] sm:$0xff] %v2634
        %2667 = vst [vmem:[%s357 + $0xb8] sm:$0xff] %v2635
        %2668 = vst [vmem:[%s357 + $0xc0] sm:$0xff] %v2636
        %2669 = vst [vmem:[%s357 + $0xc8] sm:$0xff] %v2637
        %2670 = vst [vmem:[%s357 + $0xd0] sm:$0xff] %v2638
        %2671 = vst [vmem:[%s357 + $0xd8] sm:$0xff] %v2639
        %2672 = vst [vmem:[%s357 + $0xe0] sm:$0xff] %v2640
        %2673 = vst [vmem:[%s357 + $0xe8] sm:$0xff] %v2641
        %2674 = vst [vmem:[%s357 + $0xf0] sm:$0xff] %v2642
        %2675 = vst [vmem:[%s357 + $0xf8] sm:$0xff] %v2643
        %v2676 = vpack.c.bf16 %v2370, %v2370
        %2677 = vmatprep.subr.bf16.mxu0 0
        %2678 = vmatpush1.bf16.msra.mxu0 %v2442
        %2679 = vmatprep.subr.bf16.mxu0 0
        %2680 = vmatpush1.bf16.msra.mxu0 %v2441
        %2681 = vmatprep.subr.bf16.mxu0 0
        %2682 = vmatpush1.bf16.msra.mxu0 %v2440
        %2683 = vmatprep.subr.bf16.mxu0 0
        %2684 = vmatpush1.bf16.msra.mxu0 %v2439
        %2685 = vmatprep.subr.bf16.mxu0 0
        %2686 = vmatpush1.bf16.msra.mxu0 %v2438
        %2687 = vmatprep.subr.bf16.mxu0 0
        %2688 = vmatpush1.bf16.msra.mxu0 %v2437
        %2689 = vmatprep.subr.bf16.mxu0 0
        %2690 = vmatpush1.bf16.msra.mxu0 %v2436
        %2691 = vmatprep.subr.bf16.mxu0 0
        %2692 = vmatpush1.bf16.msra.mxu0 %v2435
        %2693 = vmatprep.subr.bf16.mxu0 0
        %2694 = vmatpush2.bf16.msra.mxu0 0
        %2695 = vmatprep.subr.bf16.mxu0 0
        %2696 = vmatpush2.bf16.msra.mxu0 0
        %2697 = vmatprep.subr.bf16.mxu0 0
        %2698 = vmatpush2.bf16.msra.mxu0 0
        %2699 = vmatprep.subr.bf16.mxu0 0
        %2700 = vmatpush2.bf16.msra.mxu0 0
        %2701 = vmatprep.subr.bf16.mxu0 0
        %2702 = vmatpush2.bf16.msra.mxu0 0
        %2703 = vmatprep.subr.bf16.mxu0 0
        %2704 = vmatpush2.bf16.msra.mxu0 0
        %2705 = vmatprep.subr.bf16.mxu0 0
        %2706 = vmatpush2.bf16.msra.mxu0 0
        %2707 = vmatprep.subr.bf16.mxu0 0
        %2708 = vmatpush2.bf16.msra.mxu0 0
        %2709 = vmatprep.mubr.bf16.mxu0 0
        %2710 = vmatmul.mubr.bf16.gmra.mxu0 %v2676
        %v2711 = vpop.f32.mrf.mxu0
        %v2712 = vadd.f32 0.0, %v2711
        %v2713 = vpop.f32.mrf.mxu0
        %v2714 = vpop.f32.mrf.mxu0
        %v2715 = vpop.f32.mrf.mxu0
        %2716 = vdwg.mxu0
        %v2717 = vmul.f32 %v2712, 5.0
        %2718 = vst [vmem:[%s333] sm:$0x1] %v2717
        %p2719 = scmp.lt.s32.totalorder %s23, 1
        %s2720 = scalar_select %p2719, %s23, 1
        %s2721 = smul.addr %s2720, 32
        %s2722 = smul.addr %s2721, 8
        %s2723 = scalar_lea.vmem %s6, %s2722
        %s2724 = sand.u32 %s198, 1
        %s2725 = scalar_lea.sflag [#allocation3], %s2724
        %s2726 = sand.u32 %s198, 1
        %s2727 = scalar_lea.vmem [#allocation2], %s2726
        %p2728 = scmp.lt.s32.totalorder %s23, 1
        %s2729 = scalar_select %p2728, %s23, 1
        %s2730 = scalar_lea.vmem %s8, %s2729
        // Predicated region
        $region45: #{_forward_core.3} parent=43 // pred_check
          %p2731 = pneg %p182
        $region46: #{_forward_core.3} parent=43 // pred_check_branch
          %2733 = sbr.rel (%p2731) target = $region48
        $region47: #{_forward_core.3} parent=43 // pred_region
          _
        $region48: #{_forward_core.3} parent=43 // pred_fallthru
          _
        // Predicated region
        $region49: #{_forward_core.3} parent=43 // pred_check
          %p2734 = pneg %p208
        $region50: #{_forward_core.3} parent=43 // pred_check_branch
          %2736 = sbr.rel (%p2734) target = $region52
        $region51: #{_forward_core.3} parent=43 // pred_region
          %s2738 = ssub.s32 16, 16
          %2739 = vsyncadd %s2725, %s2738
          %s2740 = smul.addr %s23, 16
          %s2741 = scalar_lea.hbm %s7, %s2740
          %s2743 = sshll.u32 %s2727, 4
          %s2744 = int_to_ptr.vmem [resolvable:$true] %s2743
          %2746 = dma.vmem_to_hbm [thread:$0]  %s2744, 16, %s2741, %s2725
        $region52: #{_forward_core.3} parent=43 // pred_fallthru
          _
        // Predicated region
        $region53: #{_forward_core.3} parent=43 // pred_check
          %p2747 = pneg %p234
        $region54: #{_forward_core.3} parent=43 // pred_check_branch
          %2749 = sbr.rel (%p2747) target = $region56
        $region55: #{_forward_core.3} parent=43 // pred_region
          _
        $region56: #{_forward_core.3} parent=43 // pred_fallthru
          _
      $region44: #{_forward_core.3} parent=5 // pred_fallthru
        _
      %p2750 = scmp.le.s32.totalorder 2, %s18
      // Predicated region
      $region57: #{_forward_core.3} parent=5 // pred_check
        %p2751 = pneg %p2750
      $region58: #{_forward_core.3} parent=5 // pred_check_branch
        %2753 = sbr.rel (%p2751) target = $region60
      $region59: #{_forward_core.3} parent=5 // pred_region
        %s2754 = ssub.s32 %s18, 2
        // Predicated region
        $region61: #{_forward_core.3} parent=59 // pred_check
          %p2755 = pneg %p188
        $region62: #{_forward_core.3} parent=59 // pred_check_branch
          %2757 = sbr.rel (%p2755) target = $region64
        $region63: #{_forward_core.3} parent=59 // pred_region
          %p2758 = scmp.lt.s32.totalorder %s24, 1
          %s2759 = scalar_select %p2758, %s24, 1
          %s2760 = smul.addr %s2759, 32
          %s2761 = smul.addr %s2760, 8
          %s2762 = scalar_lea.vmem %s6, %s2761
        $region64: #{_forward_core.3} parent=59 // pred_fallthru
          _
        // Predicated region
        $region65: #{_forward_core.3} parent=59 // pred_check
          %p2763 = pneg %p214
        $region66: #{_forward_core.3} parent=59 // pred_check_branch
          %2765 = sbr.rel (%p2763) target = $region68
        $region67: #{_forward_core.3} parent=59 // pred_region
          %s2766 = sand.u32 %s199, 1
          %s2767 = scalar_lea.sflag [#allocation3], %s2766
          %s2768 = sand.u32 %s199, 1
          %s2769 = scalar_lea.vmem [#allocation2], %s2768
          %2770 = dma.done %s2767, 16
        $region68: #{_forward_core.3} parent=59 // pred_fallthru
          _
        // Predicated region
        $region69: #{_forward_core.3} parent=59 // pred_check
          %p2771 = pneg %p240
        $region70: #{_forward_core.3} parent=59 // pred_check_branch
          %2773 = sbr.rel (%p2771) target = $region72
        $region71: #{_forward_core.3} parent=59 // pred_region
          %p2774 = scmp.lt.s32.totalorder %s24, 1
          %s2775 = scalar_select %p2774, %s24, 1
          %s2776 = scalar_lea.vmem %s8, %s2775
        $region72: #{_forward_core.3} parent=59 // pred_fallthru
          _
      $region60: #{_forward_core.3} parent=5 // pred_fallthru
        _
    $region6: #{_forward_core.3} parent=1 // loop_footer
      %s22 = sadd.s32 1, %s18
    $region7: #{_forward_core.3} parent=1 // loop_footer_branch
      %17 = sbr.rel target = $region3
    $region8: #{_forward_core.3} parent=1 // loop_exit
      _
    %2777 = vsyncpa [#allocation3], 1
    %s2778 = scalar_lea.sflag [#allocation3], 1
    %2779 = vsyncpa %s2778, 1

</llo_original>
